<compile_context>
chip_gen: v6e
topology: v6e:2x2x1
jax: 0.10.0
libtpu: 0.0.40
codegen_flags: <defaults>
</compile_context>

<pallas_src>
import functools
import math

import jax
import jax.numpy as jnp
from jax.experimental import pallas as pl
from jax.experimental.pallas import tpu as pltpu

HEADS = 4
LOCAL_ATTN_CTX = 8
BLOCKSIZE = 8
T = 64            # sequence length, fixed by Linear(64*256, 256) in the module
E = 256           # embed size, fixed by Linear(64*256, 256)
FF_OUT = 256


# ---------------------------------------------------------------------------
# Fused kernel: attention + residual add + Linear(64*256 -> 256) + ReLU.
# ---------------------------------------------------------------------------
def _fused_block_kernel(q_ref, k_ref, v_ref, w_ref, b_ref,
                        out_ref, attn_ref, attn_scratch, acc_ref,
                        *, scale, rows_per_step):
    j = pl.program_id(0)            # output-column tile (parallel; 2 TCs on v7x)
    kk = pl.program_id(1)           # FFN reduction step over sequence rows (arbitrary)

    @pl.when(kk == 0)
    def _():
        # ---- attention: softmax(q k^T * scale) v over the whole (N, T, E) batch ----
        q = q_ref[...].astype(jnp.float32)
        k = k_ref[...].astype(jnp.float32)
        v = v_ref[...].astype(jnp.float32)
        # NT contraction (contracting dim last on both sides) -> no k.T materialization.
        s = jnp.einsum("bqd,bkd->bqk", q, k,
                       preferred_element_type=jnp.float32) * scale
        s = s - jnp.max(s, axis=-1, keepdims=True)       # stable softmax == F.softmax
        p = jnp.exp(s)
        p = p / jnp.sum(p, axis=-1, keepdims=True)       # exact div (tolerance-critical)
        a = jnp.einsum("bqk,bkd->bqd", p, v, preferred_element_type=jnp.float32)
        attn_scratch[...] = a
        # Each j-program writes its own disjoint slab of sequence rows of the attention
        # output, so the two TensorCores never write the same HBM block.
        half = attn_ref.shape[1]
        r0 = pl.multiple_of(j * half, half)
        attn_ref[...] = attn_scratch[:, pl.ds(r0, half), :].astype(attn_ref.dtype)
        # f32 FFN accumulator stays resident across the k axis: init it.
        acc_ref[...] = jnp.zeros_like(acc_ref)

    # ---- fused residual + Linear tile:  acc += (attn + q)[rows] @ W[rows, :, cols] ----
    # TODO(synk): nn.Dropout treated as identity (inference); training-mode RNG dropout
    # not reproduced.
    row0 = pl.multiple_of(kk * rows_per_step, rows_per_step)
    x = (attn_scratch[:, pl.ds(row0, rows_per_step), :]
         + q_ref[:, pl.ds(row0, rows_per_step), :].astype(jnp.float32))   # (N, rows, E)
    partial = jnp.zeros(acc_ref.shape, jnp.float32)
    for t in range(rows_per_step):             # static unroll; one (E, out_tile) W slab/t
        partial += jnp.dot(x[:, t, :], w_ref[t].astype(jnp.float32),
                           preferred_element_type=jnp.float32)
    acc_ref[...] += partial

    @pl.when(kk == pl.num_programs(1) - 1)
    def _():
        y = acc_ref[...] + b_ref[...].astype(jnp.float32)
        out_ref[...] = jnp.maximum(y, 0.0).astype(out_ref.dtype)


def transformer_block_forward(value, key, query, mask, params, *,
                              rows_per_step=32, out_tile=128):
    """TransformerBlock.forward -> (out (N, 256), attention (N, T, E))."""
    del mask  # accepted but unused, exactly like the PyTorch module
    n, t, e = query.shape
    w = params["ff_w"]                       # (T*E, FF_OUT), pre-transposed: y = x @ W + b
    b = params["ff_b"].reshape(1, -1)
    kdim, n_out = w.shape
    assert kdim == t * e
    # Free bitcast: split the flattened contraction dim so the kernel can index W by
    # sequence row (w3[t] is the (E, FF_OUT) slab multiplying x[:, t, :]).
    w3 = w.reshape(t, e, n_out)

    rows_per_step = min(rows_per_step, t)
    out_tile = min(out_tile, n_out)
    assert t % rows_per_step == 0
    assert n_out % out_tile == 0
    num_j = n_out // out_tile
    num_k = t // rows_per_step
    assert t % num_j == 0
    attn_rows = t // num_j                   # attention-output rows written per j-program
    scale = 1.0 / math.sqrt(e // HEADS)

    kernel = functools.partial(_fused_block_kernel, scale=scale,
                               rows_per_step=rows_per_step)
    out, attention = pl.pallas_call(
        kernel,
        out_shape=(jax.ShapeDtypeStruct((n, n_out), query.dtype),
                   jax.ShapeDtypeStruct((n, t, e), query.dtype)),
        grid_spec=pltpu.PrefetchScalarGridSpec(
            num_scalar_prefetch=0,
            grid=(num_j, num_k),
            in_specs=[
                pl.BlockSpec((n, t, e), lambda j, k: (0, 0, 0)),    # query (resident)
                pl.BlockSpec((n, t, e), lambda j, k: (0, 0, 0)),    # key   (resident)
                pl.BlockSpec((n, t, e), lambda j, k: (0, 0, 0)),    # value (resident)
                pl.BlockSpec((rows_per_step, e, out_tile),
                             lambda j, k: (k, 0, j)),               # W tile (streamed)
                pl.BlockSpec((1, out_tile), lambda j, k: (0, j)),   # bias tile
            ],
            out_specs=[
                pl.BlockSpec((n, out_tile), lambda j, k: (0, j)),         # FFN out
                pl.BlockSpec((n, attn_rows, e), lambda j, k: (0, j, 0)),  # attention out
            ],
            scratch_shapes=[pltpu.VMEM((n, t, e), jnp.float32),      # attention scratch
                            pltpu.VMEM((n, out_tile), jnp.float32)], # f32 FFN accumulator
        ),
        compiler_params=pltpu.CompilerParams(
            dimension_semantics=("parallel", "arbitrary"),
            vmem_limit_bytes=32 * 1024 * 1024,
        ),
    )(query, key, value, w3, b)
    return out, attention


# ---------------------------------------------------------------------------
# Pure-JAX reference (faithful to the PyTorch module, WITH the strided permutation).
# ---------------------------------------------------------------------------
def _strided_transpose(x, n_ctx, local_attn_ctx, blocksize):
    bT_ctx = n_ctx // local_attn_ctx
    assert bT_ctx % blocksize == 0, (bT_ctx, blocksize)
    n, t, embd = x.shape
    x = x.reshape(n, bT_ctx, local_attn_ctx, embd)
    x = jnp.transpose(x, (0, 2, 1, 3))
    return x.reshape(n, t, embd)


def _strided_untranspose(a, n_ctx, local_attn_ctx):
    bT_ctx = n_ctx // local_attn_ctx
    n, t, embd = a.shape
    a = a.reshape(n, local_attn_ctx, bT_ctx, embd)
    a = jnp.transpose(a, (0, 2, 1, 3))
    return a.reshape(n, t, embd)


def _ref_forward(value, key, query, params):
    hi = jax.lax.Precision.HIGHEST
    n, t, embd = query.shape
    qs = _strided_transpose(query, t, LOCAL_ATTN_CTX, BLOCKSIZE)
    ks = _strided_transpose(key, t, LOCAL_ATTN_CTX, BLOCKSIZE)
    vs = _strided_transpose(value, t, LOCAL_ATTN_CTX, BLOCKSIZE)
    scale = 1.0 / math.sqrt(embd // HEADS)
    s = jnp.einsum("ntd,nsd->nts", qs, ks, precision=hi) * scale
    p = jax.nn.softmax(s, axis=-1)
    a = jnp.einsum("nts,nsd->ntd", p, vs, precision=hi)
    a = _strided_untranspose(a, t, LOCAL_ATTN_CTX)
    x = a + query
    out = jnp.maximum(
        jnp.dot(x.reshape(n, -1), params["ff_w"], precision=hi) + params["ff_b"], 0.0)
    return out, a


if __name__ == "__main__":
    N = 2  # batch; T=64 and E=256 are fixed by Linear(64*256, 256)

    root = jax.random.PRNGKey(0)
    kv_, kk_, kq_, kw_, kb_ = jax.random.split(root, 5)

    value = jax.random.normal(kv_, (N, T, E), dtype=jnp.float32)
    key = jax.random.normal(kk_, (N, T, E), dtype=jnp.float32)
    query = jax.random.normal(kq_, (N, T, E), dtype=jnp.float32)
    mask = None  # unused by the module's forward

    # nn.Linear(64*256, 256) default init: U(-1/sqrt(fan_in), 1/sqrt(fan_in)).
    fan_in = T * E
    bound = 1.0 / math.sqrt(fan_in)
    params = {
        # stored pre-transposed: (in_features, out_features) so y = x @ W + b
        "ff_w": jax.random.uniform(kw_, (fan_in, FF_OUT), jnp.float32, -bound, bound),
        "ff_b": jax.random.uniform(kb_, (FF_OUT,), jnp.float32, -bound, bound),
    }

    out, attention = transformer_block_forward(value, key, query, mask, params)
    jax.block_until_ready((out, attention))

    out_ref, attn_ref = _ref_forward(value, key, query, params)
    assert out.shape == (N, FF_OUT) and attention.shape == (N, T, E)
    assert jnp.allclose(attention, attn_ref, atol=1e-4, rtol=1e-4)
    assert jnp.allclose(out, out_ref, atol=1e-3, rtol=1e-3)

    print("KERNEL_OK")
</pallas_src>

<mosaic_0001>
module attributes {stable_mosaic.version = 11 : i64} {
  func.func @_fused_block_kernel(%arg0: i32, %arg1: i32, %arg2: memref<2x64x256xf32, #tpu.memory_space<vmem>>, %arg3: memref<2x64x256xf32, #tpu.memory_space<vmem>>, %arg4: memref<2x64x256xf32, #tpu.memory_space<vmem>>, %arg5: memref<32x256x128xf32, #tpu.memory_space<vmem>>, %arg6: memref<1x128xf32, #tpu.memory_space<vmem>>, %arg7: memref<2x128xf32, #tpu.memory_space<vmem>>, %arg8: memref<2x32x256xf32, #tpu.memory_space<vmem>>, %arg9: memref<2x64x256xf32, #tpu.memory_space<vmem>>, %arg10: memref<2x128xf32, #tpu.memory_space<vmem>>) attributes {dimension_semantics = [#tpu.dimension_semantics<parallel>, #tpu.dimension_semantics<arbitrary>], iteration_bounds = array<i64: 2, 2>, scalar_prefetch = 0 : i64, scratch_operands = 2 : i64, tpu.core_type = #tpu.core_type<tc>, window_params = [{pipeline_mode = #tpu.pipeline_mode<synchronous>, transform_indices = @transform_0, window_bounds = array<i64: 2, 64, 256>}, {pipeline_mode = #tpu.pipeline_mode<synchronous>, transform_indices = @transform_1, window_bounds = array<i64: 2, 64, 256>}, {pipeline_mode = #tpu.pipeline_mode<synchronous>, transform_indices = @transform_2, window_bounds = array<i64: 2, 64, 256>}, {transform_indices = @transform_3, window_bounds = array<i64: 32, 256, 128>}, {transform_indices = @transform_4, window_bounds = array<i64: 1, 128>}, {transform_indices = @transform_5, window_bounds = array<i64: 2, 128>}, {transform_indices = @transform_6, window_bounds = array<i64: 2, 32, 256>}]} {
    %c0_i32 = arith.constant 0 : i32
    %0 = arith.cmpi eq, %arg1, %c0_i32 : i32
    %1 = arith.extui %0 : i1 to i32
    %c0_i32_0 = arith.constant 0 : i32
    %2 = arith.cmpi ne, %1, %c0_i32_0 : i32
    scf.if %2 {
      %c0_106 = arith.constant 0 : index
      %c0_107 = arith.constant 0 : index
      %c0_108 = arith.constant 0 : index
      %209 = vector.load %arg2[%c0_106, %c0_107, %c0_108] : memref<2x64x256xf32, #tpu.memory_space<vmem>>, vector<2x64x256xf32>
      %c0_109 = arith.constant 0 : index
      %c0_110 = arith.constant 0 : index
      %c0_111 = arith.constant 0 : index
      %210 = vector.load %arg3[%c0_109, %c0_110, %c0_111] : memref<2x64x256xf32, #tpu.memory_space<vmem>>, vector<2x64x256xf32>
      %c0_112 = arith.constant 0 : index
      %c0_113 = arith.constant 0 : index
      %c0_114 = arith.constant 0 : index
      %211 = vector.load %arg4[%c0_112, %c0_113, %c0_114] : memref<2x64x256xf32, #tpu.memory_space<vmem>>, vector<2x64x256xf32>
      "tpu.trace_start"() <{level = 10 : i32, message = "bqd,bkd->bqk"}> : () -> ()
      %cst_115 = arith.constant dense<0.000000e+00> : vector<2x64x64xf32>
      %212 = tpu.matmul %209, %210, %cst_115 {dimension_numbers = #tpu.dot_dimension_numbers<[2], [2], [1], [1], [0, 0, 0, 1, 1, 1], [0], [0]>} : vector<2x64x256xf32>, vector<2x64x256xf32>, vector<2x64x64xf32> -> vector<2x64x64xf32>
      "tpu.trace_stop"() : () -> ()
      %cst_116 = arith.constant 1.250000e-01 : f32
      %213 = vector.broadcast %cst_116 : f32 to vector<2x64x64xf32>
      %214 = arith.mulf %212, %213 : vector<2x64x64xf32>
      %cst_117 = arith.constant dense<0xFF800000> : vector<2x64xf32>
      %215 = vector.multi_reduction <maximumf>, %214, %cst_117 [2] : vector<2x64x64xf32> to vector<2x64xf32>
      %216 = vector.shape_cast %215 : vector<2x64xf32> to vector<2x64x1xf32>
      %217 = vector.broadcast %216 : vector<2x64x1xf32> to vector<2x64x64xf32>
      %218 = arith.subf %214, %217 : vector<2x64x64xf32>
      %219 = math.exp %218 : vector<2x64x64xf32>
      %cst_118 = arith.constant dense<0.000000e+00> : vector<2x64xf32>
      %220 = vector.multi_reduction <add>, %219, %cst_118 [2] : vector<2x64x64xf32> to vector<2x64xf32>
      %221 = vector.shape_cast %220 : vector<2x64xf32> to vector<2x64x1xf32>
      %222 = vector.broadcast %221 : vector<2x64x1xf32> to vector<2x64x64xf32>
      %223 = arith.divf %219, %222 : vector<2x64x64xf32>
      "tpu.trace_start"() <{level = 10 : i32, message = "bqk,bkd->bqd"}> : () -> ()
      %cst_119 = arith.constant dense<0.000000e+00> : vector<2x64x256xf32>
      %224 = tpu.matmul %223, %211, %cst_119 {dimension_numbers = #tpu.dot_dimension_numbers<[2], [1], [1], [2], [0, 0, 0, 1, 1, 2], [0], [0]>} : vector<2x64x64xf32>, vector<2x64x256xf32>, vector<2x64x256xf32> -> vector<2x64x256xf32>
      "tpu.trace_stop"() : () -> ()
      %c0_120 = arith.constant 0 : index
      %c0_121 = arith.constant 0 : index
      %c0_122 = arith.constant 0 : index
      %225 = vector.load %arg9[%c0_120, %c0_121, %c0_122] : memref<2x64x256xf32, #tpu.memory_space<vmem>>, vector<2x64x256xf32>
      tpu.vector_store %arg9[%c0_120, %c0_121, %c0_122], %224 {strides = array<i32>} : memref<2x64x256xf32, #tpu.memory_space<vmem>>, vector<2x64x256xf32>,
      %c32_i32_123 = arith.constant 32 : i32
      %226 = arith.muli %arg0, %c32_i32_123 : i32
      %227 = tpu.assume_multiple %226, 32 : i32
      %c0_124 = arith.constant 0 : index
      %228 = arith.index_cast %227 : i32 to index
      %c0_125 = arith.constant 0 : index
      %229 = vector.load %arg9[%c0_124, %228, %c0_125] : memref<2x64x256xf32, #tpu.memory_space<vmem>>, vector<2x32x256xf32>
      %c0_126 = arith.constant 0 : index
      %c0_127 = arith.constant 0 : index
      %c0_128 = arith.constant 0 : index
      %230 = vector.load %arg8[%c0_126, %c0_127, %c0_128] : memref<2x32x256xf32, #tpu.memory_space<vmem>>, vector<2x32x256xf32>
      tpu.vector_store %arg8[%c0_126, %c0_127, %c0_128], %229 {strides = array<i32>} : memref<2x32x256xf32, #tpu.memory_space<vmem>>, vector<2x32x256xf32>,
      %cst_129 = arith.constant 0.000000e+00 : f32
      %231 = vector.broadcast %cst_129 : f32 to vector<2x128xf32>
      %c0_130 = arith.constant 0 : index
      %c0_131 = arith.constant 0 : index
      %232 = vector.load %arg10[%c0_130, %c0_131] : memref<2x128xf32, #tpu.memory_space<vmem>>, vector<2x128xf32>
      tpu.vector_store %arg10[%c0_130, %c0_131], %231 {strides = array<i32>} : memref<2x128xf32, #tpu.memory_space<vmem>>, vector<2x128xf32>,
    } else {
    }
    %c32_i32 = arith.constant 32 : i32
    %3 = arith.muli %arg1, %c32_i32 : i32
    %4 = tpu.assume_multiple %3, 32 : i32
    %c0 = arith.constant 0 : index
    %5 = arith.index_cast %4 : i32 to index
    %c0_1 = arith.constant 0 : index
    %6 = vector.load %arg9[%c0, %5, %c0_1] : memref<2x64x256xf32, #tpu.memory_space<vmem>>, vector<2x32x256xf32>
    %c0_2 = arith.constant 0 : index
    %7 = arith.index_cast %4 : i32 to index
    %c0_3 = arith.constant 0 : index
    %8 = vector.load %arg2[%c0_2, %7, %c0_3] : memref<2x64x256xf32, #tpu.memory_space<vmem>>, vector<2x32x256xf32>
    %9 = arith.addf %6, %8 : vector<2x32x256xf32>
    %cst = arith.constant 0.000000e+00 : f32
    %10 = vector.broadcast %cst : f32 to vector<2x128xf32>
    %11 = vector.extract_strided_slice %9 {offsets = [0, 0, 0], sizes = [2, 1, 256], strides = [1, 1, 1]} : vector<2x32x256xf32> to vector<2x1x256xf32>
    %12 = vector.shape_cast %11 : vector<2x1x256xf32> to vector<2x256xf32>
    %c0_4 = arith.constant 0 : index
    %c0_5 = arith.constant 0 : index
    %c0_6 = arith.constant 0 : index
    %13 = vector.load %arg5[%c0_4, %c0_5, %c0_6] : memref<32x256x128xf32, #tpu.memory_space<vmem>>, vector<1x256x128xf32>
    %14 = vector.shape_cast %13 : vector<1x256x128xf32> to vector<256x128xf32>
    %cst_7 = arith.constant dense<0.000000e+00> : vector<2x128xf32>
    %15 = tpu.matmul %12, %14, %cst_7 {dimension_numbers = #tpu.dot_dimension_numbers<[1], [0], [0], [1], [0, 0, 1, 1], [], []>} : vector<2x256xf32>, vector<256x128xf32>, vector<2x128xf32> -> vector<2x128xf32>
    %16 = arith.addf %10, %15 : vector<2x128xf32>
    %17 = vector.extract_strided_slice %9 {offsets = [0, 1, 0], sizes = [2, 1, 256], strides = [1, 1, 1]} : vector<2x32x256xf32> to vector<2x1x256xf32>
    %18 = vector.shape_cast %17 : vector<2x1x256xf32> to vector<2x256xf32>
    %c1 = arith.constant 1 : index
    %c0_8 = arith.constant 0 : index
    %c0_9 = arith.constant 0 : index
    %19 = vector.load %arg5[%c1, %c0_8, %c0_9] : memref<32x256x128xf32, #tpu.memory_space<vmem>>, vector<1x256x128xf32>
    %20 = vector.shape_cast %19 : vector<1x256x128xf32> to vector<256x128xf32>
    %cst_10 = arith.constant dense<0.000000e+00> : vector<2x128xf32>
    %21 = tpu.matmul %18, %20, %cst_10 {dimension_numbers = #tpu.dot_dimension_numbers<[1], [0], [0], [1], [0, 0, 1, 1], [], []>} : vector<2x256xf32>, vector<256x128xf32>, vector<2x128xf32> -> vector<2x128xf32>
    %22 = arith.addf %16, %21 : vector<2x128xf32>
    %23 = vector.extract_strided_slice %9 {offsets = [0, 2, 0], sizes = [2, 1, 256], strides = [1, 1, 1]} : vector<2x32x256xf32> to vector<2x1x256xf32>
    %24 = vector.shape_cast %23 : vector<2x1x256xf32> to vector<2x256xf32>
    %c2 = arith.constant 2 : index
    %c0_11 = arith.constant 0 : index
    %c0_12 = arith.constant 0 : index
    %25 = vector.load %arg5[%c2, %c0_11, %c0_12] : memref<32x256x128xf32, #tpu.memory_space<vmem>>, vector<1x256x128xf32>
    %26 = vector.shape_cast %25 : vector<1x256x128xf32> to vector<256x128xf32>
    %cst_13 = arith.constant dense<0.000000e+00> : vector<2x128xf32>
    %27 = tpu.matmul %24, %26, %cst_13 {dimension_numbers = #tpu.dot_dimension_numbers<[1], [0], [0], [1], [0, 0, 1, 1], [], []>} : vector<2x256xf32>, vector<256x128xf32>, vector<2x128xf32> -> vector<2x128xf32>
    %28 = arith.addf %22, %27 : vector<2x128xf32>
    %29 = vector.extract_strided_slice %9 {offsets = [0, 3, 0], sizes = [2, 1, 256], strides = [1, 1, 1]} : vector<2x32x256xf32> to vector<2x1x256xf32>
    %30 = vector.shape_cast %29 : vector<2x1x256xf32> to vector<2x256xf32>
    %c3 = arith.constant 3 : index
    %c0_14 = arith.constant 0 : index
    %c0_15 = arith.constant 0 : index
    %31 = vector.load %arg5[%c3, %c0_14, %c0_15] : memref<32x256x128xf32, #tpu.memory_space<vmem>>, vector<1x256x128xf32>
    %32 = vector.shape_cast %31 : vector<1x256x128xf32> to vector<256x128xf32>
    %cst_16 = arith.constant dense<0.000000e+00> : vector<2x128xf32>
    %33 = tpu.matmul %30, %32, %cst_16 {dimension_numbers = #tpu.dot_dimension_numbers<[1], [0], [0], [1], [0, 0, 1, 1], [], []>} : vector<2x256xf32>, vector<256x128xf32>, vector<2x128xf32> -> vector<2x128xf32>
    %34 = arith.addf %28, %33 : vector<2x128xf32>
    %35 = vector.extract_strided_slice %9 {offsets = [0, 4, 0], sizes = [2, 1, 256], strides = [1, 1, 1]} : vector<2x32x256xf32> to vector<2x1x256xf32>
    %36 = vector.shape_cast %35 : vector<2x1x256xf32> to vector<2x256xf32>
    %c4 = arith.constant 4 : index
    %c0_17 = arith.constant 0 : index
    %c0_18 = arith.constant 0 : index
    %37 = vector.load %arg5[%c4, %c0_17, %c0_18] : memref<32x256x128xf32, #tpu.memory_space<vmem>>, vector<1x256x128xf32>
    %38 = vector.shape_cast %37 : vector<1x256x128xf32> to vector<256x128xf32>
    %cst_19 = arith.constant dense<0.000000e+00> : vector<2x128xf32>
    %39 = tpu.matmul %36, %38, %cst_19 {dimension_numbers = #tpu.dot_dimension_numbers<[1], [0], [0], [1], [0, 0, 1, 1], [], []>} : vector<2x256xf32>, vector<256x128xf32>, vector<2x128xf32> -> vector<2x128xf32>
    %40 = arith.addf %34, %39 : vector<2x128xf32>
    %41 = vector.extract_strided_slice %9 {offsets = [0, 5, 0], sizes = [2, 1, 256], strides = [1, 1, 1]} : vector<2x32x256xf32> to vector<2x1x256xf32>
    %42 = vector.shape_cast %41 : vector<2x1x256xf32> to vector<2x256xf32>
    %c5 = arith.constant 5 : index
    %c0_20 = arith.constant 0 : index
    %c0_21 = arith.constant 0 : index
    %43 = vector.load %arg5[%c5, %c0_20, %c0_21] : memref<32x256x128xf32, #tpu.memory_space<vmem>>, vector<1x256x128xf32>
    %44 = vector.shape_cast %43 : vector<1x256x128xf32> to vector<256x128xf32>
    %cst_22 = arith.constant dense<0.000000e+00> : vector<2x128xf32>
    %45 = tpu.matmul %42, %44, %cst_22 {dimension_numbers = #tpu.dot_dimension_numbers<[1], [0], [0], [1], [0, 0, 1, 1], [], []>} : vector<2x256xf32>, vector<256x128xf32>, vector<2x128xf32> -> vector<2x128xf32>
    %46 = arith.addf %40, %45 : vector<2x128xf32>
    %47 = vector.extract_strided_slice %9 {offsets = [0, 6, 0], sizes = [2, 1, 256], strides = [1, 1, 1]} : vector<2x32x256xf32> to vector<2x1x256xf32>
    %48 = vector.shape_cast %47 : vector<2x1x256xf32> to vector<2x256xf32>
    %c6 = arith.constant 6 : index
    %c0_23 = arith.constant 0 : index
    %c0_24 = arith.constant 0 : index
    %49 = vector.load %arg5[%c6, %c0_23, %c0_24] : memref<32x256x128xf32, #tpu.memory_space<vmem>>, vector<1x256x128xf32>
    %50 = vector.shape_cast %49 : vector<1x256x128xf32> to vector<256x128xf32>
    %cst_25 = arith.constant dense<0.000000e+00> : vector<2x128xf32>
    %51 = tpu.matmul %48, %50, %cst_25 {dimension_numbers = #tpu.dot_dimension_numbers<[1], [0], [0], [1], [0, 0, 1, 1], [], []>} : vector<2x256xf32>, vector<256x128xf32>, vector<2x128xf32> -> vector<2x128xf32>
    %52 = arith.addf %46, %51 : vector<2x128xf32>
    %53 = vector.extract_strided_slice %9 {offsets = [0, 7, 0], sizes = [2, 1, 256], strides = [1, 1, 1]} : vector<2x32x256xf32> to vector<2x1x256xf32>
    %54 = vector.shape_cast %53 : vector<2x1x256xf32> to vector<2x256xf32>
    %c7 = arith.constant 7 : index
    %c0_26 = arith.constant 0 : index
    %c0_27 = arith.constant 0 : index
    %55 = vector.load %arg5[%c7, %c0_26, %c0_27] : memref<32x256x128xf32, #tpu.memory_space<vmem>>, vector<1x256x128xf32>
    %56 = vector.shape_cast %55 : vector<1x256x128xf32> to vector<256x128xf32>
    %cst_28 = arith.constant dense<0.000000e+00> : vector<2x128xf32>
    %57 = tpu.matmul %54, %56, %cst_28 {dimension_numbers = #tpu.dot_dimension_numbers<[1], [0], [0], [1], [0, 0, 1, 1], [], []>} : vector<2x256xf32>, vector<256x128xf32>, vector<2x128xf32> -> vector<2x128xf32>
    %58 = arith.addf %52, %57 : vector<2x128xf32>
    %59 = vector.extract_strided_slice %9 {offsets = [0, 8, 0], sizes = [2, 1, 256], strides = [1, 1, 1]} : vector<2x32x256xf32> to vector<2x1x256xf32>
    %60 = vector.shape_cast %59 : vector<2x1x256xf32> to vector<2x256xf32>
    %c8 = arith.constant 8 : index
    %c0_29 = arith.constant 0 : index
    %c0_30 = arith.constant 0 : index
    %61 = vector.load %arg5[%c8, %c0_29, %c0_30] : memref<32x256x128xf32, #tpu.memory_space<vmem>>, vector<1x256x128xf32>
    %62 = vector.shape_cast %61 : vector<1x256x128xf32> to vector<256x128xf32>
    %cst_31 = arith.constant dense<0.000000e+00> : vector<2x128xf32>
    %63 = tpu.matmul %60, %62, %cst_31 {dimension_numbers = #tpu.dot_dimension_numbers<[1], [0], [0], [1], [0, 0, 1, 1], [], []>} : vector<2x256xf32>, vector<256x128xf32>, vector<2x128xf32> -> vector<2x128xf32>
    %64 = arith.addf %58, %63 : vector<2x128xf32>
    %65 = vector.extract_strided_slice %9 {offsets = [0, 9, 0], sizes = [2, 1, 256], strides = [1, 1, 1]} : vector<2x32x256xf32> to vector<2x1x256xf32>
    %66 = vector.shape_cast %65 : vector<2x1x256xf32> to vector<2x256xf32>
    %c9 = arith.constant 9 : index
    %c0_32 = arith.constant 0 : index
    %c0_33 = arith.constant 0 : index
    %67 = vector.load %arg5[%c9, %c0_32, %c0_33] : memref<32x256x128xf32, #tpu.memory_space<vmem>>, vector<1x256x128xf32>
    %68 = vector.shape_cast %67 : vector<1x256x128xf32> to vector<256x128xf32>
    %cst_34 = arith.constant dense<0.000000e+00> : vector<2x128xf32>
    %69 = tpu.matmul %66, %68, %cst_34 {dimension_numbers = #tpu.dot_dimension_numbers<[1], [0], [0], [1], [0, 0, 1, 1], [], []>} : vector<2x256xf32>, vector<256x128xf32>, vector<2x128xf32> -> vector<2x128xf32>
    %70 = arith.addf %64, %69 : vector<2x128xf32>
    %71 = vector.extract_strided_slice %9 {offsets = [0, 10, 0], sizes = [2, 1, 256], strides = [1, 1, 1]} : vector<2x32x256xf32> to vector<2x1x256xf32>
    %72 = vector.shape_cast %71 : vector<2x1x256xf32> to vector<2x256xf32>
    %c10 = arith.constant 10 : index
    %c0_35 = arith.constant 0 : index
    %c0_36 = arith.constant 0 : index
    %73 = vector.load %arg5[%c10, %c0_35, %c0_36] : memref<32x256x128xf32, #tpu.memory_space<vmem>>, vector<1x256x128xf32>
    %74 = vector.shape_cast %73 : vector<1x256x128xf32> to vector<256x128xf32>
    %cst_37 = arith.constant dense<0.000000e+00> : vector<2x128xf32>
    %75 = tpu.matmul %72, %74, %cst_37 {dimension_numbers = #tpu.dot_dimension_numbers<[1], [0], [0], [1], [0, 0, 1, 1], [], []>} : vector<2x256xf32>, vector<256x128xf32>, vector<2x128xf32> -> vector<2x128xf32>
    %76 = arith.addf %70, %75 : vector<2x128xf32>
    %77 = vector.extract_strided_slice %9 {offsets = [0, 11, 0], sizes = [2, 1, 256], strides = [1, 1, 1]} : vector<2x32x256xf32> to vector<2x1x256xf32>
    %78 = vector.shape_cast %77 : vector<2x1x256xf32> to vector<2x256xf32>
    %c11 = arith.constant 11 : index
    %c0_38 = arith.constant 0 : index
    %c0_39 = arith.constant 0 : index
    %79 = vector.load %arg5[%c11, %c0_38, %c0_39] : memref<32x256x128xf32, #tpu.memory_space<vmem>>, vector<1x256x128xf32>
    %80 = vector.shape_cast %79 : vector<1x256x128xf32> to vector<256x128xf32>
    %cst_40 = arith.constant dense<0.000000e+00> : vector<2x128xf32>
    %81 = tpu.matmul %78, %80, %cst_40 {dimension_numbers = #tpu.dot_dimension_numbers<[1], [0], [0], [1], [0, 0, 1, 1], [], []>} : vector<2x256xf32>, vector<256x128xf32>, vector<2x128xf32> -> vector<2x128xf32>
    %82 = arith.addf %76, %81 : vector<2x128xf32>
    %83 = vector.extract_strided_slice %9 {offsets = [0, 12, 0], sizes = [2, 1, 256], strides = [1, 1, 1]} : vector<2x32x256xf32> to vector<2x1x256xf32>
    %84 = vector.shape_cast %83 : vector<2x1x256xf32> to vector<2x256xf32>
    %c12 = arith.constant 12 : index
    %c0_41 = arith.constant 0 : index
    %c0_42 = arith.constant 0 : index
    %85 = vector.load %arg5[%c12, %c0_41, %c0_42] : memref<32x256x128xf32, #tpu.memory_space<vmem>>, vector<1x256x128xf32>
    %86 = vector.shape_cast %85 : vector<1x256x128xf32> to vector<256x128xf32>
    %cst_43 = arith.constant dense<0.000000e+00> : vector<2x128xf32>
    %87 = tpu.matmul %84, %86, %cst_43 {dimension_numbers = #tpu.dot_dimension_numbers<[1], [0], [0], [1], [0, 0, 1, 1], [], []>} : vector<2x256xf32>, vector<256x128xf32>, vector<2x128xf32> -> vector<2x128xf32>
    %88 = arith.addf %82, %87 : vector<2x128xf32>
    %89 = vector.extract_strided_slice %9 {offsets = [0, 13, 0], sizes = [2, 1, 256], strides = [1, 1, 1]} : vector<2x32x256xf32> to vector<2x1x256xf32>
    %90 = vector.shape_cast %89 : vector<2x1x256xf32> to vector<2x256xf32>
    %c13 = arith.constant 13 : index
    %c0_44 = arith.constant 0 : index
    %c0_45 = arith.constant 0 : index
    %91 = vector.load %arg5[%c13, %c0_44, %c0_45] : memref<32x256x128xf32, #tpu.memory_space<vmem>>, vector<1x256x128xf32>
    %92 = vector.shape_cast %91 : vector<1x256x128xf32> to vector<256x128xf32>
    %cst_46 = arith.constant dense<0.000000e+00> : vector<2x128xf32>
    %93 = tpu.matmul %90, %92, %cst_46 {dimension_numbers = #tpu.dot_dimension_numbers<[1], [0], [0], [1], [0, 0, 1, 1], [], []>} : vector<2x256xf32>, vector<256x128xf32>, vector<2x128xf32> -> vector<2x128xf32>
    %94 = arith.addf %88, %93 : vector<2x128xf32>
    %95 = vector.extract_strided_slice %9 {offsets = [0, 14, 0], sizes = [2, 1, 256], strides = [1, 1, 1]} : vector<2x32x256xf32> to vector<2x1x256xf32>
    %96 = vector.shape_cast %95 : vector<2x1x256xf32> to vector<2x256xf32>
    %c14 = arith.constant 14 : index
    %c0_47 = arith.constant 0 : index
    %c0_48 = arith.constant 0 : index
    %97 = vector.load %arg5[%c14, %c0_47, %c0_48] : memref<32x256x128xf32, #tpu.memory_space<vmem>>, vector<1x256x128xf32>
    %98 = vector.shape_cast %97 : vector<1x256x128xf32> to vector<256x128xf32>
    %cst_49 = arith.constant dense<0.000000e+00> : vector<2x128xf32>
    %99 = tpu.matmul %96, %98, %cst_49 {dimension_numbers = #tpu.dot_dimension_numbers<[1], [0], [0], [1], [0, 0, 1, 1], [], []>} : vector<2x256xf32>, vector<256x128xf32>, vector<2x128xf32> -> vector<2x128xf32>
    %100 = arith.addf %94, %99 : vector<2x128xf32>
    %101 = vector.extract_strided_slice %9 {offsets = [0, 15, 0], sizes = [2, 1, 256], strides = [1, 1, 1]} : vector<2x32x256xf32> to vector<2x1x256xf32>
    %102 = vector.shape_cast %101 : vector<2x1x256xf32> to vector<2x256xf32>
    %c15 = arith.constant 15 : index
    %c0_50 = arith.constant 0 : index
    %c0_51 = arith.constant 0 : index
    %103 = vector.load %arg5[%c15, %c0_50, %c0_51] : memref<32x256x128xf32, #tpu.memory_space<vmem>>, vector<1x256x128xf32>
    %104 = vector.shape_cast %103 : vector<1x256x128xf32> to vector<256x128xf32>
    %cst_52 = arith.constant dense<0.000000e+00> : vector<2x128xf32>
    %105 = tpu.matmul %102, %104, %cst_52 {dimension_numbers = #tpu.dot_dimension_numbers<[1], [0], [0], [1], [0, 0, 1, 1], [], []>} : vector<2x256xf32>, vector<256x128xf32>, vector<2x128xf32> -> vector<2x128xf32>
    %106 = arith.addf %100, %105 : vector<2x128xf32>
    %107 = vector.extract_strided_slice %9 {offsets = [0, 16, 0], sizes = [2, 1, 256], strides = [1, 1, 1]} : vector<2x32x256xf32> to vector<2x1x256xf32>
    %108 = vector.shape_cast %107 : vector<2x1x256xf32> to vector<2x256xf32>
    %c16 = arith.constant 16 : index
    %c0_53 = arith.constant 0 : index
    %c0_54 = arith.constant 0 : index
    %109 = vector.load %arg5[%c16, %c0_53, %c0_54] : memref<32x256x128xf32, #tpu.memory_space<vmem>>, vector<1x256x128xf32>
    %110 = vector.shape_cast %109 : vector<1x256x128xf32> to vector<256x128xf32>
    %cst_55 = arith.constant dense<0.000000e+00> : vector<2x128xf32>
    %111 = tpu.matmul %108, %110, %cst_55 {dimension_numbers = #tpu.dot_dimension_numbers<[1], [0], [0], [1], [0, 0, 1, 1], [], []>} : vector<2x256xf32>, vector<256x128xf32>, vector<2x128xf32> -> vector<2x128xf32>
    %112 = arith.addf %106, %111 : vector<2x128xf32>
    %113 = vector.extract_strided_slice %9 {offsets = [0, 17, 0], sizes = [2, 1, 256], strides = [1, 1, 1]} : vector<2x32x256xf32> to vector<2x1x256xf32>
    %114 = vector.shape_cast %113 : vector<2x1x256xf32> to vector<2x256xf32>
    %c17 = arith.constant 17 : index
    %c0_56 = arith.constant 0 : index
    %c0_57 = arith.constant 0 : index
    %115 = vector.load %arg5[%c17, %c0_56, %c0_57] : memref<32x256x128xf32, #tpu.memory_space<vmem>>, vector<1x256x128xf32>
    %116 = vector.shape_cast %115 : vector<1x256x128xf32> to vector<256x128xf32>
    %cst_58 = arith.constant dense<0.000000e+00> : vector<2x128xf32>
    %117 = tpu.matmul %114, %116, %cst_58 {dimension_numbers = #tpu.dot_dimension_numbers<[1], [0], [0], [1], [0, 0, 1, 1], [], []>} : vector<2x256xf32>, vector<256x128xf32>, vector<2x128xf32> -> vector<2x128xf32>
    %118 = arith.addf %112, %117 : vector<2x128xf32>
    %119 = vector.extract_strided_slice %9 {offsets = [0, 18, 0], sizes = [2, 1, 256], strides = [1, 1, 1]} : vector<2x32x256xf32> to vector<2x1x256xf32>
    %120 = vector.shape_cast %119 : vector<2x1x256xf32> to vector<2x256xf32>
    %c18 = arith.constant 18 : index
    %c0_59 = arith.constant 0 : index
    %c0_60 = arith.constant 0 : index
    %121 = vector.load %arg5[%c18, %c0_59, %c0_60] : memref<32x256x128xf32, #tpu.memory_space<vmem>>, vector<1x256x128xf32>
    %122 = vector.shape_cast %121 : vector<1x256x128xf32> to vector<256x128xf32>
    %cst_61 = arith.constant dense<0.000000e+00> : vector<2x128xf32>
    %123 = tpu.matmul %120, %122, %cst_61 {dimension_numbers = #tpu.dot_dimension_numbers<[1], [0], [0], [1], [0, 0, 1, 1], [], []>} : vector<2x256xf32>, vector<256x128xf32>, vector<2x128xf32> -> vector<2x128xf32>
    %124 = arith.addf %118, %123 : vector<2x128xf32>
    %125 = vector.extract_strided_slice %9 {offsets = [0, 19, 0], sizes = [2, 1, 256], strides = [1, 1, 1]} : vector<2x32x256xf32> to vector<2x1x256xf32>
    %126 = vector.shape_cast %125 : vector<2x1x256xf32> to vector<2x256xf32>
    %c19 = arith.constant 19 : index
    %c0_62 = arith.constant 0 : index
    %c0_63 = arith.constant 0 : index
    %127 = vector.load %arg5[%c19, %c0_62, %c0_63] : memref<32x256x128xf32, #tpu.memory_space<vmem>>, vector<1x256x128xf32>
    %128 = vector.shape_cast %127 : vector<1x256x128xf32> to vector<256x128xf32>
    %cst_64 = arith.constant dense<0.000000e+00> : vector<2x128xf32>
    %129 = tpu.matmul %126, %128, %cst_64 {dimension_numbers = #tpu.dot_dimension_numbers<[1], [0], [0], [1], [0, 0, 1, 1], [], []>} : vector<2x256xf32>, vector<256x128xf32>, vector<2x128xf32> -> vector<2x128xf32>
    %130 = arith.addf %124, %129 : vector<2x128xf32>
    %131 = vector.extract_strided_slice %9 {offsets = [0, 20, 0], sizes = [2, 1, 256], strides = [1, 1, 1]} : vector<2x32x256xf32> to vector<2x1x256xf32>
    %132 = vector.shape_cast %131 : vector<2x1x256xf32> to vector<2x256xf32>
    %c20 = arith.constant 20 : index
    %c0_65 = arith.constant 0 : index
    %c0_66 = arith.constant 0 : index
    %133 = vector.load %arg5[%c20, %c0_65, %c0_66] : memref<32x256x128xf32, #tpu.memory_space<vmem>>, vector<1x256x128xf32>
    %134 = vector.shape_cast %133 : vector<1x256x128xf32> to vector<256x128xf32>
    %cst_67 = arith.constant dense<0.000000e+00> : vector<2x128xf32>
    %135 = tpu.matmul %132, %134, %cst_67 {dimension_numbers = #tpu.dot_dimension_numbers<[1], [0], [0], [1], [0, 0, 1, 1], [], []>} : vector<2x256xf32>, vector<256x128xf32>, vector<2x128xf32> -> vector<2x128xf32>
    %136 = arith.addf %130, %135 : vector<2x128xf32>
    %137 = vector.extract_strided_slice %9 {offsets = [0, 21, 0], sizes = [2, 1, 256], strides = [1, 1, 1]} : vector<2x32x256xf32> to vector<2x1x256xf32>
    %138 = vector.shape_cast %137 : vector<2x1x256xf32> to vector<2x256xf32>
    %c21 = arith.constant 21 : index
    %c0_68 = arith.constant 0 : index
    %c0_69 = arith.constant 0 : index
    %139 = vector.load %arg5[%c21, %c0_68, %c0_69] : memref<32x256x128xf32, #tpu.memory_space<vmem>>, vector<1x256x128xf32>
    %140 = vector.shape_cast %139 : vector<1x256x128xf32> to vector<256x128xf32>
    %cst_70 = arith.constant dense<0.000000e+00> : vector<2x128xf32>
    %141 = tpu.matmul %138, %140, %cst_70 {dimension_numbers = #tpu.dot_dimension_numbers<[1], [0], [0], [1], [0, 0, 1, 1], [], []>} : vector<2x256xf32>, vector<256x128xf32>, vector<2x128xf32> -> vector<2x128xf32>
    %142 = arith.addf %136, %141 : vector<2x128xf32>
    %143 = vector.extract_strided_slice %9 {offsets = [0, 22, 0], sizes = [2, 1, 256], strides = [1, 1, 1]} : vector<2x32x256xf32> to vector<2x1x256xf32>
    %144 = vector.shape_cast %143 : vector<2x1x256xf32> to vector<2x256xf32>
    %c22 = arith.constant 22 : index
    %c0_71 = arith.constant 0 : index
    %c0_72 = arith.constant 0 : index
    %145 = vector.load %arg5[%c22, %c0_71, %c0_72] : memref<32x256x128xf32, #tpu.memory_space<vmem>>, vector<1x256x128xf32>
    %146 = vector.shape_cast %145 : vector<1x256x128xf32> to vector<256x128xf32>
    %cst_73 = arith.constant dense<0.000000e+00> : vector<2x128xf32>
    %147 = tpu.matmul %144, %146, %cst_73 {dimension_numbers = #tpu.dot_dimension_numbers<[1], [0], [0], [1], [0, 0, 1, 1], [], []>} : vector<2x256xf32>, vector<256x128xf32>, vector<2x128xf32> -> vector<2x128xf32>
    %148 = arith.addf %142, %147 : vector<2x128xf32>
    %149 = vector.extract_strided_slice %9 {offsets = [0, 23, 0], sizes = [2, 1, 256], strides = [1, 1, 1]} : vector<2x32x256xf32> to vector<2x1x256xf32>
    %150 = vector.shape_cast %149 : vector<2x1x256xf32> to vector<2x256xf32>
    %c23 = arith.constant 23 : index
    %c0_74 = arith.constant 0 : index
    %c0_75 = arith.constant 0 : index
    %151 = vector.load %arg5[%c23, %c0_74, %c0_75] : memref<32x256x128xf32, #tpu.memory_space<vmem>>, vector<1x256x128xf32>
    %152 = vector.shape_cast %151 : vector<1x256x128xf32> to vector<256x128xf32>
    %cst_76 = arith.constant dense<0.000000e+00> : vector<2x128xf32>
    %153 = tpu.matmul %150, %152, %cst_76 {dimension_numbers = #tpu.dot_dimension_numbers<[1], [0], [0], [1], [0, 0, 1, 1], [], []>} : vector<2x256xf32>, vector<256x128xf32>, vector<2x128xf32> -> vector<2x128xf32>
    %154 = arith.addf %148, %153 : vector<2x128xf32>
    %155 = vector.extract_strided_slice %9 {offsets = [0, 24, 0], sizes = [2, 1, 256], strides = [1, 1, 1]} : vector<2x32x256xf32> to vector<2x1x256xf32>
    %156 = vector.shape_cast %155 : vector<2x1x256xf32> to vector<2x256xf32>
    %c24 = arith.constant 24 : index
    %c0_77 = arith.constant 0 : index
    %c0_78 = arith.constant 0 : index
    %157 = vector.load %arg5[%c24, %c0_77, %c0_78] : memref<32x256x128xf32, #tpu.memory_space<vmem>>, vector<1x256x128xf32>
    %158 = vector.shape_cast %157 : vector<1x256x128xf32> to vector<256x128xf32>
    %cst_79 = arith.constant dense<0.000000e+00> : vector<2x128xf32>
    %159 = tpu.matmul %156, %158, %cst_79 {dimension_numbers = #tpu.dot_dimension_numbers<[1], [0], [0], [1], [0, 0, 1, 1], [], []>} : vector<2x256xf32>, vector<256x128xf32>, vector<2x128xf32> -> vector<2x128xf32>
    %160 = arith.addf %154, %159 : vector<2x128xf32>
    %161 = vector.extract_strided_slice %9 {offsets = [0, 25, 0], sizes = [2, 1, 256], strides = [1, 1, 1]} : vector<2x32x256xf32> to vector<2x1x256xf32>
    %162 = vector.shape_cast %161 : vector<2x1x256xf32> to vector<2x256xf32>
    %c25 = arith.constant 25 : index
    %c0_80 = arith.constant 0 : index
    %c0_81 = arith.constant 0 : index
    %163 = vector.load %arg5[%c25, %c0_80, %c0_81] : memref<32x256x128xf32, #tpu.memory_space<vmem>>, vector<1x256x128xf32>
    %164 = vector.shape_cast %163 : vector<1x256x128xf32> to vector<256x128xf32>
    %cst_82 = arith.constant dense<0.000000e+00> : vector<2x128xf32>
    %165 = tpu.matmul %162, %164, %cst_82 {dimension_numbers = #tpu.dot_dimension_numbers<[1], [0], [0], [1], [0, 0, 1, 1], [], []>} : vector<2x256xf32>, vector<256x128xf32>, vector<2x128xf32> -> vector<2x128xf32>
    %166 = arith.addf %160, %165 : vector<2x128xf32>
    %167 = vector.extract_strided_slice %9 {offsets = [0, 26, 0], sizes = [2, 1, 256], strides = [1, 1, 1]} : vector<2x32x256xf32> to vector<2x1x256xf32>
    %168 = vector.shape_cast %167 : vector<2x1x256xf32> to vector<2x256xf32>
    %c26 = arith.constant 26 : index
    %c0_83 = arith.constant 0 : index
    %c0_84 = arith.constant 0 : index
    %169 = vector.load %arg5[%c26, %c0_83, %c0_84] : memref<32x256x128xf32, #tpu.memory_space<vmem>>, vector<1x256x128xf32>
    %170 = vector.shape_cast %169 : vector<1x256x128xf32> to vector<256x128xf32>
    %cst_85 = arith.constant dense<0.000000e+00> : vector<2x128xf32>
    %171 = tpu.matmul %168, %170, %cst_85 {dimension_numbers = #tpu.dot_dimension_numbers<[1], [0], [0], [1], [0, 0, 1, 1], [], []>} : vector<2x256xf32>, vector<256x128xf32>, vector<2x128xf32> -> vector<2x128xf32>
    %172 = arith.addf %166, %171 : vector<2x128xf32>
    %173 = vector.extract_strided_slice %9 {offsets = [0, 27, 0], sizes = [2, 1, 256], strides = [1, 1, 1]} : vector<2x32x256xf32> to vector<2x1x256xf32>
    %174 = vector.shape_cast %173 : vector<2x1x256xf32> to vector<2x256xf32>
    %c27 = arith.constant 27 : index
    %c0_86 = arith.constant 0 : index
    %c0_87 = arith.constant 0 : index
    %175 = vector.load %arg5[%c27, %c0_86, %c0_87] : memref<32x256x128xf32, #tpu.memory_space<vmem>>, vector<1x256x128xf32>
    %176 = vector.shape_cast %175 : vector<1x256x128xf32> to vector<256x128xf32>
    %cst_88 = arith.constant dense<0.000000e+00> : vector<2x128xf32>
    %177 = tpu.matmul %174, %176, %cst_88 {dimension_numbers = #tpu.dot_dimension_numbers<[1], [0], [0], [1], [0, 0, 1, 1], [], []>} : vector<2x256xf32>, vector<256x128xf32>, vector<2x128xf32> -> vector<2x128xf32>
    %178 = arith.addf %172, %177 : vector<2x128xf32>
    %179 = vector.extract_strided_slice %9 {offsets = [0, 28, 0], sizes = [2, 1, 256], strides = [1, 1, 1]} : vector<2x32x256xf32> to vector<2x1x256xf32>
    %180 = vector.shape_cast %179 : vector<2x1x256xf32> to vector<2x256xf32>
    %c28 = arith.constant 28 : index
    %c0_89 = arith.constant 0 : index
    %c0_90 = arith.constant 0 : index
    %181 = vector.load %arg5[%c28, %c0_89, %c0_90] : memref<32x256x128xf32, #tpu.memory_space<vmem>>, vector<1x256x128xf32>
    %182 = vector.shape_cast %181 : vector<1x256x128xf32> to vector<256x128xf32>
    %cst_91 = arith.constant dense<0.000000e+00> : vector<2x128xf32>
    %183 = tpu.matmul %180, %182, %cst_91 {dimension_numbers = #tpu.dot_dimension_numbers<[1], [0], [0], [1], [0, 0, 1, 1], [], []>} : vector<2x256xf32>, vector<256x128xf32>, vector<2x128xf32> -> vector<2x128xf32>
    %184 = arith.addf %178, %183 : vector<2x128xf32>
    %185 = vector.extract_strided_slice %9 {offsets = [0, 29, 0], sizes = [2, 1, 256], strides = [1, 1, 1]} : vector<2x32x256xf32> to vector<2x1x256xf32>
    %186 = vector.shape_cast %185 : vector<2x1x256xf32> to vector<2x256xf32>
    %c29 = arith.constant 29 : index
    %c0_92 = arith.constant 0 : index
    %c0_93 = arith.constant 0 : index
    %187 = vector.load %arg5[%c29, %c0_92, %c0_93] : memref<32x256x128xf32, #tpu.memory_space<vmem>>, vector<1x256x128xf32>
    %188 = vector.shape_cast %187 : vector<1x256x128xf32> to vector<256x128xf32>
    %cst_94 = arith.constant dense<0.000000e+00> : vector<2x128xf32>
    %189 = tpu.matmul %186, %188, %cst_94 {dimension_numbers = #tpu.dot_dimension_numbers<[1], [0], [0], [1], [0, 0, 1, 1], [], []>} : vector<2x256xf32>, vector<256x128xf32>, vector<2x128xf32> -> vector<2x128xf32>
    %190 = arith.addf %184, %189 : vector<2x128xf32>
    %191 = vector.extract_strided_slice %9 {offsets = [0, 30, 0], sizes = [2, 1, 256], strides = [1, 1, 1]} : vector<2x32x256xf32> to vector<2x1x256xf32>
    %192 = vector.shape_cast %191 : vector<2x1x256xf32> to vector<2x256xf32>
    %c30 = arith.constant 30 : index
    %c0_95 = arith.constant 0 : index
    %c0_96 = arith.constant 0 : index
    %193 = vector.load %arg5[%c30, %c0_95, %c0_96] : memref<32x256x128xf32, #tpu.memory_space<vmem>>, vector<1x256x128xf32>
    %194 = vector.shape_cast %193 : vector<1x256x128xf32> to vector<256x128xf32>
    %cst_97 = arith.constant dense<0.000000e+00> : vector<2x128xf32>
    %195 = tpu.matmul %192, %194, %cst_97 {dimension_numbers = #tpu.dot_dimension_numbers<[1], [0], [0], [1], [0, 0, 1, 1], [], []>} : vector<2x256xf32>, vector<256x128xf32>, vector<2x128xf32> -> vector<2x128xf32>
    %196 = arith.addf %190, %195 : vector<2x128xf32>
    %197 = vector.extract_strided_slice %9 {offsets = [0, 31, 0], sizes = [2, 1, 256], strides = [1, 1, 1]} : vector<2x32x256xf32> to vector<2x1x256xf32>
    %198 = vector.shape_cast %197 : vector<2x1x256xf32> to vector<2x256xf32>
    %c31 = arith.constant 31 : index
    %c0_98 = arith.constant 0 : index
    %c0_99 = arith.constant 0 : index
    %199 = vector.load %arg5[%c31, %c0_98, %c0_99] : memref<32x256x128xf32, #tpu.memory_space<vmem>>, vector<1x256x128xf32>
    %200 = vector.shape_cast %199 : vector<1x256x128xf32> to vector<256x128xf32>
    %cst_100 = arith.constant dense<0.000000e+00> : vector<2x128xf32>
    %201 = tpu.matmul %198, %200, %cst_100 {dimension_numbers = #tpu.dot_dimension_numbers<[1], [0], [0], [1], [0, 0, 1, 1], [], []>} : vector<2x256xf32>, vector<256x128xf32>, vector<2x128xf32> -> vector<2x128xf32>
    %202 = arith.addf %196, %201 : vector<2x128xf32>
    %c0_101 = arith.constant 0 : index
    %c0_102 = arith.constant 0 : index
    %203 = vector.load %arg10[%c0_101, %c0_102] : memref<2x128xf32, #tpu.memory_space<vmem>>, vector<2x128xf32>
    %204 = arith.addf %203, %202 : vector<2x128xf32>
    %c0_103 = arith.constant 0 : index
    %c0_104 = arith.constant 0 : index
    %205 = vector.load %arg10[%c0_103, %c0_104] : memref<2x128xf32, #tpu.memory_space<vmem>>, vector<2x128xf32>
    tpu.vector_store %arg10[%c0_103, %c0_104], %204 {strides = array<i32>} : memref<2x128xf32, #tpu.memory_space<vmem>>, vector<2x128xf32>,
    %c1_i32 = arith.constant 1 : i32
    %206 = arith.cmpi eq, %arg1, %c1_i32 : i32
    %207 = arith.extui %206 : i1 to i32
    %c0_i32_105 = arith.constant 0 : i32
    %208 = arith.cmpi ne, %207, %c0_i32_105 : i32
    scf.if %208 {
      %c0_106 = arith.constant 0 : index
      %c0_107 = arith.constant 0 : index
      %209 = vector.load %arg10[%c0_106, %c0_107] : memref<2x128xf32, #tpu.memory_space<vmem>>, vector<2x128xf32>
      %c0_108 = arith.constant 0 : index
      %c0_109 = arith.constant 0 : index
      %210 = vector.load %arg6[%c0_108, %c0_109] : memref<1x128xf32, #tpu.memory_space<vmem>>, vector<1x128xf32>
      %211 = vector.broadcast %210 : vector<1x128xf32> to vector<2x128xf32>
      %212 = arith.addf %209, %211 : vector<2x128xf32>
      %cst_110 = arith.constant 0.000000e+00 : f32
      %213 = vector.broadcast %cst_110 : f32 to vector<2x128xf32>
      %214 = arith.maximumf %212, %213 : vector<2x128xf32>
      %c0_111 = arith.constant 0 : index
      %c0_112 = arith.constant 0 : index
      %215 = vector.load %arg7[%c0_111, %c0_112] : memref<2x128xf32, #tpu.memory_space<vmem>>, vector<2x128xf32>
      tpu.vector_store %arg7[%c0_111, %c0_112], %214 {strides = array<i32>} : memref<2x128xf32, #tpu.memory_space<vmem>>, vector<2x128xf32>,
    } else {
    }
    return
  }
  func.func @transform_0(%arg0: i32, %arg1: i32) -> (i32, i32, i32) {
    %c0_i32 = arith.constant 0 : i32
    %c0_i32_0 = arith.constant 0 : i32
    %c0_i32_1 = arith.constant 0 : i32
    %c0_i32_2 = arith.constant 0 : i32
    return %c0_i32, %c0_i32_0, %c0_i32_1 : i32, i32, i32
  }
  func.func @transform_1(%arg0: i32, %arg1: i32) -> (i32, i32, i32) {
    %c0_i32 = arith.constant 0 : i32
    %c0_i32_0 = arith.constant 0 : i32
    %c0_i32_1 = arith.constant 0 : i32
    %c0_i32_2 = arith.constant 0 : i32
    return %c0_i32, %c0_i32_0, %c0_i32_1 : i32, i32, i32
  }
  func.func @transform_2(%arg0: i32, %arg1: i32) -> (i32, i32, i32) {
    %c0_i32 = arith.constant 0 : i32
    %c0_i32_0 = arith.constant 0 : i32
    %c0_i32_1 = arith.constant 0 : i32
    %c0_i32_2 = arith.constant 0 : i32
    return %c0_i32, %c0_i32_0, %c0_i32_1 : i32, i32, i32
  }
  func.func @transform_3(%arg0: i32, %arg1: i32) -> (i32, i32, i32) {
    %c0_i32 = arith.constant 0 : i32
    %c0_i32_0 = arith.constant 0 : i32
    return %arg1, %c0_i32, %arg0 : i32, i32, i32
  }
  func.func @transform_4(%arg0: i32, %arg1: i32) -> (i32, i32) {
    %c0_i32 = arith.constant 0 : i32
    %c0_i32_0 = arith.constant 0 : i32
    return %c0_i32, %arg0 : i32, i32
  }
  func.func @transform_5(%arg0: i32, %arg1: i32) -> (i32, i32) {
    %c0_i32 = arith.constant 0 : i32
    %c0_i32_0 = arith.constant 0 : i32
    return %c0_i32, %arg0 : i32, i32
  }
  func.func @transform_6(%arg0: i32, %arg1: i32) -> (i32, i32, i32) {
    %c0_i32 = arith.constant 0 : i32
    %c0_i32_0 = arith.constant 0 : i32
    %c0_i32_1 = arith.constant 0 : i32
    return %c0_i32, %arg0, %c0_i32_0 : i32, i32, i32
  }
}

</mosaic_0001>

<llo_original>
// kernel: tpu_custom_call.1
$region0: #{tpu_custom_call.1}
  #allocation0 [shape = 'u32[]', space=smem, size = 0x4, offset = 0x4, fixed_abs, tag = 'smem constant byte address 0x4 - core index']
  #allocation1 [shape = 'u32[144,128]{1,0:T(1,128)}', space=vmem, size = 0x12000, scoped, tag = 'internal scratch']
  #allocation2 [shape = 'f32[2,64,256]{2,1,0:T(8,128)}', space=vmem, size = 0x20000, scoped, tag = 'scratch operand']
  #allocation3 [shape = 'f32[2,128]{1,0:T(2,128)}', space=vmem, size = 0x400, scoped, tag = 'scratch operand']
  #allocation16 [shape = 's32[]', space=sflag, size = 0x4, offset = 0, fixed_abs, tag = 'sflag constant byte address 0x0 - dummy sync flag']
  %s0 = inlined_call_operand.hbm [shape: f32[2,64,256], index: 0, kind: input, shape index: {}]
  %s1 = inlined_call_operand.hbm [shape: f32[2,64,256], index: 1, kind: input, shape index: {}]
  %s2 = inlined_call_operand.hbm [shape: f32[2,64,256], index: 2, kind: input, shape index: {}]
  %s3 = inlined_call_operand.hbm [shape: f32[64,256,256], index: 3, kind: input, shape index: {}]
  %s4 = inlined_call_operand.hbm [shape: f32[1,256], index: 4, kind: input, shape index: {}]
  %s5 = inlined_call_operand.hbm [shape: f32[2,256], index: 5, kind: output, shape index: {0}]
  %s6 = inlined_call_operand.hbm [shape: f32[2,64,256], index: 6, kind: output, shape index: {1}]
  %7 = xla_tuple %s5, %s6
  %s8 = sld [smem:[#allocation0]]
  $region89: #{tpu_custom_call.1} parent=0
    _
  %s10 = ssub.s32 1, %s8
  %s11 = scalar_select 0, %s10, %s8
  $region1: #{tpu_custom_call.1} parent=0
    #allocation4 [shape = 'u8[131072]{0}', space=vmem, size = 0x20000, scoped, tag = 'input window, operand 0, single buffered']
    #allocation5 [shape = 's32[2]{0}', space=sflag, size = 0x8, scoped, tag = 'scoped memory for tpu_custom_call.1']
    #allocation6 [shape = 's32[2]{0}', space=sflag, size = 0x8, scoped, tag = 'scoped memory for tpu_custom_call.1']
    #allocation7 [shape = 'u8[131072]{0}', space=vmem, size = 0x20000, scoped, tag = 'input window, operand 1, single buffered']
    #allocation8 [shape = 's32[1]{0}', space=sflag, size = 0x4, scoped, tag = 'scoped memory for tpu_custom_call.1']
    #allocation9 [shape = 'u8[131072]{0}', space=vmem, size = 0x20000, scoped, tag = 'input window, operand 2, single buffered']
    #allocation10 [shape = 'u8[8388608]{0}', space=vmem, size = 0x800000, scoped, tag = 'input window, operand 3']
    #allocation11 [shape = 's32[2]{0}', space=sflag, size = 0x8, scoped, tag = 'scoped memory for tpu_custom_call.1']
    #allocation12 [shape = 'u8[1024]{0}', space=vmem, size = 0x400, scoped, tag = 'input window, operand 4']
    #allocation13 [shape = 'u8[2048]{0}', space=vmem, size = 0x800, scoped, tag = 'output window, operand 0']
    #allocation14 [shape = 'u8[131072]{0}', space=vmem, size = 0x20000, scoped, tag = 'output window, operand 1']
    #allocation15 [shape = 's32[2]{0}', space=sflag, size = 0x8, scoped, tag = 'scoped memory for tpu_custom_call.1']
    %12 = vsyncpa [#allocation5], 0
    %13 = vsyncpa [#allocation8], 0
    %14 = vsyncpa [#allocation11], 0
    %s15 = scalar_lea.sflag [#allocation11], 1
    %16 = vsyncpa %s15, 0
    %17 = vsyncpa [#allocation6], 0
    %s18 = scalar_lea.sflag [#allocation6], 1
    %19 = vsyncpa %s18, 0
    %20 = vsyncpa [#allocation15], 0
    %s21 = scalar_lea.sflag [#allocation15], 1
    %22 = vsyncpa %s21, 0
    loop: start=0, step=1, limit=6
    $region2: #{tpu_custom_call.1} parent=1 // loop_pre_header
      _
    $region3: #{tpu_custom_call.1} parent=1 // loop_header
      %s24 = sphi 0, %s28
      %p25 = scmp.ge.s32.totalorder %s24, 6
      %s31 = sphi 0, %s43
      %s32 = sphi 0, %s39
      %s33 = sphi 0, %s31
      %s34 = sphi 0, %s32
      %s35 = sphi 0, %s33
      %s36 = sphi 0, %s34
      %s44 = sphi 0, %s44
      %s46 = sphi 0, %s44
      %s47 = sphi 0, %s46
      %s61 = sphi 0, %s47
      %s65 = sphi 0, %s65
      %s67 = sphi 0, %s65
      %s68 = sphi 0, %s67
      %s82 = sphi 0, %s68
      %s86 = sphi 0, %s86
      %s88 = sphi 0, %s86
      %s89 = sphi 0, %s88
      %s103 = sphi 0, %s89
      %s111 = sphi 0, %s113
      %s114 = sphi 0, %s111
      %s115 = sphi 0, %s114
      %s131 = sphi 0, %s115
      %s137 = sphi 0, %s139
      %s140 = sphi 0, %s137
      %s141 = sphi 0, %s140
      %s157 = sphi 0, %s141
      %s163 = sphi 0, %s165
      %s166 = sphi 0, %s163
      %s167 = sphi 0, %s166
      %s183 = sphi 0, %s167
      %s189 = sphi 0, %s191
      %s192 = sphi 0, %s189
      %s193 = sphi 0, %s192
      %s209 = sphi 0, %s193
    $region4: #{tpu_custom_call.1} parent=1 // loop_header_branch
      %27 = sbr.rel (%p25) target = $region8
    $region5: #{tpu_custom_call.1} parent=1 // loop_body
      %s29 = ssub.s32 %s24, 1
      %s30 = ssub.s32 %s24, 2
      %s37 = sadd.s32 1, %s32
      %p38 = scmp.ge.s32.totalorder %s37, 2
      %s39 = scalar_select %p38, 0, %s37
      %s40 = sadd.s32 1, %s31
      %s41 = scalar_select %p38, %s40, %s31
      %p42 = scmp.ge.s32.totalorder %s41, 2
      %s43 = scalar_select %p42, 0, %s41
      %s45 = sadd.s32 %s44, 1
      %p48 = scmp.eq.s32.totalorder %s24, 3
      %p49 = scmp.ne.s32.totalorder %s44, %s46
      %p50 = scmp.eq.s32.totalorder %s24, 0
      %p51 = por %p49, %p50
      %p52 = scmp.ne.s32.totalorder %s44, %s46
      %p53 = scmp.eq.s32.totalorder %s29, 3
      %p54 = por %p52, %p53
      %p55 = scmp.ne.s32.totalorder %s46, %s47
      %p56 = scmp.eq.s32.totalorder %s29, 0
      %p57 = por %p55, %p56
      %p58 = scmp.ne.s32.totalorder %s46, %s47
      %p59 = scmp.eq.s32.totalorder %s30, 3
      %p60 = por %p58, %p59
      %p62 = scmp.ne.s32.totalorder %s47, %s61
      %p63 = scmp.eq.s32.totalorder %s30, 0
      %p64 = por %p62, %p63
      %s66 = sadd.s32 %s65, 1
      %p69 = scmp.eq.s32.totalorder %s24, 3
      %p70 = scmp.ne.s32.totalorder %s65, %s67
      %p71 = scmp.eq.s32.totalorder %s24, 0
      %p72 = por %p70, %p71
      %p73 = scmp.ne.s32.totalorder %s65, %s67
      %p74 = scmp.eq.s32.totalorder %s29, 3
      %p75 = por %p73, %p74
      %p76 = scmp.ne.s32.totalorder %s67, %s68
      %p77 = scmp.eq.s32.totalorder %s29, 0
      %p78 = por %p76, %p77
      %p79 = scmp.ne.s32.totalorder %s67, %s68
      %p80 = scmp.eq.s32.totalorder %s30, 3
      %p81 = por %p79, %p80
      %p83 = scmp.ne.s32.totalorder %s68, %s82
      %p84 = scmp.eq.s32.totalorder %s30, 0
      %p85 = por %p83, %p84
      %s87 = sadd.s32 %s86, 1
      %p90 = scmp.eq.s32.totalorder %s24, 3
      %p91 = scmp.ne.s32.totalorder %s86, %s88
      %p92 = scmp.eq.s32.totalorder %s24, 0
      %p93 = por %p91, %p92
      %p94 = scmp.ne.s32.totalorder %s86, %s88
      %p95 = scmp.eq.s32.totalorder %s29, 3
      %p96 = por %p94, %p95
      %p97 = scmp.ne.s32.totalorder %s88, %s89
      %p98 = scmp.eq.s32.totalorder %s29, 0
      %p99 = por %p97, %p98
      %p100 = scmp.ne.s32.totalorder %s88, %s89
      %p101 = scmp.eq.s32.totalorder %s30, 3
      %p102 = por %p100, %p101
      %p104 = scmp.ne.s32.totalorder %s89, %s103
      %p105 = scmp.eq.s32.totalorder %s30, 0
      %p106 = por %p104, %p105
      %s107 = ssub.s32 %s32, %s39
      %s108 = ssub.s32 %s31, %s43
      %s109 = sor.u32 %s107, %s108
      %p110 = scmp.eq.s32.totalorder %s109, 0
      %s112 = sadd.s32 %s111, 1
      %s113 = scalar_select %p110, %s111, %s112
      %p116 = pneg %p110
      %p117 = scmp.eq.s32.totalorder %s24, 3
      %p118 = por %p116, %p117
      %p119 = scmp.ne.s32.totalorder %s111, %s114
      %p120 = scmp.eq.s32.totalorder %s24, 0
      %p121 = por %p119, %p120
      %p122 = scmp.ne.s32.totalorder %s111, %s114
      %p123 = scmp.eq.s32.totalorder %s29, 3
      %p124 = por %p122, %p123
      %p125 = scmp.ne.s32.totalorder %s114, %s115
      %p126 = scmp.eq.s32.totalorder %s29, 0
      %p127 = por %p125, %p126
      %p128 = scmp.ne.s32.totalorder %s114, %s115
      %p129 = scmp.eq.s32.totalorder %s30, 3
      %p130 = por %p128, %p129
      %p132 = scmp.ne.s32.totalorder %s115, %s131
      %p133 = scmp.eq.s32.totalorder %s30, 0
      %p134 = por %p132, %p133
      %s135 = ssub.s32 %s31, %s43
      %p136 = scmp.eq.s32.totalorder %s135, 0
      %s138 = sadd.s32 %s137, 1
      %s139 = scalar_select %p136, %s137, %s138
      %p142 = pneg %p136
      %p143 = scmp.eq.s32.totalorder %s24, 3
      %p144 = por %p142, %p143
      %p145 = scmp.ne.s32.totalorder %s137, %s140
      %p146 = scmp.eq.s32.totalorder %s24, 0
      %p147 = por %p145, %p146
      %p148 = scmp.ne.s32.totalorder %s137, %s140
      %p149 = scmp.eq.s32.totalorder %s29, 3
      %p150 = por %p148, %p149
      %p151 = scmp.ne.s32.totalorder %s140, %s141
      %p152 = scmp.eq.s32.totalorder %s29, 0
      %p153 = por %p151, %p152
      %p154 = scmp.ne.s32.totalorder %s140, %s141
      %p155 = scmp.eq.s32.totalorder %s30, 3
      %p156 = por %p154, %p155
      %p158 = scmp.ne.s32.totalorder %s141, %s157
      %p159 = scmp.eq.s32.totalorder %s30, 0
      %p160 = por %p158, %p159
      %s161 = ssub.s32 %s31, %s43
      %p162 = scmp.eq.s32.totalorder %s161, 0
      %s164 = sadd.s32 %s163, 1
      %s165 = scalar_select %p162, %s163, %s164
      %p168 = pneg %p162
      %p169 = scmp.eq.s32.totalorder %s24, 3
      %p170 = por %p168, %p169
      %p171 = scmp.ne.s32.totalorder %s163, %s166
      %p172 = scmp.eq.s32.totalorder %s24, 0
      %p173 = por %p171, %p172
      %p174 = scmp.ne.s32.totalorder %s163, %s166
      %p175 = scmp.eq.s32.totalorder %s29, 3
      %p176 = por %p174, %p175
      %p177 = scmp.ne.s32.totalorder %s166, %s167
      %p178 = scmp.eq.s32.totalorder %s29, 0
      %p179 = por %p177, %p178
      %p180 = scmp.ne.s32.totalorder %s166, %s167
      %p181 = scmp.eq.s32.totalorder %s30, 3
      %p182 = por %p180, %p181
      %p184 = scmp.ne.s32.totalorder %s167, %s183
      %p185 = scmp.eq.s32.totalorder %s30, 0
      %p186 = por %p184, %p185
      %s187 = ssub.s32 %s31, %s43
      %p188 = scmp.eq.s32.totalorder %s187, 0
      %s190 = sadd.s32 %s189, 1
      %s191 = scalar_select %p188, %s189, %s190
      %p194 = pneg %p188
      %p195 = scmp.eq.s32.totalorder %s24, 3
      %p196 = por %p194, %p195
      %p197 = scmp.ne.s32.totalorder %s189, %s192
      %p198 = scmp.eq.s32.totalorder %s24, 0
      %p199 = por %p197, %p198
      %p200 = scmp.ne.s32.totalorder %s189, %s192
      %p201 = scmp.eq.s32.totalorder %s29, 3
      %p202 = por %p200, %p201
      %p203 = scmp.ne.s32.totalorder %s192, %s193
      %p204 = scmp.eq.s32.totalorder %s29, 0
      %p205 = por %p203, %p204
      %p206 = scmp.ne.s32.totalorder %s192, %s193
      %p207 = scmp.eq.s32.totalorder %s30, 3
      %p208 = por %p206, %p207
      %p210 = scmp.ne.s32.totalorder %s193, %s209
      %p211 = scmp.eq.s32.totalorder %s30, 0
      %p212 = por %p210, %p211
      %p213 = scmp.le.s32.totalorder 1, %s24
      %p214 = scmp.lt.s32.totalorder %s24, 5
      %p215 = pnand %p213, %p214
      %p216 = pneg %p215
      // Predicated region
      $region9: #{tpu_custom_call.1} parent=5 // pred_check
        _
      $region10: #{tpu_custom_call.1} parent=5 // pred_check_branch
        %218 = sbr.rel (%p215) target = $region12
      $region11: #{tpu_custom_call.1} parent=5 // pred_region
        %s219 = ssub.s32 %s24, 1
        // Predicated region
        $region13: #{tpu_custom_call.1} parent=11 // pred_check
          %p220 = pneg %p57
        $region14: #{tpu_custom_call.1} parent=11 // pred_check_branch
          %222 = sbr.rel (%p220) target = $region16
        $region15: #{tpu_custom_call.1} parent=11 // pred_region
          %s224 = ssub.s32 4096, 4096
          %225 = vsyncadd [#allocation5], %s224
          %s226 = sshll.u32 [#allocation4], 4
          %s227 = int_to_ptr.vmem [resolvable:$true] %s226
          %232 = dma.hbm_to_vmem [thread:$0]  %s0, 4096, %s227, [#allocation5], 256, 256, 16
        $region16: #{tpu_custom_call.1} parent=11 // pred_fallthru
          _
        // Predicated region
        $region17: #{tpu_custom_call.1} parent=11 // pred_check
          %p233 = pneg %p78
        $region18: #{tpu_custom_call.1} parent=11 // pred_check_branch
          %235 = sbr.rel (%p233) target = $region20
        $region19: #{tpu_custom_call.1} parent=11 // pred_region
          %s237 = ssub.s32 4096, 4096
          %238 = vsyncadd [#allocation8], %s237
          %s239 = sshll.u32 [#allocation7], 4
          %s240 = int_to_ptr.vmem [resolvable:$true] %s239
          %245 = dma.hbm_to_vmem [thread:$0]  %s1, 4096, %s240, [#allocation8], 256, 256, 16
        $region20: #{tpu_custom_call.1} parent=11 // pred_fallthru
          _
        // Predicated region
        $region21: #{tpu_custom_call.1} parent=11 // pred_check
          %p246 = pneg %p99
        $region22: #{tpu_custom_call.1} parent=11 // pred_check_branch
          %248 = sbr.rel (%p246) target = $region24
        $region23: #{tpu_custom_call.1} parent=11 // pred_region
          %s250 = ssub.s32 4096, 4096
          %251 = vsyncadd [#allocation8], %s250
          %s252 = sshll.u32 [#allocation9], 4
          %s253 = int_to_ptr.vmem [resolvable:$true] %s252
          %258 = dma.hbm_to_vmem [thread:$0]  %s2, 4096, %s253, [#allocation8], 256, 256, 16
        $region24: #{tpu_custom_call.1} parent=11 // pred_fallthru
          _
      $region12: #{tpu_custom_call.1} parent=5 // pred_fallthru
        _
      %p259 = scmp.lt.s32.totalorder %s24, 4
      // Predicated region
      $region25: #{tpu_custom_call.1} parent=5 // pred_check
        %p260 = pneg %p259
      $region26: #{tpu_custom_call.1} parent=5 // pred_check_branch
        %262 = sbr.rel (%p260) target = $region28
      $region27: #{tpu_custom_call.1} parent=5 // pred_region
        // Predicated region
        $region29: #{tpu_custom_call.1} parent=27 // pred_check
          %p263 = pneg %p121
        $region30: #{tpu_custom_call.1} parent=27 // pred_check_branch
          %265 = sbr.rel (%p263) target = $region32
        $region31: #{tpu_custom_call.1} parent=27 // pred_region
          %s266 = sand.u32 %s24, 1
          %s267 = scalar_lea.sflag [#allocation11], %s266
          %s268 = sand.u32 %s111, 1
          %s269 = smul.addr %s268, 8192
          %s270 = scalar_lea.vmem [#allocation10], %s269
          %s271 = smul.u32 32, %s32
          %s273 = ssub.s32 131072, 131072
          %274 = vsyncadd %s267, %s273
          %s275 = smul.addr %s271, 64
          %s276 = sadd.s32 %s31, %s275
          %s277 = smul.addr %s276, 128
          %s278 = scalar_lea.hbm %s3, %s277
          %s279 = sshll.u32 %s270, 4
          %s280 = int_to_ptr.vmem [resolvable:$true] %s279
          %285 = dma.hbm_to_vmem [thread:$0]  %s278, 131072, %s280, %s267, 256, 128, 8
        $region32: #{tpu_custom_call.1} parent=27 // pred_fallthru
          _
        // Predicated region
        $region33: #{tpu_custom_call.1} parent=27 // pred_check
          %p286 = pneg %p147
        $region34: #{tpu_custom_call.1} parent=27 // pred_check_branch
          %288 = sbr.rel (%p286) target = $region36
        $region35: #{tpu_custom_call.1} parent=27 // pred_region
          %s289 = sand.u32 %s24, 1
          %s290 = scalar_lea.sflag [#allocation11], %s289
          %s291 = sand.u32 %s137, 1
          %s292 = scalar_lea.vmem [#allocation12], %s291
          %s294 = ssub.s32 16, 16
          %295 = vsyncadd %s290, %s294
          %s296 = smul.addr %s31, 16
          %s297 = scalar_lea.hbm %s4, %s296
          %s299 = sshll.u32 %s292, 4
          %s300 = int_to_ptr.vmem [resolvable:$true] %s299
          %302 = dma.hbm_to_vmem [thread:$0]  %s297, 16, %s300, %s290
        $region36: #{tpu_custom_call.1} parent=27 // pred_fallthru
          _
      $region28: #{tpu_custom_call.1} parent=5 // pred_fallthru
        _
      %p303 = scmp.le.s32.totalorder 1, %s24
      %p304 = scmp.lt.s32.totalorder %s24, 5
      %p305 = pnand %p303, %p304
      %p306 = pneg %p305
      // Predicated region
      $region37: #{tpu_custom_call.1} parent=5 // pred_check
        _
      $region38: #{tpu_custom_call.1} parent=5 // pred_check_branch
        %308 = sbr.rel (%p305) target = $region40
      $region39: #{tpu_custom_call.1} parent=5 // pred_region
        %s309 = ssub.s32 %s24, 1
        // Predicated region
        $region41: #{tpu_custom_call.1} parent=39 // pred_check
          %p310 = pneg %p57
        $region42: #{tpu_custom_call.1} parent=39 // pred_check_branch
          %312 = sbr.rel (%p310) target = $region44
        $region43: #{tpu_custom_call.1} parent=39 // pred_region
          %313 = dma.done [#allocation5], 4096
        $region44: #{tpu_custom_call.1} parent=39 // pred_fallthru
          _
        // Predicated region
        $region45: #{tpu_custom_call.1} parent=39 // pred_check
          %p314 = pneg %p78
        $region46: #{tpu_custom_call.1} parent=39 // pred_check_branch
          %316 = sbr.rel (%p314) target = $region48
        $region47: #{tpu_custom_call.1} parent=39 // pred_region
          %317 = dma.done [#allocation8], 4096
        $region48: #{tpu_custom_call.1} parent=39 // pred_fallthru
          _
        // Predicated region
        $region49: #{tpu_custom_call.1} parent=39 // pred_check
          %p318 = pneg %p99
        $region50: #{tpu_custom_call.1} parent=39 // pred_check_branch
          %320 = sbr.rel (%p318) target = $region52
        $region51: #{tpu_custom_call.1} parent=39 // pred_region
          %321 = dma.done [#allocation8], 4096
        $region52: #{tpu_custom_call.1} parent=39 // pred_fallthru
          _
        %s322 = sand.u32 %s29, 1
        %s323 = scalar_lea.sflag [#allocation11], %s322
        %s324 = sand.u32 %s114, 1
        %s325 = smul.addr %s324, 8192
        %s326 = scalar_lea.vmem [#allocation10], %s325
        // Predicated region
        $region53: #{tpu_custom_call.1} parent=39 // pred_check
          %p327 = pneg %p127
        $region54: #{tpu_custom_call.1} parent=39 // pred_check_branch
          %329 = sbr.rel (%p327) target = $region56
        $region55: #{tpu_custom_call.1} parent=39 // pred_region
          %330 = dma.done %s323, 131072
        $region56: #{tpu_custom_call.1} parent=39 // pred_fallthru
          _
        %s331 = sand.u32 %s29, 1
        %s332 = scalar_lea.sflag [#allocation11], %s331
        %s333 = sand.u32 %s140, 1
        %s334 = scalar_lea.vmem [#allocation12], %s333
        // Predicated region
        $region57: #{tpu_custom_call.1} parent=39 // pred_check
          %p335 = pneg %p153
        $region58: #{tpu_custom_call.1} parent=39 // pred_check_branch
          %337 = sbr.rel (%p335) target = $region60
        $region59: #{tpu_custom_call.1} parent=39 // pred_region
          %338 = dma.done %s332, 16
        $region60: #{tpu_custom_call.1} parent=39 // pred_fallthru
          _
        %p339 = pneg %p57
        %p340 = pneg %p54
        %p341 = pneg %p78
        %p342 = pneg %p75
        %p343 = pneg %p99
        %p344 = pneg %p96
        %s345 = sand.u32 %s29, 1
        %s346 = scalar_lea.sflag [#allocation11], %s345
        %s347 = sand.u32 %s114, 1
        %s348 = smul.addr %s347, 8192
        %s349 = scalar_lea.vmem [#allocation10], %s348
        %p350 = pneg %p127
        %p351 = pneg %p124
        %s352 = sand.u32 %s29, 1
        %s353 = scalar_lea.sflag [#allocation11], %s352
        %s354 = sand.u32 %s140, 1
        %s355 = scalar_lea.vmem [#allocation12], %s354
        %p356 = pneg %p153
        %p357 = pneg %p150
        %p358 = pneg %p179
        %p359 = pneg %p176
        %s360 = sand.u32 %s166, 1
        %s361 = scalar_lea.sflag [#allocation6], %s360
        %s362 = sand.u32 %s166, 1
        %s363 = smul.addr %s362, 2
        %s364 = scalar_lea.vmem [#allocation13], %s363
        %p365 = pneg %p205
        %p366 = pneg %p202
        %s367 = sand.u32 %s192, 1
        %s368 = scalar_lea.sflag [#allocation15], %s367
        %s369 = sand.u32 %s192, 1
        %s370 = smul.addr %s369, 128
        %s371 = scalar_lea.vmem [#allocation14], %s370
        %s372 = smul.u32 32, %s34
        %s373 = smul.u32 4, %s33
        %p374 = scmp.eq.s32.totalorder %s34, 0
        // Predicated region
        $region61: #{tpu_custom_call.1} parent=39 // pred_check
          %p375 = pneg %p374
        $region62: #{tpu_custom_call.1} parent=39 // pred_check_branch
          %377 = sbr.rel (%p375) target = $region64
        $region63: #{tpu_custom_call.1} parent=39 // pred_region
          %v378 = vld [vmem:[#allocation4] sm:$0xff]
          %v379 = vld [vmem:[#allocation4 + $0x8] sm:$0xff]
          %v380 = vld [vmem:[#allocation4 + $0x10] sm:$0xff]
          %v381 = vld [vmem:[#allocation4 + $0x18] sm:$0xff]
          %v382 = vld [vmem:[#allocation4 + $0x20] sm:$0xff]
          %v383 = vld [vmem:[#allocation4 + $0x28] sm:$0xff]
          %v384 = vld [vmem:[#allocation4 + $0x30] sm:$0xff]
          %v385 = vld [vmem:[#allocation4 + $0x38] sm:$0xff]
          %v386 = vld [vmem:[#allocation4 + $0x40] sm:$0xff]
          %v387 = vld [vmem:[#allocation4 + $0x48] sm:$0xff]
          %v388 = vld [vmem:[#allocation4 + $0x50] sm:$0xff]
          %v389 = vld [vmem:[#allocation4 + $0x58] sm:$0xff]
          %v390 = vld [vmem:[#allocation4 + $0x60] sm:$0xff]
          %v391 = vld [vmem:[#allocation4 + $0x68] sm:$0xff]
          %v392 = vld [vmem:[#allocation4 + $0x70] sm:$0xff]
          %v393 = vld [vmem:[#allocation4 + $0x78] sm:$0xff]
          %v394 = vld [vmem:[#allocation4 + $0x80] sm:$0xff]
          %v395 = vld [vmem:[#allocation4 + $0x88] sm:$0xff]
          %v396 = vld [vmem:[#allocation4 + $0x90] sm:$0xff]
          %v397 = vld [vmem:[#allocation4 + $0x98] sm:$0xff]
          %v398 = vld [vmem:[#allocation4 + $0xa0] sm:$0xff]
          %v399 = vld [vmem:[#allocation4 + $0xa8] sm:$0xff]
          %v400 = vld [vmem:[#allocation4 + $0xb0] sm:$0xff]
          %v401 = vld [vmem:[#allocation4 + $0xb8] sm:$0xff]
          %v402 = vld [vmem:[#allocation4 + $0xc0] sm:$0xff]
          %v403 = vld [vmem:[#allocation4 + $0xc8] sm:$0xff]
          %v404 = vld [vmem:[#allocation4 + $0xd0] sm:$0xff]
          %v405 = vld [vmem:[#allocation4 + $0xd8] sm:$0xff]
          %v406 = vld [vmem:[#allocation4 + $0xe0] sm:$0xff]
          %v407 = vld [vmem:[#allocation4 + $0xe8] sm:$0xff]
          %v408 = vld [vmem:[#allocation4 + $0xf0] sm:$0xff]
          %v409 = vld [vmem:[#allocation4 + $0xf8] sm:$0xff]
          %v410 = vld [vmem:[#allocation7] sm:$0xff]
          %v411 = vld [vmem:[#allocation7 + $0x8] sm:$0xff]
          %v412 = vld [vmem:[#allocation7 + $0x10] sm:$0xff]
          %v413 = vld [vmem:[#allocation7 + $0x18] sm:$0xff]
          %v414 = vld [vmem:[#allocation7 + $0x20] sm:$0xff]
          %v415 = vld [vmem:[#allocation7 + $0x28] sm:$0xff]
          %v416 = vld [vmem:[#allocation7 + $0x30] sm:$0xff]
          %v417 = vld [vmem:[#allocation7 + $0x38] sm:$0xff]
          %v418 = vld [vmem:[#allocation7 + $0x40] sm:$0xff]
          %v419 = vld [vmem:[#allocation7 + $0x48] sm:$0xff]
          %v420 = vld [vmem:[#allocation7 + $0x50] sm:$0xff]
          %v421 = vld [vmem:[#allocation7 + $0x58] sm:$0xff]
          %v422 = vld [vmem:[#allocation7 + $0x60] sm:$0xff]
          %v423 = vld [vmem:[#allocation7 + $0x68] sm:$0xff]
          %v424 = vld [vmem:[#allocation7 + $0x70] sm:$0xff]
          %v425 = vld [vmem:[#allocation7 + $0x78] sm:$0xff]
          %v426 = vld [vmem:[#allocation7 + $0x80] sm:$0xff]
          %v427 = vld [vmem:[#allocation7 + $0x88] sm:$0xff]
          %v428 = vld [vmem:[#allocation7 + $0x90] sm:$0xff]
          %v429 = vld [vmem:[#allocation7 + $0x98] sm:$0xff]
          %v430 = vld [vmem:[#allocation7 + $0xa0] sm:$0xff]
          %v431 = vld [vmem:[#allocation7 + $0xa8] sm:$0xff]
          %v432 = vld [vmem:[#allocation7 + $0xb0] sm:$0xff]
          %v433 = vld [vmem:[#allocation7 + $0xb8] sm:$0xff]
          %v434 = vld [vmem:[#allocation7 + $0xc0] sm:$0xff]
          %v435 = vld [vmem:[#allocation7 + $0xc8] sm:$0xff]
          %v436 = vld [vmem:[#allocation7 + $0xd0] sm:$0xff]
          %v437 = vld [vmem:[#allocation7 + $0xd8] sm:$0xff]
          %v438 = vld [vmem:[#allocation7 + $0xe0] sm:$0xff]
          %v439 = vld [vmem:[#allocation7 + $0xe8] sm:$0xff]
          %v440 = vld [vmem:[#allocation7 + $0xf0] sm:$0xff]
          %v441 = vld [vmem:[#allocation7 + $0xf8] sm:$0xff]
          %v442 = vld [vmem:[#allocation9] sm:$0xff]
          %v443 = vld [vmem:[#allocation9 + $0x8] sm:$0xff]
          %v444 = vld [vmem:[#allocation9 + $0x10] sm:$0xff]
          %v445 = vld [vmem:[#allocation9 + $0x18] sm:$0xff]
          %v446 = vld [vmem:[#allocation9 + $0x20] sm:$0xff]
          %v447 = vld [vmem:[#allocation9 + $0x28] sm:$0xff]
          %v448 = vld [vmem:[#allocation9 + $0x30] sm:$0xff]
          %v449 = vld [vmem:[#allocation9 + $0x38] sm:$0xff]
          %v450 = vld [vmem:[#allocation9 + $0x40] sm:$0xff]
          %v451 = vld [vmem:[#allocation9 + $0x48] sm:$0xff]
          %v452 = vld [vmem:[#allocation9 + $0x50] sm:$0xff]
          %v453 = vld [vmem:[#allocation9 + $0x58] sm:$0xff]
          %v454 = vld [vmem:[#allocation9 + $0x60] sm:$0xff]
          %v455 = vld [vmem:[#allocation9 + $0x68] sm:$0xff]
          %v456 = vld [vmem:[#allocation9 + $0x70] sm:$0xff]
          %v457 = vld [vmem:[#allocation9 + $0x78] sm:$0xff]
          %v458 = vld [vmem:[#allocation9 + $0x80] sm:$0xff]
          %v459 = vld [vmem:[#allocation9 + $0x88] sm:$0xff]
          %v460 = vld [vmem:[#allocation9 + $0x90] sm:$0xff]
          %v461 = vld [vmem:[#allocation9 + $0x98] sm:$0xff]
          %v462 = vld [vmem:[#allocation9 + $0xa0] sm:$0xff]
          %v463 = vld [vmem:[#allocation9 + $0xa8] sm:$0xff]
          %v464 = vld [vmem:[#allocation9 + $0xb0] sm:$0xff]
          %v465 = vld [vmem:[#allocation9 + $0xb8] sm:$0xff]
          %v466 = vld [vmem:[#allocation9 + $0xc0] sm:$0xff]
          %v467 = vld [vmem:[#allocation9 + $0xc8] sm:$0xff]
          %v468 = vld [vmem:[#allocation9 + $0xd0] sm:$0xff]
          %v469 = vld [vmem:[#allocation9 + $0xd8] sm:$0xff]
          %v470 = vld [vmem:[#allocation9 + $0xe0] sm:$0xff]
          %v471 = vld [vmem:[#allocation9 + $0xe8] sm:$0xff]
          %v472 = vld [vmem:[#allocation9 + $0xf0] sm:$0xff]
          %v473 = vld [vmem:[#allocation9 + $0xf8] sm:$0xff]
          %474 = vmatprep.subr.mxu0 0.0
          %475 = vmatpush1.xpose.msra.mxu0 0.0
          %476 = vmatprep.subr.mxu0 0.0
          %477 = vmatpush1.xpose.msra.mxu0 0.0
          %478 = vmatprep.subr.mxu0 0.0
          %479 = vmatpush1.xpose.msra.mxu0 0.0
          %480 = vmatprep.subr.mxu0 0.0
          %481 = vmatpush1.xpose.msra.mxu0 0.0
          %482 = vmatprep.subr.mxu0 0.0
          %483 = vmatpush1.xpose.msra.mxu0 0.0
          %484 = vmatprep.subr.mxu0 0.0
          %485 = vmatpush1.xpose.msra.mxu0 0.0
          %486 = vmatprep.subr.mxu0 0.0
          %487 = vmatpush1.xpose.msra.mxu0 0.0
          %488 = vmatprep.subr.mxu0 0.0
          %489 = vmatpush1.xpose.msra.mxu0 0.0
          %490 = vmatprep.subr.mxu0 %v425
          %491 = vmatpush1.xpose.msra.mxu0 %v424
          %492 = vmatprep.subr.mxu0 %v423
          %493 = vmatpush1.xpose.msra.mxu0 %v422
          %494 = vmatprep.subr.mxu0 %v421
          %495 = vmatpush1.xpose.msra.mxu0 %v420
          %496 = vmatprep.subr.mxu0 %v419
          %497 = vmatpush1.xpose.msra.mxu0 %v418
          %498 = vmatprep.subr.mxu0 %v417
          %499 = vmatpush1.xpose.msra.mxu0 %v416
          %500 = vmatprep.subr.mxu0 %v415
          %501 = vmatpush1.xpose.msra.mxu0 %v414
          %502 = vmatprep.subr.mxu0 %v413
          %503 = vmatpush1.xpose.msra.mxu0 %v412
          %504 = vmatprep.subr.mxu0 %v411
          %505 = vmatpush1.xpose.msra.mxu0 %v410
          %506 = vmatprep.subr.mxu0 0.0
          %507 = vmatpush2.xpose.msra.mxu0 0.0
          %508 = vmatprep.subr.mxu0 0.0
          %509 = vmatpush2.xpose.msra.mxu0 0.0
          %510 = vmatprep.subr.mxu0 0.0
          %511 = vmatpush2.xpose.msra.mxu0 0.0
          %512 = vmatprep.subr.mxu0 0.0
          %513 = vmatpush2.xpose.msra.mxu0 0.0
          %514 = vmatprep.subr.mxu0 0.0
          %515 = vmatpush2.xpose.msra.mxu0 0.0
          %516 = vmatprep.subr.mxu0 0.0
          %517 = vmatpush2.xpose.msra.mxu0 0.0
          %518 = vmatprep.subr.mxu0 0.0
          %519 = vmatpush2.xpose.msra.mxu0 0.0
          %520 = vmatprep.subr.mxu0 0.0
          %521 = vmatpush2.xpose.msra.mxu0 0.0
          %522 = vmatprep.subr.mxu0 0.0
          %523 = vmatpush2.xpose.msra.mxu0 0.0
          %524 = vmatprep.subr.mxu0 0.0
          %525 = vmatpush2.xpose.msra.mxu0 0.0
          %526 = vmatprep.subr.mxu0 0.0
          %527 = vmatpush2.xpose.msra.mxu0 0.0
          %528 = vmatprep.subr.mxu0 0.0
          %529 = vmatpush2.xpose.msra.mxu0 0.0
          %530 = vmatprep.subr.mxu0 0.0
          %531 = vmatpush2.xpose.msra.mxu0 0.0
          %532 = vmatprep.subr.mxu0 0.0
          %533 = vmatpush2.xpose.msra.mxu0 0.0
          %534 = vmatprep.subr.mxu0 0.0
          %535 = vmatpush2.xpose.msra.mxu0 0.0
          %536 = vmatprep.subr.mxu0 0.0
          %537 = vmatpush2.xpose.msra.mxu0 0.0
          %538 = vmatprep.mubr.f32.mxu0 %v379
          %539 = vmatmul.mubr.f32.gmra.mxu0 %v378
          %v540 = vpop.f32.mrf.mxu0
          %v541 = vadd.f32 0.0, %v540
          %v542 = vpop.f32.mrf.mxu0
          %543 = vmatprep.mubr.f32.mxu0 %v381
          %544 = vmatmul.mubr.f32.gmra.mxu0 %v380
          %v545 = vpop.f32.mrf.mxu0
          %v546 = vadd.f32 0.0, %v545
          %v547 = vpop.f32.mrf.mxu0
          %548 = vmatprep.mubr.f32.mxu0 %v383
          %549 = vmatmul.mubr.f32.gmra.mxu0 %v382
          %v550 = vpop.f32.mrf.mxu0
          %v551 = vadd.f32 0.0, %v550
          %v552 = vpop.f32.mrf.mxu0
          %553 = vmatprep.mubr.f32.mxu0 %v385
          %554 = vmatmul.mubr.f32.gmra.mxu0 %v384
          %v555 = vpop.f32.mrf.mxu0
          %v556 = vadd.f32 0.0, %v555
          %v557 = vpop.f32.mrf.mxu0
          %558 = vmatprep.mubr.f32.mxu0 %v387
          %559 = vmatmul.mubr.f32.gmra.mxu0 %v386
          %v560 = vpop.f32.mrf.mxu0
          %v561 = vadd.f32 0.0, %v560
          %v562 = vpop.f32.mrf.mxu0
          %563 = vmatprep.mubr.f32.mxu0 %v389
          %564 = vmatmul.mubr.f32.gmra.mxu0 %v388
          %v565 = vpop.f32.mrf.mxu0
          %v566 = vadd.f32 0.0, %v565
          %v567 = vpop.f32.mrf.mxu0
          %568 = vmatprep.mubr.f32.mxu0 %v391
          %569 = vmatmul.mubr.f32.gmra.mxu0 %v390
          %v570 = vpop.f32.mrf.mxu0
          %v571 = vadd.f32 0.0, %v570
          %v572 = vpop.f32.mrf.mxu0
          %573 = vmatprep.mubr.f32.mxu0 %v393
          %574 = vmatmul.mubr.f32.gmra.mxu0 %v392
          %v575 = vpop.f32.mrf.mxu0
          %v576 = vadd.f32 0.0, %v575
          %v577 = vpop.f32.mrf.mxu0
          %578 = vdwg.mxu0
          %579 = vmatprep.subr.mxu0 0.0
          %580 = vmatpush1.xpose.msra.mxu0 0.0
          %581 = vmatprep.subr.mxu0 0.0
          %582 = vmatpush1.xpose.msra.mxu0 0.0
          %583 = vmatprep.subr.mxu0 0.0
          %584 = vmatpush1.xpose.msra.mxu0 0.0
          %585 = vmatprep.subr.mxu0 0.0
          %586 = vmatpush1.xpose.msra.mxu0 0.0
          %587 = vmatprep.subr.mxu0 0.0
          %588 = vmatpush1.xpose.msra.mxu0 0.0
          %589 = vmatprep.subr.mxu0 0.0
          %590 = vmatpush1.xpose.msra.mxu0 0.0
          %591 = vmatprep.subr.mxu0 0.0
          %592 = vmatpush1.xpose.msra.mxu0 0.0
          %593 = vmatprep.subr.mxu0 0.0
          %594 = vmatpush1.xpose.msra.mxu0 0.0
          %595 = vmatprep.subr.mxu0 %v441
          %596 = vmatpush1.xpose.msra.mxu0 %v440
          %597 = vmatprep.subr.mxu0 %v439
          %598 = vmatpush1.xpose.msra.mxu0 %v438
          %599 = vmatprep.subr.mxu0 %v437
          %600 = vmatpush1.xpose.msra.mxu0 %v436
          %601 = vmatprep.subr.mxu0 %v435
          %602 = vmatpush1.xpose.msra.mxu0 %v434
          %603 = vmatprep.subr.mxu0 %v433
          %604 = vmatpush1.xpose.msra.mxu0 %v432
          %605 = vmatprep.subr.mxu0 %v431
          %606 = vmatpush1.xpose.msra.mxu0 %v430
          %607 = vmatprep.subr.mxu0 %v429
          %608 = vmatpush1.xpose.msra.mxu0 %v428
          %609 = vmatprep.subr.mxu0 %v427
          %610 = vmatpush1.xpose.msra.mxu0 %v426
          %611 = vmatprep.subr.mxu0 0.0
          %612 = vmatpush2.xpose.msra.mxu0 0.0
          %613 = vmatprep.subr.mxu0 0.0
          %614 = vmatpush2.xpose.msra.mxu0 0.0
          %615 = vmatprep.subr.mxu0 0.0
          %616 = vmatpush2.xpose.msra.mxu0 0.0
          %617 = vmatprep.subr.mxu0 0.0
          %618 = vmatpush2.xpose.msra.mxu0 0.0
          %619 = vmatprep.subr.mxu0 0.0
          %620 = vmatpush2.xpose.msra.mxu0 0.0
          %621 = vmatprep.subr.mxu0 0.0
          %622 = vmatpush2.xpose.msra.mxu0 0.0
          %623 = vmatprep.subr.mxu0 0.0
          %624 = vmatpush2.xpose.msra.mxu0 0.0
          %625 = vmatprep.subr.mxu0 0.0
          %626 = vmatpush2.xpose.msra.mxu0 0.0
          %627 = vmatprep.subr.mxu0 0.0
          %628 = vmatpush2.xpose.msra.mxu0 0.0
          %629 = vmatprep.subr.mxu0 0.0
          %630 = vmatpush2.xpose.msra.mxu0 0.0
          %631 = vmatprep.subr.mxu0 0.0
          %632 = vmatpush2.xpose.msra.mxu0 0.0
          %633 = vmatprep.subr.mxu0 0.0
          %634 = vmatpush2.xpose.msra.mxu0 0.0
          %635 = vmatprep.subr.mxu0 0.0
          %636 = vmatpush2.xpose.msra.mxu0 0.0
          %637 = vmatprep.subr.mxu0 0.0
          %638 = vmatpush2.xpose.msra.mxu0 0.0
          %639 = vmatprep.subr.mxu0 0.0
          %640 = vmatpush2.xpose.msra.mxu0 0.0
          %641 = vmatprep.subr.mxu0 0.0
          %642 = vmatpush2.xpose.msra.mxu0 0.0
          %643 = vmatprep.mubr.f32.mxu0 %v395
          %644 = vmatmul.mubr.f32.gmra.mxu0 %v394
          %v645 = vpop.f32.mrf.mxu0
          %v646 = vadd.f32 0.0, %v645
          %v647 = vpop.f32.mrf.mxu0
          %648 = vmatprep.mubr.f32.mxu0 %v397
          %649 = vmatmul.mubr.f32.gmra.mxu0 %v396
          %v650 = vpop.f32.mrf.mxu0
          %v651 = vadd.f32 0.0, %v650
          %v652 = vpop.f32.mrf.mxu0
          %653 = vmatprep.mubr.f32.mxu0 %v399
          %654 = vmatmul.mubr.f32.gmra.mxu0 %v398
          %v655 = vpop.f32.mrf.mxu0
          %v656 = vadd.f32 0.0, %v655
          %v657 = vpop.f32.mrf.mxu0
          %658 = vmatprep.mubr.f32.mxu0 %v401
          %659 = vmatmul.mubr.f32.gmra.mxu0 %v400
          %v660 = vpop.f32.mrf.mxu0
          %v661 = vadd.f32 0.0, %v660
          %v662 = vpop.f32.mrf.mxu0
          %663 = vmatprep.mubr.f32.mxu0 %v403
          %664 = vmatmul.mubr.f32.gmra.mxu0 %v402
          %v665 = vpop.f32.mrf.mxu0
          %v666 = vadd.f32 0.0, %v665
          %v667 = vpop.f32.mrf.mxu0
          %668 = vmatprep.mubr.f32.mxu0 %v405
          %669 = vmatmul.mubr.f32.gmra.mxu0 %v404
          %v670 = vpop.f32.mrf.mxu0
          %v671 = vadd.f32 0.0, %v670
          %v672 = vpop.f32.mrf.mxu0
          %673 = vmatprep.mubr.f32.mxu0 %v407
          %674 = vmatmul.mubr.f32.gmra.mxu0 %v406
          %v675 = vpop.f32.mrf.mxu0
          %v676 = vadd.f32 0.0, %v675
          %v677 = vpop.f32.mrf.mxu0
          %678 = vmatprep.mubr.f32.mxu0 %v409
          %679 = vmatmul.mubr.f32.gmra.mxu0 %v408
          %v680 = vpop.f32.mrf.mxu0
          %v681 = vadd.f32 0.0, %v680
          %v682 = vpop.f32.mrf.mxu0
          %683 = vdwg.mxu0
          %v684 = vmul.f32 %v541, 0.125
          %v685 = vmul.f32 %v546, 0.125
          %v686 = vmul.f32 %v551, 0.125
          %v687 = vmul.f32 %v556, 0.125
          %v688 = vmul.f32 %v561, 0.125
          %v689 = vmul.f32 %v566, 0.125
          %v690 = vmul.f32 %v571, 0.125
          %v691 = vmul.f32 %v576, 0.125
          %v692 = vmul.f32 %v646, 0.125
          %v693 = vmul.f32 %v651, 0.125
          %v694 = vmul.f32 %v656, 0.125
          %v695 = vmul.f32 %v661, 0.125
          %v696 = vmul.f32 %v666, 0.125
          %v697 = vmul.f32 %v671, 0.125
          %v698 = vmul.f32 %v676, 0.125
          %v699 = vmul.f32 %v681, 0.125
          %vm700 = vcmask 523264
          %v701 = vsel %vm700, %v684, -inf
          %702 = vmax.xlane.f32.xlu0 %v701
          %v703 = vpop.xlane.xlu0 %702
          %v704 = vsel %vm700, %v685, -inf
          %705 = vmax.xlane.f32.xlu0 %v704
          %v706 = vpop.xlane.xlu0 %705
          %v707 = vsel %vm700, %v686, -inf
          %708 = vmax.xlane.f32.xlu0 %v707
          %v709 = vpop.xlane.xlu0 %708
          %v710 = vsel %vm700, %v687, -inf
          %711 = vmax.xlane.f32.xlu0 %v710
          %v712 = vpop.xlane.xlu0 %711
          %v713 = vsel %vm700, %v688, -inf
          %714 = vmax.xlane.f32.xlu0 %v713
          %v715 = vpop.xlane.xlu0 %714
          %v716 = vsel %vm700, %v689, -inf
          %717 = vmax.xlane.f32.xlu0 %v716
          %v718 = vpop.xlane.xlu0 %717
          %v719 = vsel %vm700, %v690, -inf
          %720 = vmax.xlane.f32.xlu0 %v719
          %v721 = vpop.xlane.xlu0 %720
          %v722 = vsel %vm700, %v691, -inf
          %723 = vmax.xlane.f32.xlu0 %v722
          %v724 = vpop.xlane.xlu0 %723
          %v725 = vsel %vm700, %v692, -inf
          %726 = vmax.xlane.f32.xlu0 %v725
          %v727 = vpop.xlane.xlu0 %726
          %v728 = vsel %vm700, %v693, -inf
          %729 = vmax.xlane.f32.xlu0 %v728
          %v730 = vpop.xlane.xlu0 %729
          %v731 = vsel %vm700, %v694, -inf
          %732 = vmax.xlane.f32.xlu0 %v731
          %v733 = vpop.xlane.xlu0 %732
          %v734 = vsel %vm700, %v695, -inf
          %735 = vmax.xlane.f32.xlu0 %v734
          %v736 = vpop.xlane.xlu0 %735
          %v737 = vsel %vm700, %v696, -inf
          %738 = vmax.xlane.f32.xlu0 %v737
          %v739 = vpop.xlane.xlu0 %738
          %v740 = vsel %vm700, %v697, -inf
          %741 = vmax.xlane.f32.xlu0 %v740
          %v742 = vpop.xlane.xlu0 %741
          %v743 = vsel %vm700, %v698, -inf
          %744 = vmax.xlane.f32.xlu0 %v743
          %v745 = vpop.xlane.xlu0 %744
          %v746 = vsel %vm700, %v699, -inf
          %747 = vmax.xlane.f32.xlu0 %v746
          %v748 = vpop.xlane.xlu0 %747
          %v749 = vsub.f32 %v684, %v703
          %v750 = vsub.f32 %v685, %v706
          %v751 = vsub.f32 %v686, %v709
          %v752 = vsub.f32 %v687, %v712
          %v753 = vsub.f32 %v688, %v715
          %v754 = vsub.f32 %v689, %v718
          %v755 = vsub.f32 %v690, %v721
          %v756 = vsub.f32 %v691, %v724
          %v757 = vsub.f32 %v692, %v727
          %v758 = vsub.f32 %v693, %v730
          %v759 = vsub.f32 %v694, %v733
          %v760 = vsub.f32 %v695, %v736
          %v761 = vsub.f32 %v696, %v739
          %v762 = vsub.f32 %v697, %v742
          %v763 = vsub.f32 %v698, %v745
          %v764 = vsub.f32 %v699, %v748
          %v765 = vmul.f32 %v749, 1.442695
          %v766 = vpow.pop %v765
          %v767 = vmul.f32 %v750, 1.442695
          %v768 = vpow.pop %v767
          %v769 = vmul.f32 %v751, 1.442695
          %v770 = vpow.pop %v769
          %v771 = vmul.f32 %v752, 1.442695
          %v772 = vpow.pop %v771
          %v773 = vmul.f32 %v753, 1.442695
          %v774 = vpow.pop %v773
          %v775 = vmul.f32 %v754, 1.442695
          %v776 = vpow.pop %v775
          %v777 = vmul.f32 %v755, 1.442695
          %v778 = vpow.pop %v777
          %v779 = vmul.f32 %v756, 1.442695
          %v780 = vpow.pop %v779
          %v781 = vmul.f32 %v757, 1.442695
          %v782 = vpow.pop %v781
          %v783 = vmul.f32 %v758, 1.442695
          %v784 = vpow.pop %v783
          %v785 = vmul.f32 %v759, 1.442695
          %v786 = vpow.pop %v785
          %v787 = vmul.f32 %v760, 1.442695
          %v788 = vpow.pop %v787
          %v789 = vmul.f32 %v761, 1.442695
          %v790 = vpow.pop %v789
          %v791 = vmul.f32 %v762, 1.442695
          %v792 = vpow.pop %v791
          %v793 = vmul.f32 %v763, 1.442695
          %v794 = vpow.pop %v793
          %v795 = vmul.f32 %v764, 1.442695
          %v796 = vpow.pop %v795
          %v797 = vsel %vm700, %v766, 0.0
          %798 = vadd.xlane.f32.xlu0 %v797
          %v799 = vpop.xlane.xlu0 %798
          %v800 = vsel %vm700, %v768, 0.0
          %801 = vadd.xlane.f32.xlu0 %v800
          %v802 = vpop.xlane.xlu0 %801
          %v803 = vsel %vm700, %v770, 0.0
          %804 = vadd.xlane.f32.xlu0 %v803
          %v805 = vpop.xlane.xlu0 %804
          %v806 = vsel %vm700, %v772, 0.0
          %807 = vadd.xlane.f32.xlu0 %v806
          %v808 = vpop.xlane.xlu0 %807
          %v809 = vsel %vm700, %v774, 0.0
          %810 = vadd.xlane.f32.xlu0 %v809
          %v811 = vpop.xlane.xlu0 %810
          %v812 = vsel %vm700, %v776, 0.0
          %813 = vadd.xlane.f32.xlu0 %v812
          %v814 = vpop.xlane.xlu0 %813
          %v815 = vsel %vm700, %v778, 0.0
          %816 = vadd.xlane.f32.xlu0 %v815
          %v817 = vpop.xlane.xlu0 %816
          %v818 = vsel %vm700, %v780, 0.0
          %819 = vadd.xlane.f32.xlu0 %v818
          %v820 = vpop.xlane.xlu0 %819
          %v821 = vsel %vm700, %v782, 0.0
          %822 = vadd.xlane.f32.xlu0 %v821
          %v823 = vpop.xlane.xlu0 %822
          %v824 = vsel %vm700, %v784, 0.0
          %825 = vadd.xlane.f32.xlu0 %v824
          %v826 = vpop.xlane.xlu0 %825
          %v827 = vsel %vm700, %v786, 0.0
          %828 = vadd.xlane.f32.xlu0 %v827
          %v829 = vpop.xlane.xlu0 %828
          %v830 = vsel %vm700, %v788, 0.0
          %831 = vadd.xlane.f32.xlu0 %v830
          %v832 = vpop.xlane.xlu0 %831
          %v833 = vsel %vm700, %v790, 0.0
          %834 = vadd.xlane.f32.xlu0 %v833
          %v835 = vpop.xlane.xlu0 %834
          %v836 = vsel %vm700, %v792, 0.0
          %837 = vadd.xlane.f32.xlu0 %v836
          %v838 = vpop.xlane.xlu0 %837
          %v839 = vsel %vm700, %v794, 0.0
          %840 = vadd.xlane.f32.xlu0 %v839
          %v841 = vpop.xlane.xlu0 %840
          %v842 = vsel %vm700, %v796, 0.0
          %843 = vadd.xlane.f32.xlu0 %v842
          %v844 = vpop.xlane.xlu0 %843
          %v845 = vrcp.pop %v799
          %v846 = vmul.f32 %v766, %v845
          %v847 = vrcp.pop %v802
          %v848 = vmul.f32 %v768, %v847
          %v849 = vrcp.pop %v805
          %v850 = vmul.f32 %v770, %v849
          %v851 = vrcp.pop %v808
          %v852 = vmul.f32 %v772, %v851
          %v853 = vrcp.pop %v811
          %v854 = vmul.f32 %v774, %v853
          %v855 = vrcp.pop %v814
          %v856 = vmul.f32 %v776, %v855
          %v857 = vrcp.pop %v817
          %v858 = vmul.f32 %v778, %v857
          %v859 = vrcp.pop %v820
          %v860 = vmul.f32 %v780, %v859
          %v861 = vrcp.pop %v823
          %v862 = vmul.f32 %v782, %v861
          %v863 = vrcp.pop %v826
          %v864 = vmul.f32 %v784, %v863
          %v865 = vrcp.pop %v829
          %v866 = vmul.f32 %v786, %v865
          %v867 = vrcp.pop %v832
          %v868 = vmul.f32 %v788, %v867
          %v869 = vrcp.pop %v835
          %v870 = vmul.f32 %v790, %v869
          %v871 = vrcp.pop %v838
          %v872 = vmul.f32 %v792, %v871
          %v873 = vrcp.pop %v841
          %v874 = vmul.f32 %v794, %v873
          %v875 = vrcp.pop %v844
          %v876 = vmul.f32 %v796, %v875
          %v878 = vsel %vm700, %v846, 0
          %v881 = vsel %vm700, %v848, 0
          %v884 = vsel %vm700, %v850, 0
          %v887 = vsel %vm700, %v852, 0
          %v890 = vsel %vm700, %v854, 0
          %v893 = vsel %vm700, %v856, 0
          %v896 = vsel %vm700, %v858, 0
          %v899 = vsel %vm700, %v860, 0
          %901 = vmatprep.subr.mxu0 0.0
          %902 = vmatpush1.msra.mxu0 0.0
          %903 = vmatprep.subr.mxu0 0.0
          %904 = vmatpush1.msra.mxu0 0.0
          %905 = vmatprep.subr.mxu0 0.0
          %906 = vmatpush1.msra.mxu0 0.0
          %907 = vmatprep.subr.mxu0 0.0
          %908 = vmatpush1.msra.mxu0 0.0
          %909 = vmatprep.subr.mxu0 0.0
          %910 = vmatpush1.msra.mxu0 0.0
          %911 = vmatprep.subr.mxu0 0.0
          %912 = vmatpush1.msra.mxu0 0.0
          %913 = vmatprep.subr.mxu0 0.0
          %914 = vmatpush1.msra.mxu0 0.0
          %915 = vmatprep.subr.mxu0 0.0
          %916 = vmatpush1.msra.mxu0 0.0
          %917 = vmatprep.subr.mxu0 %v457
          %918 = vmatpush1.msra.mxu0 %v456
          %919 = vmatprep.subr.mxu0 %v455
          %920 = vmatpush1.msra.mxu0 %v454
          %921 = vmatprep.subr.mxu0 %v453
          %922 = vmatpush1.msra.mxu0 %v452
          %923 = vmatprep.subr.mxu0 %v451
          %924 = vmatpush1.msra.mxu0 %v450
          %925 = vmatprep.subr.mxu0 %v449
          %926 = vmatpush1.msra.mxu0 %v448
          %927 = vmatprep.subr.mxu0 %v447
          %928 = vmatpush1.msra.mxu0 %v446
          %929 = vmatprep.subr.mxu0 %v445
          %930 = vmatpush1.msra.mxu0 %v444
          %931 = vmatprep.subr.mxu0 %v443
          %932 = vmatpush1.msra.mxu0 %v442
          %933 = vmatprep.subr.mxu0 0.0
          %934 = vmatpush2.msra.mxu0 0.0
          %935 = vmatprep.subr.mxu0 0.0
          %936 = vmatpush2.msra.mxu0 0.0
          %937 = vmatprep.subr.mxu0 0.0
          %938 = vmatpush2.msra.mxu0 0.0
          %939 = vmatprep.subr.mxu0 0.0
          %940 = vmatpush2.msra.mxu0 0.0
          %941 = vmatprep.subr.mxu0 0.0
          %942 = vmatpush2.msra.mxu0 0.0
          %943 = vmatprep.subr.mxu0 0.0
          %944 = vmatpush2.msra.mxu0 0.0
          %945 = vmatprep.subr.mxu0 0.0
          %946 = vmatpush2.msra.mxu0 0.0
          %947 = vmatprep.subr.mxu0 0.0
          %948 = vmatpush2.msra.mxu0 0.0
          %949 = vmatprep.subr.mxu0 0.0
          %950 = vmatpush2.msra.mxu0 0.0
          %951 = vmatprep.subr.mxu0 0.0
          %952 = vmatpush2.msra.mxu0 0.0
          %953 = vmatprep.subr.mxu0 0.0
          %954 = vmatpush2.msra.mxu0 0.0
          %955 = vmatprep.subr.mxu0 0.0
          %956 = vmatpush2.msra.mxu0 0.0
          %957 = vmatprep.subr.mxu0 0.0
          %958 = vmatpush2.msra.mxu0 0.0
          %959 = vmatprep.subr.mxu0 0.0
          %960 = vmatpush2.msra.mxu0 0.0
          %961 = vmatprep.subr.mxu0 0.0
          %962 = vmatpush2.msra.mxu0 0.0
          %963 = vmatprep.subr.mxu0 0.0
          %964 = vmatpush2.msra.mxu0 0.0
          %965 = vmatprep.mubr.f32.mxu0 0.0
          %966 = vmatmul.mubr.f32.gmra.mxu0 %v878
          %v967 = vpop.f32.mrf.mxu0
          %v968 = vadd.f32 0.0, %v967
          %v969 = vpop.f32.mrf.mxu0
          %v970 = vadd.f32 0.0, %v969
          %971 = vmatprep.mubr.f32.mxu0 0.0
          %972 = vmatmul.mubr.f32.gmra.mxu0 %v881
          %v973 = vpop.f32.mrf.mxu0
          %v974 = vadd.f32 0.0, %v973
          %v975 = vpop.f32.mrf.mxu0
          %v976 = vadd.f32 0.0, %v975
          %977 = vmatprep.mubr.f32.mxu0 0.0
          %978 = vmatmul.mubr.f32.gmra.mxu0 %v884
          %v979 = vpop.f32.mrf.mxu0
          %v980 = vadd.f32 0.0, %v979
          %v981 = vpop.f32.mrf.mxu0
          %v982 = vadd.f32 0.0, %v981
          %983 = vmatprep.mubr.f32.mxu0 0.0
          %984 = vmatmul.mubr.f32.gmra.mxu0 %v887
          %v985 = vpop.f32.mrf.mxu0
          %v986 = vadd.f32 0.0, %v985
          %v987 = vpop.f32.mrf.mxu0
          %v988 = vadd.f32 0.0, %v987
          %989 = vmatprep.mubr.f32.mxu0 0.0
          %990 = vmatmul.mubr.f32.gmra.mxu0 %v890
          %v991 = vpop.f32.mrf.mxu0
          %v992 = vadd.f32 0.0, %v991
          %v993 = vpop.f32.mrf.mxu0
          %v994 = vadd.f32 0.0, %v993
          %995 = vmatprep.mubr.f32.mxu0 0.0
          %996 = vmatmul.mubr.f32.gmra.mxu0 %v893
          %v997 = vpop.f32.mrf.mxu0
          %v998 = vadd.f32 0.0, %v997
          %v999 = vpop.f32.mrf.mxu0
          %v1000 = vadd.f32 0.0, %v999
          %1001 = vmatprep.mubr.f32.mxu0 0.0
          %1002 = vmatmul.mubr.f32.gmra.mxu0 %v896
          %v1003 = vpop.f32.mrf.mxu0
          %v1004 = vadd.f32 0.0, %v1003
          %v1005 = vpop.f32.mrf.mxu0
          %v1006 = vadd.f32 0.0, %v1005
          %1007 = vmatprep.mubr.f32.mxu0 0.0
          %1008 = vmatmul.mubr.f32.gmra.mxu0 %v899
          %v1009 = vpop.f32.mrf.mxu0
          %v1010 = vadd.f32 0.0, %v1009
          %v1011 = vpop.f32.mrf.mxu0
          %v1012 = vadd.f32 0.0, %v1011
          %1013 = vdwg.mxu0
          %v1015 = vsel %vm700, %v862, 0
          %v1018 = vsel %vm700, %v864, 0
          %v1021 = vsel %vm700, %v866, 0
          %v1024 = vsel %vm700, %v868, 0
          %v1027 = vsel %vm700, %v870, 0
          %v1030 = vsel %vm700, %v872, 0
          %v1033 = vsel %vm700, %v874, 0
          %v1036 = vsel %vm700, %v876, 0
          %1038 = vmatprep.subr.mxu0 0.0
          %1039 = vmatpush1.msra.mxu0 0.0
          %1040 = vmatprep.subr.mxu0 0.0
          %1041 = vmatpush1.msra.mxu0 0.0
          %1042 = vmatprep.subr.mxu0 0.0
          %1043 = vmatpush1.msra.mxu0 0.0
          %1044 = vmatprep.subr.mxu0 0.0
          %1045 = vmatpush1.msra.mxu0 0.0
          %1046 = vmatprep.subr.mxu0 0.0
          %1047 = vmatpush1.msra.mxu0 0.0
          %1048 = vmatprep.subr.mxu0 0.0
          %1049 = vmatpush1.msra.mxu0 0.0
          %1050 = vmatprep.subr.mxu0 0.0
          %1051 = vmatpush1.msra.mxu0 0.0
          %1052 = vmatprep.subr.mxu0 0.0
          %1053 = vmatpush1.msra.mxu0 0.0
          %1054 = vmatprep.subr.mxu0 %v473
          %1055 = vmatpush1.msra.mxu0 %v472
          %1056 = vmatprep.subr.mxu0 %v471
          %1057 = vmatpush1.msra.mxu0 %v470
          %1058 = vmatprep.subr.mxu0 %v469
          %1059 = vmatpush1.msra.mxu0 %v468
          %1060 = vmatprep.subr.mxu0 %v467
          %1061 = vmatpush1.msra.mxu0 %v466
          %1062 = vmatprep.subr.mxu0 %v465
          %1063 = vmatpush1.msra.mxu0 %v464
          %1064 = vmatprep.subr.mxu0 %v463
          %1065 = vmatpush1.msra.mxu0 %v462
          %1066 = vmatprep.subr.mxu0 %v461
          %1067 = vmatpush1.msra.mxu0 %v460
          %1068 = vmatprep.subr.mxu0 %v459
          %1069 = vmatpush1.msra.mxu0 %v458
          %1070 = vmatprep.subr.mxu0 0.0
          %1071 = vmatpush2.msra.mxu0 0.0
          %1072 = vmatprep.subr.mxu0 0.0
          %1073 = vmatpush2.msra.mxu0 0.0
          %1074 = vmatprep.subr.mxu0 0.0
          %1075 = vmatpush2.msra.mxu0 0.0
          %1076 = vmatprep.subr.mxu0 0.0
          %1077 = vmatpush2.msra.mxu0 0.0
          %1078 = vmatprep.subr.mxu0 0.0
          %1079 = vmatpush2.msra.mxu0 0.0
          %1080 = vmatprep.subr.mxu0 0.0
          %1081 = vmatpush2.msra.mxu0 0.0
          %1082 = vmatprep.subr.mxu0 0.0
          %1083 = vmatpush2.msra.mxu0 0.0
          %1084 = vmatprep.subr.mxu0 0.0
          %1085 = vmatpush2.msra.mxu0 0.0
          %1086 = vmatprep.subr.mxu0 0.0
          %1087 = vmatpush2.msra.mxu0 0.0
          %1088 = vmatprep.subr.mxu0 0.0
          %1089 = vmatpush2.msra.mxu0 0.0
          %1090 = vmatprep.subr.mxu0 0.0
          %1091 = vmatpush2.msra.mxu0 0.0
          %1092 = vmatprep.subr.mxu0 0.0
          %1093 = vmatpush2.msra.mxu0 0.0
          %1094 = vmatprep.subr.mxu0 0.0
          %1095 = vmatpush2.msra.mxu0 0.0
          %1096 = vmatprep.subr.mxu0 0.0
          %1097 = vmatpush2.msra.mxu0 0.0
          %1098 = vmatprep.subr.mxu0 0.0
          %1099 = vmatpush2.msra.mxu0 0.0
          %1100 = vmatprep.subr.mxu0 0.0
          %1101 = vmatpush2.msra.mxu0 0.0
          %1102 = vmatprep.mubr.f32.mxu0 0.0
          %1103 = vmatmul.mubr.f32.gmra.mxu0 %v1015
          %v1104 = vpop.f32.mrf.mxu0
          %v1105 = vadd.f32 0.0, %v1104
          %v1106 = vpop.f32.mrf.mxu0
          %v1107 = vadd.f32 0.0, %v1106
          %1108 = vmatprep.mubr.f32.mxu0 0.0
          %1109 = vmatmul.mubr.f32.gmra.mxu0 %v1018
          %v1110 = vpop.f32.mrf.mxu0
          %v1111 = vadd.f32 0.0, %v1110
          %v1112 = vpop.f32.mrf.mxu0
          %v1113 = vadd.f32 0.0, %v1112
          %1114 = vmatprep.mubr.f32.mxu0 0.0
          %1115 = vmatmul.mubr.f32.gmra.mxu0 %v1021
          %v1116 = vpop.f32.mrf.mxu0
          %v1117 = vadd.f32 0.0, %v1116
          %v1118 = vpop.f32.mrf.mxu0
          %v1119 = vadd.f32 0.0, %v1118
          %1120 = vmatprep.mubr.f32.mxu0 0.0
          %1121 = vmatmul.mubr.f32.gmra.mxu0 %v1024
          %v1122 = vpop.f32.mrf.mxu0
          %v1123 = vadd.f32 0.0, %v1122
          %v1124 = vpop.f32.mrf.mxu0
          %v1125 = vadd.f32 0.0, %v1124
          %1126 = vmatprep.mubr.f32.mxu0 0.0
          %1127 = vmatmul.mubr.f32.gmra.mxu0 %v1027
          %v1128 = vpop.f32.mrf.mxu0
          %v1129 = vadd.f32 0.0, %v1128
          %v1130 = vpop.f32.mrf.mxu0
          %v1131 = vadd.f32 0.0, %v1130
          %1132 = vmatprep.mubr.f32.mxu0 0.0
          %1133 = vmatmul.mubr.f32.gmra.mxu0 %v1030
          %v1134 = vpop.f32.mrf.mxu0
          %v1135 = vadd.f32 0.0, %v1134
          %v1136 = vpop.f32.mrf.mxu0
          %v1137 = vadd.f32 0.0, %v1136
          %1138 = vmatprep.mubr.f32.mxu0 0.0
          %1139 = vmatmul.mubr.f32.gmra.mxu0 %v1033
          %v1140 = vpop.f32.mrf.mxu0
          %v1141 = vadd.f32 0.0, %v1140
          %v1142 = vpop.f32.mrf.mxu0
          %v1143 = vadd.f32 0.0, %v1142
          %1144 = vmatprep.mubr.f32.mxu0 0.0
          %1145 = vmatmul.mubr.f32.gmra.mxu0 %v1036
          %v1146 = vpop.f32.mrf.mxu0
          %v1147 = vadd.f32 0.0, %v1146
          %v1148 = vpop.f32.mrf.mxu0
          %v1149 = vadd.f32 0.0, %v1148
          %1150 = vdwg.mxu0
          %1151 = vst [vmem:[#allocation2] sm:$0xff] %v968
          %1152 = vst [vmem:[#allocation2 + $0x8] sm:$0xff] %v970
          %1153 = vst [vmem:[#allocation2 + $0x10] sm:$0xff] %v974
          %1154 = vst [vmem:[#allocation2 + $0x18] sm:$0xff] %v976
          %1155 = vst [vmem:[#allocation2 + $0x20] sm:$0xff] %v980
          %1156 = vst [vmem:[#allocation2 + $0x28] sm:$0xff] %v982
          %1157 = vst [vmem:[#allocation2 + $0x30] sm:$0xff] %v986
          %1158 = vst [vmem:[#allocation2 + $0x38] sm:$0xff] %v988
          %1159 = vst [vmem:[#allocation2 + $0x40] sm:$0xff] %v992
          %1160 = vst [vmem:[#allocation2 + $0x48] sm:$0xff] %v994
          %1161 = vst [vmem:[#allocation2 + $0x50] sm:$0xff] %v998
          %1162 = vst [vmem:[#allocation2 + $0x58] sm:$0xff] %v1000
          %1163 = vst [vmem:[#allocation2 + $0x60] sm:$0xff] %v1004
          %1164 = vst [vmem:[#allocation2 + $0x68] sm:$0xff] %v1006
          %1165 = vst [vmem:[#allocation2 + $0x70] sm:$0xff] %v1010
          %1166 = vst [vmem:[#allocation2 + $0x78] sm:$0xff] %v1012
          %1167 = vst [vmem:[#allocation2 + $0x80] sm:$0xff] %v1105
          %1168 = vst [vmem:[#allocation2 + $0x88] sm:$0xff] %v1107
          %1169 = vst [vmem:[#allocation2 + $0x90] sm:$0xff] %v1111
          %1170 = vst [vmem:[#allocation2 + $0x98] sm:$0xff] %v1113
          %1171 = vst [vmem:[#allocation2 + $0xa0] sm:$0xff] %v1117
          %1172 = vst [vmem:[#allocation2 + $0xa8] sm:$0xff] %v1119
          %1173 = vst [vmem:[#allocation2 + $0xb0] sm:$0xff] %v1123
          %1174 = vst [vmem:[#allocation2 + $0xb8] sm:$0xff] %v1125
          %1175 = vst [vmem:[#allocation2 + $0xc0] sm:$0xff] %v1129
          %1176 = vst [vmem:[#allocation2 + $0xc8] sm:$0xff] %v1131
          %1177 = vst [vmem:[#allocation2 + $0xd0] sm:$0xff] %v1135
          %1178 = vst [vmem:[#allocation2 + $0xd8] sm:$0xff] %v1137
          %1179 = vst [vmem:[#allocation2 + $0xe0] sm:$0xff] %v1141
          %1180 = vst [vmem:[#allocation2 + $0xe8] sm:$0xff] %v1143
          %1181 = vst [vmem:[#allocation2 + $0xf0] sm:$0xff] %v1147
          %1182 = vst [vmem:[#allocation2 + $0xf8] sm:$0xff] %v1149
          %s1183 = smul.u32 %s33, 32
          %s1184 = sshra.s32 %s1183, 3
          %s1185 = sand.u32 %s1183, 7
          %s1186 = smul.u32 %s1184, 2
          %s1187 = smul.addr %s1186, 8
          %s1188 = scalar_lea.vmem [#allocation2], %s1187
          %v1189 = vld [vmem:[%s1188] sm:$0xff]
          %v1190 = vld [vmem:[%s1188 + $0x8] sm:$0xff]
          %v1191 = vld [vmem:[%s1188 + $0x10] sm:$0xff]
          %v1192 = vld [vmem:[%s1188 + $0x18] sm:$0xff]
          %v1193 = vld [vmem:[%s1188 + $0x20] sm:$0xff]
          %v1194 = vld [vmem:[%s1188 + $0x28] sm:$0xff]
          %v1195 = vld [vmem:[%s1188 + $0x30] sm:$0xff]
          %v1196 = vld [vmem:[%s1188 + $0x38] sm:$0xff]
          %v1197 = vld [vmem:[%s1188 + $0x80] sm:$0xff]
          %v1198 = vld [vmem:[%s1188 + $0x88] sm:$0xff]
          %v1199 = vld [vmem:[%s1188 + $0x90] sm:$0xff]
          %v1200 = vld [vmem:[%s1188 + $0x98] sm:$0xff]
          %v1201 = vld [vmem:[%s1188 + $0xa0] sm:$0xff]
          %v1202 = vld [vmem:[%s1188 + $0xa8] sm:$0xff]
          %v1203 = vld [vmem:[%s1188 + $0xb0] sm:$0xff]
          %v1204 = vld [vmem:[%s1188 + $0xb8] sm:$0xff]
          %1205 = vst [vmem:[%s371] sm:$0xff] %v1189
          %1206 = vst [vmem:[%s371 + $0x8] sm:$0xff] %v1190
          %1207 = vst [vmem:[%s371 + $0x10] sm:$0xff] %v1191
          %1208 = vst [vmem:[%s371 + $0x18] sm:$0xff] %v1192
          %1209 = vst [vmem:[%s371 + $0x20] sm:$0xff] %v1193
          %1210 = vst [vmem:[%s371 + $0x28] sm:$0xff] %v1194
          %1211 = vst [vmem:[%s371 + $0x30] sm:$0xff] %v1195
          %1212 = vst [vmem:[%s371 + $0x38] sm:$0xff] %v1196
          %1213 = vst [vmem:[%s371 + $0x40] sm:$0xff] %v1197
          %1214 = vst [vmem:[%s371 + $0x48] sm:$0xff] %v1198
          %1215 = vst [vmem:[%s371 + $0x50] sm:$0xff] %v1199
          %1216 = vst [vmem:[%s371 + $0x58] sm:$0xff] %v1200
          %1217 = vst [vmem:[%s371 + $0x60] sm:$0xff] %v1201
          %1218 = vst [vmem:[%s371 + $0x68] sm:$0xff] %v1202
          %1219 = vst [vmem:[%s371 + $0x70] sm:$0xff] %v1203
          %1220 = vst [vmem:[%s371 + $0x78] sm:$0xff] %v1204
          %1221 = vst [vmem:[#allocation3] sm:$0x3] 0.0
        $region64: #{tpu_custom_call.1} parent=39 // pred_fallthru
          _
        %s1222 = smul.u32 %s34, 32
        %s1223 = sshra.s32 %s1222, 3
        %s1224 = sand.u32 %s1222, 7
        %s1225 = smul.u32 %s1223, 2
        %s1226 = smul.addr %s1225, 8
        %s1227 = scalar_lea.vmem [#allocation2], %s1226
        %v1228 = vld [vmem:[%s1227] sm:$0xff]
        %v1229 = vld [vmem:[%s1227 + $0x8] sm:$0xff]
        %v1230 = vld [vmem:[%s1227 + $0x10] sm:$0xff]
        %v1231 = vld [vmem:[%s1227 + $0x18] sm:$0xff]
        %v1232 = vld [vmem:[%s1227 + $0x20] sm:$0xff]
        %v1233 = vld [vmem:[%s1227 + $0x28] sm:$0xff]
        %v1234 = vld [vmem:[%s1227 + $0x30] sm:$0xff]
        %v1235 = vld [vmem:[%s1227 + $0x38] sm:$0xff]
        %v1236 = vld [vmem:[%s1227 + $0x80] sm:$0xff]
        %v1237 = vld [vmem:[%s1227 + $0x88] sm:$0xff]
        %v1238 = vld [vmem:[%s1227 + $0x90] sm:$0xff]
        %v1239 = vld [vmem:[%s1227 + $0x98] sm:$0xff]
        %v1240 = vld [vmem:[%s1227 + $0xa0] sm:$0xff]
        %v1241 = vld [vmem:[%s1227 + $0xa8] sm:$0xff]
        %v1242 = vld [vmem:[%s1227 + $0xb0] sm:$0xff]
        %v1243 = vld [vmem:[%s1227 + $0xb8] sm:$0xff]
        %s1244 = smul.addr %s1225, 8
        %s1245 = scalar_lea.vmem [#allocation4], %s1244
        %v1246 = vld [vmem:[%s1245] sm:$0xff]
        %v1247 = vld [vmem:[%s1245 + $0x8] sm:$0xff]
        %v1248 = vld [vmem:[%s1245 + $0x10] sm:$0xff]
        %v1249 = vld [vmem:[%s1245 + $0x18] sm:$0xff]
        %v1250 = vld [vmem:[%s1245 + $0x20] sm:$0xff]
        %v1251 = vld [vmem:[%s1245 + $0x28] sm:$0xff]
        %v1252 = vld [vmem:[%s1245 + $0x30] sm:$0xff]
        %v1253 = vld [vmem:[%s1245 + $0x38] sm:$0xff]
        %v1254 = vld [vmem:[%s1245 + $0x80] sm:$0xff]
        %v1255 = vld [vmem:[%s1245 + $0x88] sm:$0xff]
        %v1256 = vld [vmem:[%s1245 + $0x90] sm:$0xff]
        %v1257 = vld [vmem:[%s1245 + $0x98] sm:$0xff]
        %v1258 = vld [vmem:[%s1245 + $0xa0] sm:$0xff]
        %v1259 = vld [vmem:[%s1245 + $0xa8] sm:$0xff]
        %v1260 = vld [vmem:[%s1245 + $0xb0] sm:$0xff]
        %v1261 = vld [vmem:[%s1245 + $0xb8] sm:$0xff]
        %v1262 = vadd.f32 %v1228, %v1246
        %v1263 = vadd.f32 %v1229, %v1247
        %v1264 = vadd.f32 %v1230, %v1248
        %v1265 = vadd.f32 %v1231, %v1249
        %v1266 = vadd.f32 %v1232, %v1250
        %v1267 = vadd.f32 %v1233, %v1251
        %v1268 = vadd.f32 %v1234, %v1252
        %v1269 = vadd.f32 %v1235, %v1253
        %v1270 = vadd.f32 %v1236, %v1254
        %v1271 = vadd.f32 %v1237, %v1255
        %v1272 = vadd.f32 %v1238, %v1256
        %v1273 = vadd.f32 %v1239, %v1257
        %v1274 = vadd.f32 %v1240, %v1258
        %v1275 = vadd.f32 %v1241, %v1259
        %v1276 = vadd.f32 %v1242, %v1260
        %v1277 = vadd.f32 %v1243, %v1261
        %v1278 = vld [vmem:[%s326] sm:$0xff]
        %v1279 = vld [vmem:[%s326 + $0x8] sm:$0xff]
        %v1280 = vld [vmem:[%s326 + $0x10] sm:$0xff]
        %v1281 = vld [vmem:[%s326 + $0x18] sm:$0xff]
        %v1282 = vld [vmem:[%s326 + $0x20] sm:$0xff]
        %v1283 = vld [vmem:[%s326 + $0x28] sm:$0xff]
        %v1284 = vld [vmem:[%s326 + $0x30] sm:$0xff]
        %v1285 = vld [vmem:[%s326 + $0x38] sm:$0xff]
        %v1286 = vld [vmem:[%s326 + $0x40] sm:$0xff]
        %v1287 = vld [vmem:[%s326 + $0x48] sm:$0xff]
        %v1288 = vld [vmem:[%s326 + $0x50] sm:$0xff]
        %v1289 = vld [vmem:[%s326 + $0x58] sm:$0xff]
        %v1290 = vld [vmem:[%s326 + $0x60] sm:$0xff]
        %v1291 = vld [vmem:[%s326 + $0x68] sm:$0xff]
        %v1292 = vld [vmem:[%s326 + $0x70] sm:$0xff]
        %v1293 = vld [vmem:[%s326 + $0x78] sm:$0xff]
        %v1294 = vld [vmem:[%s326 + $0x80] sm:$0xff]
        %v1295 = vld [vmem:[%s326 + $0x88] sm:$0xff]
        %v1296 = vld [vmem:[%s326 + $0x90] sm:$0xff]
        %v1297 = vld [vmem:[%s326 + $0x98] sm:$0xff]
        %v1298 = vld [vmem:[%s326 + $0xa0] sm:$0xff]
        %v1299 = vld [vmem:[%s326 + $0xa8] sm:$0xff]
        %v1300 = vld [vmem:[%s326 + $0xb0] sm:$0xff]
        %v1301 = vld [vmem:[%s326 + $0xb8] sm:$0xff]
        %v1302 = vld [vmem:[%s326 + $0xc0] sm:$0xff]
        %v1303 = vld [vmem:[%s326 + $0xc8] sm:$0xff]
        %v1304 = vld [vmem:[%s326 + $0xd0] sm:$0xff]
        %v1305 = vld [vmem:[%s326 + $0xd8] sm:$0xff]
        %v1306 = vld [vmem:[%s326 + $0xe0] sm:$0xff]
        %v1307 = vld [vmem:[%s326 + $0xe8] sm:$0xff]
        %v1308 = vld [vmem:[%s326 + $0xf0] sm:$0xff]
        %v1309 = vld [vmem:[%s326 + $0xf8] sm:$0xff]
        %s1310 = scalar_lea.vmem %s326, 256 [#allocation10]
        %v1311 = vld [vmem:[%s1310] sm:$0xff]
        %v1312 = vld [vmem:[%s1310 + $0x8] sm:$0xff]
        %v1313 = vld [vmem:[%s1310 + $0x10] sm:$0xff]
        %v1314 = vld [vmem:[%s1310 + $0x18] sm:$0xff]
        %v1315 = vld [vmem:[%s1310 + $0x20] sm:$0xff]
        %v1316 = vld [vmem:[%s1310 + $0x28] sm:$0xff]
        %v1317 = vld [vmem:[%s1310 + $0x30] sm:$0xff]
        %v1318 = vld [vmem:[%s1310 + $0x38] sm:$0xff]
        %v1319 = vld [vmem:[%s1310 + $0x40] sm:$0xff]
        %v1320 = vld [vmem:[%s1310 + $0x48] sm:$0xff]
        %v1321 = vld [vmem:[%s1310 + $0x50] sm:$0xff]
        %v1322 = vld [vmem:[%s1310 + $0x58] sm:$0xff]
        %v1323 = vld [vmem:[%s1310 + $0x60] sm:$0xff]
        %v1324 = vld [vmem:[%s1310 + $0x68] sm:$0xff]
        %v1325 = vld [vmem:[%s1310 + $0x70] sm:$0xff]
        %v1326 = vld [vmem:[%s1310 + $0x78] sm:$0xff]
        %v1327 = vld [vmem:[%s1310 + $0x80] sm:$0xff]
        %v1328 = vld [vmem:[%s1310 + $0x88] sm:$0xff]
        %v1329 = vld [vmem:[%s1310 + $0x90] sm:$0xff]
        %v1330 = vld [vmem:[%s1310 + $0x98] sm:$0xff]
        %v1331 = vld [vmem:[%s1310 + $0xa0] sm:$0xff]
        %v1332 = vld [vmem:[%s1310 + $0xa8] sm:$0xff]
        %v1333 = vld [vmem:[%s1310 + $0xb0] sm:$0xff]
        %v1334 = vld [vmem:[%s1310 + $0xb8] sm:$0xff]
        %v1335 = vld [vmem:[%s1310 + $0xc0] sm:$0xff]
        %v1336 = vld [vmem:[%s1310 + $0xc8] sm:$0xff]
        %v1337 = vld [vmem:[%s1310 + $0xd0] sm:$0xff]
        %v1338 = vld [vmem:[%s1310 + $0xd8] sm:$0xff]
        %v1339 = vld [vmem:[%s1310 + $0xe0] sm:$0xff]
        %v1340 = vld [vmem:[%s1310 + $0xe8] sm:$0xff]
        %v1341 = vld [vmem:[%s1310 + $0xf0] sm:$0xff]
        %v1342 = vld [vmem:[%s1310 + $0xf8] sm:$0xff]
        %v1347 = vrot.slane %v1262, 1
        %vm1348 = vcmask 1041409
        %v1349 = vsel %vm1348, %v1270, %v1347
        %v1350 = vrot.slane %v1263, 1
        %v1351 = vsel %vm1348, %v1271, %v1350
        %1354 = vmatprep.subr.mxu0 0.0
        %1355 = vmatpush1.msra.mxu0 %v1326
        %1356 = vmatprep.subr.mxu0 0.0
        %1357 = vmatpush1.msra.mxu0 %v1325
        %1358 = vmatprep.subr.mxu0 0.0
        %1359 = vmatpush1.msra.mxu0 %v1324
        %1360 = vmatprep.subr.mxu0 0.0
        %1361 = vmatpush1.msra.mxu0 %v1323
        %1362 = vmatprep.subr.mxu0 0.0
        %1363 = vmatpush1.msra.mxu0 %v1322
        %1364 = vmatprep.subr.mxu0 0.0
        %1365 = vmatpush1.msra.mxu0 %v1321
        %1366 = vmatprep.subr.mxu0 0.0
        %1367 = vmatpush1.msra.mxu0 %v1320
        %1368 = vmatprep.subr.mxu0 0.0
        %1369 = vmatpush1.msra.mxu0 %v1319
        %1370 = vmatprep.subr.mxu0 0.0
        %1371 = vmatpush1.msra.mxu0 %v1318
        %1372 = vmatprep.subr.mxu0 0.0
        %1373 = vmatpush1.msra.mxu0 %v1317
        %1374 = vmatprep.subr.mxu0 0.0
        %1375 = vmatpush1.msra.mxu0 %v1316
        %1376 = vmatprep.subr.mxu0 0.0
        %1377 = vmatpush1.msra.mxu0 %v1315
        %1378 = vmatprep.subr.mxu0 0.0
        %1379 = vmatpush1.msra.mxu0 %v1314
        %1380 = vmatprep.subr.mxu0 0.0
        %1381 = vmatpush1.msra.mxu0 %v1313
        %1382 = vmatprep.subr.mxu0 0.0
        %1383 = vmatpush1.msra.mxu0 %v1312
        %1384 = vmatprep.subr.mxu0 0.0
        %1385 = vmatpush1.msra.mxu0 %v1311
        %1386 = vmatprep.subr.mxu0 0.0
        %1387 = vmatpush2.msra.mxu0 %v1342
        %1388 = vmatprep.subr.mxu0 0.0
        %1389 = vmatpush2.msra.mxu0 %v1341
        %1390 = vmatprep.subr.mxu0 0.0
        %1391 = vmatpush2.msra.mxu0 %v1340
        %1392 = vmatprep.subr.mxu0 0.0
        %1393 = vmatpush2.msra.mxu0 %v1339
        %1394 = vmatprep.subr.mxu0 0.0
        %1395 = vmatpush2.msra.mxu0 %v1338
        %1396 = vmatprep.subr.mxu0 0.0
        %1397 = vmatpush2.msra.mxu0 %v1337
        %1398 = vmatprep.subr.mxu0 0.0
        %1399 = vmatpush2.msra.mxu0 %v1336
        %1400 = vmatprep.subr.mxu0 0.0
        %1401 = vmatpush2.msra.mxu0 %v1335
        %1402 = vmatprep.subr.mxu0 0.0
        %1403 = vmatpush2.msra.mxu0 %v1334
        %1404 = vmatprep.subr.mxu0 0.0
        %1405 = vmatpush2.msra.mxu0 %v1333
        %1406 = vmatprep.subr.mxu0 0.0
        %1407 = vmatpush2.msra.mxu0 %v1332
        %1408 = vmatprep.subr.mxu0 0.0
        %1409 = vmatpush2.msra.mxu0 %v1331
        %1410 = vmatprep.subr.mxu0 0.0
        %1411 = vmatpush2.msra.mxu0 %v1330
        %1412 = vmatprep.subr.mxu0 0.0
        %1413 = vmatpush2.msra.mxu0 %v1329
        %1414 = vmatprep.subr.mxu0 0.0
        %1415 = vmatpush2.msra.mxu0 %v1328
        %1416 = vmatprep.subr.mxu0 0.0
        %1417 = vmatpush2.msra.mxu0 %v1327
        %1418 = vmatprep.mubr.f32.mxu0 %v1351
        %1419 = vmatmul.mubr.f32.gmra.mxu0 %v1349
        %v1420 = vpop.f32.mrf.mxu0
        %v1421 = vadd.f32 0.0, %v1420
        %v1422 = vpop.f32.mrf.mxu0
        %1423 = vdwg.mxu0
        %v1424 = vrot.slane %v1270, 7
        %v1425 = vsel %vm1348, %v1424, %v1262
        %v1426 = vrot.slane %v1271, 7
        %v1427 = vsel %vm1348, %v1426, %v1263
        %1430 = vmatprep.subr.mxu0 0.0
        %1431 = vmatpush1.msra.mxu0 %v1293
        %1432 = vmatprep.subr.mxu0 0.0
        %1433 = vmatpush1.msra.mxu0 %v1292
        %1434 = vmatprep.subr.mxu0 0.0
        %1435 = vmatpush1.msra.mxu0 %v1291
        %1436 = vmatprep.subr.mxu0 0.0
        %1437 = vmatpush1.msra.mxu0 %v1290
        %1438 = vmatprep.subr.mxu0 0.0
        %1439 = vmatpush1.msra.mxu0 %v1289
        %1440 = vmatprep.subr.mxu0 0.0
        %1441 = vmatpush1.msra.mxu0 %v1288
        %1442 = vmatprep.subr.mxu0 0.0
        %1443 = vmatpush1.msra.mxu0 %v1287
        %1444 = vmatprep.subr.mxu0 0.0
        %1445 = vmatpush1.msra.mxu0 %v1286
        %1446 = vmatprep.subr.mxu0 0.0
        %1447 = vmatpush1.msra.mxu0 %v1285
        %1448 = vmatprep.subr.mxu0 0.0
        %1449 = vmatpush1.msra.mxu0 %v1284
        %1450 = vmatprep.subr.mxu0 0.0
        %1451 = vmatpush1.msra.mxu0 %v1283
        %1452 = vmatprep.subr.mxu0 0.0
        %1453 = vmatpush1.msra.mxu0 %v1282
        %1454 = vmatprep.subr.mxu0 0.0
        %1455 = vmatpush1.msra.mxu0 %v1281
        %1456 = vmatprep.subr.mxu0 0.0
        %1457 = vmatpush1.msra.mxu0 %v1280
        %1458 = vmatprep.subr.mxu0 0.0
        %1459 = vmatpush1.msra.mxu0 %v1279
        %1460 = vmatprep.subr.mxu0 0.0
        %1461 = vmatpush1.msra.mxu0 %v1278
        %1462 = vmatprep.subr.mxu0 0.0
        %1463 = vmatpush2.msra.mxu0 %v1309
        %1464 = vmatprep.subr.mxu0 0.0
        %1465 = vmatpush2.msra.mxu0 %v1308
        %1466 = vmatprep.subr.mxu0 0.0
        %1467 = vmatpush2.msra.mxu0 %v1307
        %1468 = vmatprep.subr.mxu0 0.0
        %1469 = vmatpush2.msra.mxu0 %v1306
        %1470 = vmatprep.subr.mxu0 0.0
        %1471 = vmatpush2.msra.mxu0 %v1305
        %1472 = vmatprep.subr.mxu0 0.0
        %1473 = vmatpush2.msra.mxu0 %v1304
        %1474 = vmatprep.subr.mxu0 0.0
        %1475 = vmatpush2.msra.mxu0 %v1303
        %1476 = vmatprep.subr.mxu0 0.0
        %1477 = vmatpush2.msra.mxu0 %v1302
        %1478 = vmatprep.subr.mxu0 0.0
        %1479 = vmatpush2.msra.mxu0 %v1301
        %1480 = vmatprep.subr.mxu0 0.0
        %1481 = vmatpush2.msra.mxu0 %v1300
        %1482 = vmatprep.subr.mxu0 0.0
        %1483 = vmatpush2.msra.mxu0 %v1299
        %1484 = vmatprep.subr.mxu0 0.0
        %1485 = vmatpush2.msra.mxu0 %v1298
        %1486 = vmatprep.subr.mxu0 0.0
        %1487 = vmatpush2.msra.mxu0 %v1297
        %1488 = vmatprep.subr.mxu0 0.0
        %1489 = vmatpush2.msra.mxu0 %v1296
        %1490 = vmatprep.subr.mxu0 0.0
        %1491 = vmatpush2.msra.mxu0 %v1295
        %1492 = vmatprep.subr.mxu0 0.0
        %1493 = vmatpush2.msra.mxu0 %v1294
        %1494 = vmatprep.mubr.f32.mxu0 %v1427
        %1495 = vmatmul.mubr.f32.gmra.mxu0 %v1425
        %v1496 = vpop.f32.mrf.mxu0
        %v1497 = vadd.f32 %v1421, %v1496
        %v1498 = vpop.f32.mrf.mxu0
        %1499 = vdwg.mxu0
        %s1500 = scalar_lea.vmem %s326, 512 [#allocation10]
        %v1501 = vld [vmem:[%s1500] sm:$0xff]
        %v1502 = vld [vmem:[%s1500 + $0x8] sm:$0xff]
        %v1503 = vld [vmem:[%s1500 + $0x10] sm:$0xff]
        %v1504 = vld [vmem:[%s1500 + $0x18] sm:$0xff]
        %v1505 = vld [vmem:[%s1500 + $0x20] sm:$0xff]
        %v1506 = vld [vmem:[%s1500 + $0x28] sm:$0xff]
        %v1507 = vld [vmem:[%s1500 + $0x30] sm:$0xff]
        %v1508 = vld [vmem:[%s1500 + $0x38] sm:$0xff]
        %v1509 = vld [vmem:[%s1500 + $0x40] sm:$0xff]
        %v1510 = vld [vmem:[%s1500 + $0x48] sm:$0xff]
        %v1511 = vld [vmem:[%s1500 + $0x50] sm:$0xff]
        %v1512 = vld [vmem:[%s1500 + $0x58] sm:$0xff]
        %v1513 = vld [vmem:[%s1500 + $0x60] sm:$0xff]
        %v1514 = vld [vmem:[%s1500 + $0x68] sm:$0xff]
        %v1515 = vld [vmem:[%s1500 + $0x70] sm:$0xff]
        %v1516 = vld [vmem:[%s1500 + $0x78] sm:$0xff]
        %v1517 = vld [vmem:[%s1500 + $0x80] sm:$0xff]
        %v1518 = vld [vmem:[%s1500 + $0x88] sm:$0xff]
        %v1519 = vld [vmem:[%s1500 + $0x90] sm:$0xff]
        %v1520 = vld [vmem:[%s1500 + $0x98] sm:$0xff]
        %v1521 = vld [vmem:[%s1500 + $0xa0] sm:$0xff]
        %v1522 = vld [vmem:[%s1500 + $0xa8] sm:$0xff]
        %v1523 = vld [vmem:[%s1500 + $0xb0] sm:$0xff]
        %v1524 = vld [vmem:[%s1500 + $0xb8] sm:$0xff]
        %v1525 = vld [vmem:[%s1500 + $0xc0] sm:$0xff]
        %v1526 = vld [vmem:[%s1500 + $0xc8] sm:$0xff]
        %v1527 = vld [vmem:[%s1500 + $0xd0] sm:$0xff]
        %v1528 = vld [vmem:[%s1500 + $0xd8] sm:$0xff]
        %v1529 = vld [vmem:[%s1500 + $0xe0] sm:$0xff]
        %v1530 = vld [vmem:[%s1500 + $0xe8] sm:$0xff]
        %v1531 = vld [vmem:[%s1500 + $0xf0] sm:$0xff]
        %v1532 = vld [vmem:[%s1500 + $0xf8] sm:$0xff]
        %v1533 = vrot.slane %v1262, 2
        %v1534 = vrot.slane %v1270, 1
        %v1535 = vsel %vm1348, %v1534, %v1533
        %v1536 = vrot.slane %v1263, 2
        %v1537 = vrot.slane %v1271, 1
        %v1538 = vsel %vm1348, %v1537, %v1536
        %1541 = vmatprep.subr.mxu0 0.0
        %1542 = vmatpush1.msra.mxu0 %v1516
        %1543 = vmatprep.subr.mxu0 0.0
        %1544 = vmatpush1.msra.mxu0 %v1515
        %1545 = vmatprep.subr.mxu0 0.0
        %1546 = vmatpush1.msra.mxu0 %v1514
        %1547 = vmatprep.subr.mxu0 0.0
        %1548 = vmatpush1.msra.mxu0 %v1513
        %1549 = vmatprep.subr.mxu0 0.0
        %1550 = vmatpush1.msra.mxu0 %v1512
        %1551 = vmatprep.subr.mxu0 0.0
        %1552 = vmatpush1.msra.mxu0 %v1511
        %1553 = vmatprep.subr.mxu0 0.0
        %1554 = vmatpush1.msra.mxu0 %v1510
        %1555 = vmatprep.subr.mxu0 0.0
        %1556 = vmatpush1.msra.mxu0 %v1509
        %1557 = vmatprep.subr.mxu0 0.0
        %1558 = vmatpush1.msra.mxu0 %v1508
        %1559 = vmatprep.subr.mxu0 0.0
        %1560 = vmatpush1.msra.mxu0 %v1507
        %1561 = vmatprep.subr.mxu0 0.0
        %1562 = vmatpush1.msra.mxu0 %v1506
        %1563 = vmatprep.subr.mxu0 0.0
        %1564 = vmatpush1.msra.mxu0 %v1505
        %1565 = vmatprep.subr.mxu0 0.0
        %1566 = vmatpush1.msra.mxu0 %v1504
        %1567 = vmatprep.subr.mxu0 0.0
        %1568 = vmatpush1.msra.mxu0 %v1503
        %1569 = vmatprep.subr.mxu0 0.0
        %1570 = vmatpush1.msra.mxu0 %v1502
        %1571 = vmatprep.subr.mxu0 0.0
        %1572 = vmatpush1.msra.mxu0 %v1501
        %1573 = vmatprep.subr.mxu0 0.0
        %1574 = vmatpush2.msra.mxu0 %v1532
        %1575 = vmatprep.subr.mxu0 0.0
        %1576 = vmatpush2.msra.mxu0 %v1531
        %1577 = vmatprep.subr.mxu0 0.0
        %1578 = vmatpush2.msra.mxu0 %v1530
        %1579 = vmatprep.subr.mxu0 0.0
        %1580 = vmatpush2.msra.mxu0 %v1529
        %1581 = vmatprep.subr.mxu0 0.0
        %1582 = vmatpush2.msra.mxu0 %v1528
        %1583 = vmatprep.subr.mxu0 0.0
        %1584 = vmatpush2.msra.mxu0 %v1527
        %1585 = vmatprep.subr.mxu0 0.0
        %1586 = vmatpush2.msra.mxu0 %v1526
        %1587 = vmatprep.subr.mxu0 0.0
        %1588 = vmatpush2.msra.mxu0 %v1525
        %1589 = vmatprep.subr.mxu0 0.0
        %1590 = vmatpush2.msra.mxu0 %v1524
        %1591 = vmatprep.subr.mxu0 0.0
        %1592 = vmatpush2.msra.mxu0 %v1523
        %1593 = vmatprep.subr.mxu0 0.0
        %1594 = vmatpush2.msra.mxu0 %v1522
        %1595 = vmatprep.subr.mxu0 0.0
        %1596 = vmatpush2.msra.mxu0 %v1521
        %1597 = vmatprep.subr.mxu0 0.0
        %1598 = vmatpush2.msra.mxu0 %v1520
        %1599 = vmatprep.subr.mxu0 0.0
        %1600 = vmatpush2.msra.mxu0 %v1519
        %1601 = vmatprep.subr.mxu0 0.0
        %1602 = vmatpush2.msra.mxu0 %v1518
        %1603 = vmatprep.subr.mxu0 0.0
        %1604 = vmatpush2.msra.mxu0 %v1517
        %1605 = vmatprep.mubr.f32.mxu0 %v1538
        %1606 = vmatmul.mubr.f32.gmra.mxu0 %v1535
        %v1607 = vpop.f32.mrf.mxu0
        %v1608 = vadd.f32 0.0, %v1607
        %v1609 = vpop.f32.mrf.mxu0
        %1610 = vdwg.mxu0
        %v1611 = vadd.f32 %v1497, %v1608
        %s1612 = scalar_lea.vmem %s326, 768 [#allocation10]
        %v1613 = vld [vmem:[%s1612] sm:$0xff]
        %v1614 = vld [vmem:[%s1612 + $0x8] sm:$0xff]
        %v1615 = vld [vmem:[%s1612 + $0x10] sm:$0xff]
        %v1616 = vld [vmem:[%s1612 + $0x18] sm:$0xff]
        %v1617 = vld [vmem:[%s1612 + $0x20] sm:$0xff]
        %v1618 = vld [vmem:[%s1612 + $0x28] sm:$0xff]
        %v1619 = vld [vmem:[%s1612 + $0x30] sm:$0xff]
        %v1620 = vld [vmem:[%s1612 + $0x38] sm:$0xff]
        %v1621 = vld [vmem:[%s1612 + $0x40] sm:$0xff]
        %v1622 = vld [vmem:[%s1612 + $0x48] sm:$0xff]
        %v1623 = vld [vmem:[%s1612 + $0x50] sm:$0xff]
        %v1624 = vld [vmem:[%s1612 + $0x58] sm:$0xff]
        %v1625 = vld [vmem:[%s1612 + $0x60] sm:$0xff]
        %v1626 = vld [vmem:[%s1612 + $0x68] sm:$0xff]
        %v1627 = vld [vmem:[%s1612 + $0x70] sm:$0xff]
        %v1628 = vld [vmem:[%s1612 + $0x78] sm:$0xff]
        %v1629 = vld [vmem:[%s1612 + $0x80] sm:$0xff]
        %v1630 = vld [vmem:[%s1612 + $0x88] sm:$0xff]
        %v1631 = vld [vmem:[%s1612 + $0x90] sm:$0xff]
        %v1632 = vld [vmem:[%s1612 + $0x98] sm:$0xff]
        %v1633 = vld [vmem:[%s1612 + $0xa0] sm:$0xff]
        %v1634 = vld [vmem:[%s1612 + $0xa8] sm:$0xff]
        %v1635 = vld [vmem:[%s1612 + $0xb0] sm:$0xff]
        %v1636 = vld [vmem:[%s1612 + $0xb8] sm:$0xff]
        %v1637 = vld [vmem:[%s1612 + $0xc0] sm:$0xff]
        %v1638 = vld [vmem:[%s1612 + $0xc8] sm:$0xff]
        %v1639 = vld [vmem:[%s1612 + $0xd0] sm:$0xff]
        %v1640 = vld [vmem:[%s1612 + $0xd8] sm:$0xff]
        %v1641 = vld [vmem:[%s1612 + $0xe0] sm:$0xff]
        %v1642 = vld [vmem:[%s1612 + $0xe8] sm:$0xff]
        %v1643 = vld [vmem:[%s1612 + $0xf0] sm:$0xff]
        %v1644 = vld [vmem:[%s1612 + $0xf8] sm:$0xff]
        %v1645 = vrot.slane %v1262, 3
        %v1646 = vrot.slane %v1270, 2
        %v1647 = vsel %vm1348, %v1646, %v1645
        %v1648 = vrot.slane %v1263, 3
        %v1649 = vrot.slane %v1271, 2
        %v1650 = vsel %vm1348, %v1649, %v1648
        %1653 = vmatprep.subr.mxu0 0.0
        %1654 = vmatpush1.msra.mxu0 %v1628
        %1655 = vmatprep.subr.mxu0 0.0
        %1656 = vmatpush1.msra.mxu0 %v1627
        %1657 = vmatprep.subr.mxu0 0.0
        %1658 = vmatpush1.msra.mxu0 %v1626
        %1659 = vmatprep.subr.mxu0 0.0
        %1660 = vmatpush1.msra.mxu0 %v1625
        %1661 = vmatprep.subr.mxu0 0.0
        %1662 = vmatpush1.msra.mxu0 %v1624
        %1663 = vmatprep.subr.mxu0 0.0
        %1664 = vmatpush1.msra.mxu0 %v1623
        %1665 = vmatprep.subr.mxu0 0.0
        %1666 = vmatpush1.msra.mxu0 %v1622
        %1667 = vmatprep.subr.mxu0 0.0
        %1668 = vmatpush1.msra.mxu0 %v1621
        %1669 = vmatprep.subr.mxu0 0.0
        %1670 = vmatpush1.msra.mxu0 %v1620
        %1671 = vmatprep.subr.mxu0 0.0
        %1672 = vmatpush1.msra.mxu0 %v1619
        %1673 = vmatprep.subr.mxu0 0.0
        %1674 = vmatpush1.msra.mxu0 %v1618
        %1675 = vmatprep.subr.mxu0 0.0
        %1676 = vmatpush1.msra.mxu0 %v1617
        %1677 = vmatprep.subr.mxu0 0.0
        %1678 = vmatpush1.msra.mxu0 %v1616
        %1679 = vmatprep.subr.mxu0 0.0
        %1680 = vmatpush1.msra.mxu0 %v1615
        %1681 = vmatprep.subr.mxu0 0.0
        %1682 = vmatpush1.msra.mxu0 %v1614
        %1683 = vmatprep.subr.mxu0 0.0
        %1684 = vmatpush1.msra.mxu0 %v1613
        %1685 = vmatprep.subr.mxu0 0.0
        %1686 = vmatpush2.msra.mxu0 %v1644
        %1687 = vmatprep.subr.mxu0 0.0
        %1688 = vmatpush2.msra.mxu0 %v1643
        %1689 = vmatprep.subr.mxu0 0.0
        %1690 = vmatpush2.msra.mxu0 %v1642
        %1691 = vmatprep.subr.mxu0 0.0
        %1692 = vmatpush2.msra.mxu0 %v1641
        %1693 = vmatprep.subr.mxu0 0.0
        %1694 = vmatpush2.msra.mxu0 %v1640
        %1695 = vmatprep.subr.mxu0 0.0
        %1696 = vmatpush2.msra.mxu0 %v1639
        %1697 = vmatprep.subr.mxu0 0.0
        %1698 = vmatpush2.msra.mxu0 %v1638
        %1699 = vmatprep.subr.mxu0 0.0
        %1700 = vmatpush2.msra.mxu0 %v1637
        %1701 = vmatprep.subr.mxu0 0.0
        %1702 = vmatpush2.msra.mxu0 %v1636
        %1703 = vmatprep.subr.mxu0 0.0
        %1704 = vmatpush2.msra.mxu0 %v1635
        %1705 = vmatprep.subr.mxu0 0.0
        %1706 = vmatpush2.msra.mxu0 %v1634
        %1707 = vmatprep.subr.mxu0 0.0
        %1708 = vmatpush2.msra.mxu0 %v1633
        %1709 = vmatprep.subr.mxu0 0.0
        %1710 = vmatpush2.msra.mxu0 %v1632
        %1711 = vmatprep.subr.mxu0 0.0
        %1712 = vmatpush2.msra.mxu0 %v1631
        %1713 = vmatprep.subr.mxu0 0.0
        %1714 = vmatpush2.msra.mxu0 %v1630
        %1715 = vmatprep.subr.mxu0 0.0
        %1716 = vmatpush2.msra.mxu0 %v1629
        %1717 = vmatprep.mubr.f32.mxu0 %v1650
        %1718 = vmatmul.mubr.f32.gmra.mxu0 %v1647
        %v1719 = vpop.f32.mrf.mxu0
        %v1720 = vadd.f32 0.0, %v1719
        %v1721 = vpop.f32.mrf.mxu0
        %1722 = vdwg.mxu0
        %v1723 = vadd.f32 %v1611, %v1720
        %s1724 = scalar_lea.vmem %s326, 1024 [#allocation10]
        %v1725 = vld [vmem:[%s1724] sm:$0xff]
        %v1726 = vld [vmem:[%s1724 + $0x8] sm:$0xff]
        %v1727 = vld [vmem:[%s1724 + $0x10] sm:$0xff]
        %v1728 = vld [vmem:[%s1724 + $0x18] sm:$0xff]
        %v1729 = vld [vmem:[%s1724 + $0x20] sm:$0xff]
        %v1730 = vld [vmem:[%s1724 + $0x28] sm:$0xff]
        %v1731 = vld [vmem:[%s1724 + $0x30] sm:$0xff]
        %v1732 = vld [vmem:[%s1724 + $0x38] sm:$0xff]
        %v1733 = vld [vmem:[%s1724 + $0x40] sm:$0xff]
        %v1734 = vld [vmem:[%s1724 + $0x48] sm:$0xff]
        %v1735 = vld [vmem:[%s1724 + $0x50] sm:$0xff]
        %v1736 = vld [vmem:[%s1724 + $0x58] sm:$0xff]
        %v1737 = vld [vmem:[%s1724 + $0x60] sm:$0xff]
        %v1738 = vld [vmem:[%s1724 + $0x68] sm:$0xff]
        %v1739 = vld [vmem:[%s1724 + $0x70] sm:$0xff]
        %v1740 = vld [vmem:[%s1724 + $0x78] sm:$0xff]
        %v1741 = vld [vmem:[%s1724 + $0x80] sm:$0xff]
        %v1742 = vld [vmem:[%s1724 + $0x88] sm:$0xff]
        %v1743 = vld [vmem:[%s1724 + $0x90] sm:$0xff]
        %v1744 = vld [vmem:[%s1724 + $0x98] sm:$0xff]
        %v1745 = vld [vmem:[%s1724 + $0xa0] sm:$0xff]
        %v1746 = vld [vmem:[%s1724 + $0xa8] sm:$0xff]
        %v1747 = vld [vmem:[%s1724 + $0xb0] sm:$0xff]
        %v1748 = vld [vmem:[%s1724 + $0xb8] sm:$0xff]
        %v1749 = vld [vmem:[%s1724 + $0xc0] sm:$0xff]
        %v1750 = vld [vmem:[%s1724 + $0xc8] sm:$0xff]
        %v1751 = vld [vmem:[%s1724 + $0xd0] sm:$0xff]
        %v1752 = vld [vmem:[%s1724 + $0xd8] sm:$0xff]
        %v1753 = vld [vmem:[%s1724 + $0xe0] sm:$0xff]
        %v1754 = vld [vmem:[%s1724 + $0xe8] sm:$0xff]
        %v1755 = vld [vmem:[%s1724 + $0xf0] sm:$0xff]
        %v1756 = vld [vmem:[%s1724 + $0xf8] sm:$0xff]
        %v1757 = vrot.slane %v1262, 4
        %v1758 = vrot.slane %v1270, 3
        %v1759 = vsel %vm1348, %v1758, %v1757
        %v1760 = vrot.slane %v1263, 4
        %v1761 = vrot.slane %v1271, 3
        %v1762 = vsel %vm1348, %v1761, %v1760
        %1765 = vmatprep.subr.mxu0 0.0
        %1766 = vmatpush1.msra.mxu0 %v1740
        %1767 = vmatprep.subr.mxu0 0.0
        %1768 = vmatpush1.msra.mxu0 %v1739
        %1769 = vmatprep.subr.mxu0 0.0
        %1770 = vmatpush1.msra.mxu0 %v1738
        %1771 = vmatprep.subr.mxu0 0.0
        %1772 = vmatpush1.msra.mxu0 %v1737
        %1773 = vmatprep.subr.mxu0 0.0
        %1774 = vmatpush1.msra.mxu0 %v1736
        %1775 = vmatprep.subr.mxu0 0.0
        %1776 = vmatpush1.msra.mxu0 %v1735
        %1777 = vmatprep.subr.mxu0 0.0
        %1778 = vmatpush1.msra.mxu0 %v1734
        %1779 = vmatprep.subr.mxu0 0.0
        %1780 = vmatpush1.msra.mxu0 %v1733
        %1781 = vmatprep.subr.mxu0 0.0
        %1782 = vmatpush1.msra.mxu0 %v1732
        %1783 = vmatprep.subr.mxu0 0.0
        %1784 = vmatpush1.msra.mxu0 %v1731
        %1785 = vmatprep.subr.mxu0 0.0
        %1786 = vmatpush1.msra.mxu0 %v1730
        %1787 = vmatprep.subr.mxu0 0.0
        %1788 = vmatpush1.msra.mxu0 %v1729
        %1789 = vmatprep.subr.mxu0 0.0
        %1790 = vmatpush1.msra.mxu0 %v1728
        %1791 = vmatprep.subr.mxu0 0.0
        %1792 = vmatpush1.msra.mxu0 %v1727
        %1793 = vmatprep.subr.mxu0 0.0
        %1794 = vmatpush1.msra.mxu0 %v1726
        %1795 = vmatprep.subr.mxu0 0.0
        %1796 = vmatpush1.msra.mxu0 %v1725
        %1797 = vmatprep.subr.mxu0 0.0
        %1798 = vmatpush2.msra.mxu0 %v1756
        %1799 = vmatprep.subr.mxu0 0.0
        %1800 = vmatpush2.msra.mxu0 %v1755
        %1801 = vmatprep.subr.mxu0 0.0
        %1802 = vmatpush2.msra.mxu0 %v1754
        %1803 = vmatprep.subr.mxu0 0.0
        %1804 = vmatpush2.msra.mxu0 %v1753
        %1805 = vmatprep.subr.mxu0 0.0
        %1806 = vmatpush2.msra.mxu0 %v1752
        %1807 = vmatprep.subr.mxu0 0.0
        %1808 = vmatpush2.msra.mxu0 %v1751
        %1809 = vmatprep.subr.mxu0 0.0
        %1810 = vmatpush2.msra.mxu0 %v1750
        %1811 = vmatprep.subr.mxu0 0.0
        %1812 = vmatpush2.msra.mxu0 %v1749
        %1813 = vmatprep.subr.mxu0 0.0
        %1814 = vmatpush2.msra.mxu0 %v1748
        %1815 = vmatprep.subr.mxu0 0.0
        %1816 = vmatpush2.msra.mxu0 %v1747
        %1817 = vmatprep.subr.mxu0 0.0
        %1818 = vmatpush2.msra.mxu0 %v1746
        %1819 = vmatprep.subr.mxu0 0.0
        %1820 = vmatpush2.msra.mxu0 %v1745
        %1821 = vmatprep.subr.mxu0 0.0
        %1822 = vmatpush2.msra.mxu0 %v1744
        %1823 = vmatprep.subr.mxu0 0.0
        %1824 = vmatpush2.msra.mxu0 %v1743
        %1825 = vmatprep.subr.mxu0 0.0
        %1826 = vmatpush2.msra.mxu0 %v1742
        %1827 = vmatprep.subr.mxu0 0.0
        %1828 = vmatpush2.msra.mxu0 %v1741
        %1829 = vmatprep.mubr.f32.mxu0 %v1762
        %1830 = vmatmul.mubr.f32.gmra.mxu0 %v1759
        %v1831 = vpop.f32.mrf.mxu0
        %v1832 = vadd.f32 0.0, %v1831
        %v1833 = vpop.f32.mrf.mxu0
        %1834 = vdwg.mxu0
        %v1835 = vadd.f32 %v1723, %v1832
        %s1836 = scalar_lea.vmem %s326, 1280 [#allocation10]
        %v1837 = vld [vmem:[%s1836] sm:$0xff]
        %v1838 = vld [vmem:[%s1836 + $0x8] sm:$0xff]
        %v1839 = vld [vmem:[%s1836 + $0x10] sm:$0xff]
        %v1840 = vld [vmem:[%s1836 + $0x18] sm:$0xff]
        %v1841 = vld [vmem:[%s1836 + $0x20] sm:$0xff]
        %v1842 = vld [vmem:[%s1836 + $0x28] sm:$0xff]
        %v1843 = vld [vmem:[%s1836 + $0x30] sm:$0xff]
        %v1844 = vld [vmem:[%s1836 + $0x38] sm:$0xff]
        %v1845 = vld [vmem:[%s1836 + $0x40] sm:$0xff]
        %v1846 = vld [vmem:[%s1836 + $0x48] sm:$0xff]
        %v1847 = vld [vmem:[%s1836 + $0x50] sm:$0xff]
        %v1848 = vld [vmem:[%s1836 + $0x58] sm:$0xff]
        %v1849 = vld [vmem:[%s1836 + $0x60] sm:$0xff]
        %v1850 = vld [vmem:[%s1836 + $0x68] sm:$0xff]
        %v1851 = vld [vmem:[%s1836 + $0x70] sm:$0xff]
        %v1852 = vld [vmem:[%s1836 + $0x78] sm:$0xff]
        %v1853 = vld [vmem:[%s1836 + $0x80] sm:$0xff]
        %v1854 = vld [vmem:[%s1836 + $0x88] sm:$0xff]
        %v1855 = vld [vmem:[%s1836 + $0x90] sm:$0xff]
        %v1856 = vld [vmem:[%s1836 + $0x98] sm:$0xff]
        %v1857 = vld [vmem:[%s1836 + $0xa0] sm:$0xff]
        %v1858 = vld [vmem:[%s1836 + $0xa8] sm:$0xff]
        %v1859 = vld [vmem:[%s1836 + $0xb0] sm:$0xff]
        %v1860 = vld [vmem:[%s1836 + $0xb8] sm:$0xff]
        %v1861 = vld [vmem:[%s1836 + $0xc0] sm:$0xff]
        %v1862 = vld [vmem:[%s1836 + $0xc8] sm:$0xff]
        %v1863 = vld [vmem:[%s1836 + $0xd0] sm:$0xff]
        %v1864 = vld [vmem:[%s1836 + $0xd8] sm:$0xff]
        %v1865 = vld [vmem:[%s1836 + $0xe0] sm:$0xff]
        %v1866 = vld [vmem:[%s1836 + $0xe8] sm:$0xff]
        %v1867 = vld [vmem:[%s1836 + $0xf0] sm:$0xff]
        %v1868 = vld [vmem:[%s1836 + $0xf8] sm:$0xff]
        %v1869 = vrot.slane %v1262, 5
        %v1870 = vrot.slane %v1270, 4
        %v1871 = vsel %vm1348, %v1870, %v1869
        %v1872 = vrot.slane %v1263, 5
        %v1873 = vrot.slane %v1271, 4
        %v1874 = vsel %vm1348, %v1873, %v1872
        %1877 = vmatprep.subr.mxu0 0.0
        %1878 = vmatpush1.msra.mxu0 %v1852
        %1879 = vmatprep.subr.mxu0 0.0
        %1880 = vmatpush1.msra.mxu0 %v1851
        %1881 = vmatprep.subr.mxu0 0.0
        %1882 = vmatpush1.msra.mxu0 %v1850
        %1883 = vmatprep.subr.mxu0 0.0
        %1884 = vmatpush1.msra.mxu0 %v1849
        %1885 = vmatprep.subr.mxu0 0.0
        %1886 = vmatpush1.msra.mxu0 %v1848
        %1887 = vmatprep.subr.mxu0 0.0
        %1888 = vmatpush1.msra.mxu0 %v1847
        %1889 = vmatprep.subr.mxu0 0.0
        %1890 = vmatpush1.msra.mxu0 %v1846
        %1891 = vmatprep.subr.mxu0 0.0
        %1892 = vmatpush1.msra.mxu0 %v1845
        %1893 = vmatprep.subr.mxu0 0.0
        %1894 = vmatpush1.msra.mxu0 %v1844
        %1895 = vmatprep.subr.mxu0 0.0
        %1896 = vmatpush1.msra.mxu0 %v1843
        %1897 = vmatprep.subr.mxu0 0.0
        %1898 = vmatpush1.msra.mxu0 %v1842
        %1899 = vmatprep.subr.mxu0 0.0
        %1900 = vmatpush1.msra.mxu0 %v1841
        %1901 = vmatprep.subr.mxu0 0.0
        %1902 = vmatpush1.msra.mxu0 %v1840
        %1903 = vmatprep.subr.mxu0 0.0
        %1904 = vmatpush1.msra.mxu0 %v1839
        %1905 = vmatprep.subr.mxu0 0.0
        %1906 = vmatpush1.msra.mxu0 %v1838
        %1907 = vmatprep.subr.mxu0 0.0
        %1908 = vmatpush1.msra.mxu0 %v1837
        %1909 = vmatprep.subr.mxu0 0.0
        %1910 = vmatpush2.msra.mxu0 %v1868
        %1911 = vmatprep.subr.mxu0 0.0
        %1912 = vmatpush2.msra.mxu0 %v1867
        %1913 = vmatprep.subr.mxu0 0.0
        %1914 = vmatpush2.msra.mxu0 %v1866
        %1915 = vmatprep.subr.mxu0 0.0
        %1916 = vmatpush2.msra.mxu0 %v1865
        %1917 = vmatprep.subr.mxu0 0.0
        %1918 = vmatpush2.msra.mxu0 %v1864
        %1919 = vmatprep.subr.mxu0 0.0
        %1920 = vmatpush2.msra.mxu0 %v1863
        %1921 = vmatprep.subr.mxu0 0.0
        %1922 = vmatpush2.msra.mxu0 %v1862
        %1923 = vmatprep.subr.mxu0 0.0
        %1924 = vmatpush2.msra.mxu0 %v1861
        %1925 = vmatprep.subr.mxu0 0.0
        %1926 = vmatpush2.msra.mxu0 %v1860
        %1927 = vmatprep.subr.mxu0 0.0
        %1928 = vmatpush2.msra.mxu0 %v1859
        %1929 = vmatprep.subr.mxu0 0.0
        %1930 = vmatpush2.msra.mxu0 %v1858
        %1931 = vmatprep.subr.mxu0 0.0
        %1932 = vmatpush2.msra.mxu0 %v1857
        %1933 = vmatprep.subr.mxu0 0.0
        %1934 = vmatpush2.msra.mxu0 %v1856
        %1935 = vmatprep.subr.mxu0 0.0
        %1936 = vmatpush2.msra.mxu0 %v1855
        %1937 = vmatprep.subr.mxu0 0.0
        %1938 = vmatpush2.msra.mxu0 %v1854
        %1939 = vmatprep.subr.mxu0 0.0
        %1940 = vmatpush2.msra.mxu0 %v1853
        %1941 = vmatprep.mubr.f32.mxu0 %v1874
        %1942 = vmatmul.mubr.f32.gmra.mxu0 %v1871
        %v1943 = vpop.f32.mrf.mxu0
        %v1944 = vadd.f32 0.0, %v1943
        %v1945 = vpop.f32.mrf.mxu0
        %1946 = vdwg.mxu0
        %v1947 = vadd.f32 %v1835, %v1944
        %s1948 = scalar_lea.vmem %s326, 1536 [#allocation10]
        %v1949 = vld [vmem:[%s1948] sm:$0xff]
        %v1950 = vld [vmem:[%s1948 + $0x8] sm:$0xff]
        %v1951 = vld [vmem:[%s1948 + $0x10] sm:$0xff]
        %v1952 = vld [vmem:[%s1948 + $0x18] sm:$0xff]
        %v1953 = vld [vmem:[%s1948 + $0x20] sm:$0xff]
        %v1954 = vld [vmem:[%s1948 + $0x28] sm:$0xff]
        %v1955 = vld [vmem:[%s1948 + $0x30] sm:$0xff]
        %v1956 = vld [vmem:[%s1948 + $0x38] sm:$0xff]
        %v1957 = vld [vmem:[%s1948 + $0x40] sm:$0xff]
        %v1958 = vld [vmem:[%s1948 + $0x48] sm:$0xff]
        %v1959 = vld [vmem:[%s1948 + $0x50] sm:$0xff]
        %v1960 = vld [vmem:[%s1948 + $0x58] sm:$0xff]
        %v1961 = vld [vmem:[%s1948 + $0x60] sm:$0xff]
        %v1962 = vld [vmem:[%s1948 + $0x68] sm:$0xff]
        %v1963 = vld [vmem:[%s1948 + $0x70] sm:$0xff]
        %v1964 = vld [vmem:[%s1948 + $0x78] sm:$0xff]
        %v1965 = vld [vmem:[%s1948 + $0x80] sm:$0xff]
        %v1966 = vld [vmem:[%s1948 + $0x88] sm:$0xff]
        %v1967 = vld [vmem:[%s1948 + $0x90] sm:$0xff]
        %v1968 = vld [vmem:[%s1948 + $0x98] sm:$0xff]
        %v1969 = vld [vmem:[%s1948 + $0xa0] sm:$0xff]
        %v1970 = vld [vmem:[%s1948 + $0xa8] sm:$0xff]
        %v1971 = vld [vmem:[%s1948 + $0xb0] sm:$0xff]
        %v1972 = vld [vmem:[%s1948 + $0xb8] sm:$0xff]
        %v1973 = vld [vmem:[%s1948 + $0xc0] sm:$0xff]
        %v1974 = vld [vmem:[%s1948 + $0xc8] sm:$0xff]
        %v1975 = vld [vmem:[%s1948 + $0xd0] sm:$0xff]
        %v1976 = vld [vmem:[%s1948 + $0xd8] sm:$0xff]
        %v1977 = vld [vmem:[%s1948 + $0xe0] sm:$0xff]
        %v1978 = vld [vmem:[%s1948 + $0xe8] sm:$0xff]
        %v1979 = vld [vmem:[%s1948 + $0xf0] sm:$0xff]
        %v1980 = vld [vmem:[%s1948 + $0xf8] sm:$0xff]
        %v1981 = vrot.slane %v1262, 6
        %v1982 = vrot.slane %v1270, 5
        %v1983 = vsel %vm1348, %v1982, %v1981
        %v1984 = vrot.slane %v1263, 6
        %v1985 = vrot.slane %v1271, 5
        %v1986 = vsel %vm1348, %v1985, %v1984
        %1989 = vmatprep.subr.mxu0 0.0
        %1990 = vmatpush1.msra.mxu0 %v1964
        %1991 = vmatprep.subr.mxu0 0.0
        %1992 = vmatpush1.msra.mxu0 %v1963
        %1993 = vmatprep.subr.mxu0 0.0
        %1994 = vmatpush1.msra.mxu0 %v1962
        %1995 = vmatprep.subr.mxu0 0.0
        %1996 = vmatpush1.msra.mxu0 %v1961
        %1997 = vmatprep.subr.mxu0 0.0
        %1998 = vmatpush1.msra.mxu0 %v1960
        %1999 = vmatprep.subr.mxu0 0.0
        %2000 = vmatpush1.msra.mxu0 %v1959
        %2001 = vmatprep.subr.mxu0 0.0
        %2002 = vmatpush1.msra.mxu0 %v1958
        %2003 = vmatprep.subr.mxu0 0.0
        %2004 = vmatpush1.msra.mxu0 %v1957
        %2005 = vmatprep.subr.mxu0 0.0
        %2006 = vmatpush1.msra.mxu0 %v1956
        %2007 = vmatprep.subr.mxu0 0.0
        %2008 = vmatpush1.msra.mxu0 %v1955
        %2009 = vmatprep.subr.mxu0 0.0
        %2010 = vmatpush1.msra.mxu0 %v1954
        %2011 = vmatprep.subr.mxu0 0.0
        %2012 = vmatpush1.msra.mxu0 %v1953
        %2013 = vmatprep.subr.mxu0 0.0
        %2014 = vmatpush1.msra.mxu0 %v1952
        %2015 = vmatprep.subr.mxu0 0.0
        %2016 = vmatpush1.msra.mxu0 %v1951
        %2017 = vmatprep.subr.mxu0 0.0
        %2018 = vmatpush1.msra.mxu0 %v1950
        %2019 = vmatprep.subr.mxu0 0.0
        %2020 = vmatpush1.msra.mxu0 %v1949
        %2021 = vmatprep.subr.mxu0 0.0
        %2022 = vmatpush2.msra.mxu0 %v1980
        %2023 = vmatprep.subr.mxu0 0.0
        %2024 = vmatpush2.msra.mxu0 %v1979
        %2025 = vmatprep.subr.mxu0 0.0
        %2026 = vmatpush2.msra.mxu0 %v1978
        %2027 = vmatprep.subr.mxu0 0.0
        %2028 = vmatpush2.msra.mxu0 %v1977
        %2029 = vmatprep.subr.mxu0 0.0
        %2030 = vmatpush2.msra.mxu0 %v1976
        %2031 = vmatprep.subr.mxu0 0.0
        %2032 = vmatpush2.msra.mxu0 %v1975
        %2033 = vmatprep.subr.mxu0 0.0
        %2034 = vmatpush2.msra.mxu0 %v1974
        %2035 = vmatprep.subr.mxu0 0.0
        %2036 = vmatpush2.msra.mxu0 %v1973
        %2037 = vmatprep.subr.mxu0 0.0
        %2038 = vmatpush2.msra.mxu0 %v1972
        %2039 = vmatprep.subr.mxu0 0.0
        %2040 = vmatpush2.msra.mxu0 %v1971
        %2041 = vmatprep.subr.mxu0 0.0
        %2042 = vmatpush2.msra.mxu0 %v1970
        %2043 = vmatprep.subr.mxu0 0.0
        %2044 = vmatpush2.msra.mxu0 %v1969
        %2045 = vmatprep.subr.mxu0 0.0
        %2046 = vmatpush2.msra.mxu0 %v1968
        %2047 = vmatprep.subr.mxu0 0.0
        %2048 = vmatpush2.msra.mxu0 %v1967
        %2049 = vmatprep.subr.mxu0 0.0
        %2050 = vmatpush2.msra.mxu0 %v1966
        %2051 = vmatprep.subr.mxu0 0.0
        %2052 = vmatpush2.msra.mxu0 %v1965
        %2053 = vmatprep.mubr.f32.mxu0 %v1986
        %2054 = vmatmul.mubr.f32.gmra.mxu0 %v1983
        %v2055 = vpop.f32.mrf.mxu0
        %v2056 = vadd.f32 0.0, %v2055
        %v2057 = vpop.f32.mrf.mxu0
        %2058 = vdwg.mxu0
        %v2059 = vadd.f32 %v1947, %v2056
        %s2060 = scalar_lea.vmem %s326, 1792 [#allocation10]
        %v2061 = vld [vmem:[%s2060] sm:$0xff]
        %v2062 = vld [vmem:[%s2060 + $0x8] sm:$0xff]
        %v2063 = vld [vmem:[%s2060 + $0x10] sm:$0xff]
        %v2064 = vld [vmem:[%s2060 + $0x18] sm:$0xff]
        %v2065 = vld [vmem:[%s2060 + $0x20] sm:$0xff]
        %v2066 = vld [vmem:[%s2060 + $0x28] sm:$0xff]
        %v2067 = vld [vmem:[%s2060 + $0x30] sm:$0xff]
        %v2068 = vld [vmem:[%s2060 + $0x38] sm:$0xff]
        %v2069 = vld [vmem:[%s2060 + $0x40] sm:$0xff]
        %v2070 = vld [vmem:[%s2060 + $0x48] sm:$0xff]
        %v2071 = vld [vmem:[%s2060 + $0x50] sm:$0xff]
        %v2072 = vld [vmem:[%s2060 + $0x58] sm:$0xff]
        %v2073 = vld [vmem:[%s2060 + $0x60] sm:$0xff]
        %v2074 = vld [vmem:[%s2060 + $0x68] sm:$0xff]
        %v2075 = vld [vmem:[%s2060 + $0x70] sm:$0xff]
        %v2076 = vld [vmem:[%s2060 + $0x78] sm:$0xff]
        %v2077 = vld [vmem:[%s2060 + $0x80] sm:$0xff]
        %v2078 = vld [vmem:[%s2060 + $0x88] sm:$0xff]
        %v2079 = vld [vmem:[%s2060 + $0x90] sm:$0xff]
        %v2080 = vld [vmem:[%s2060 + $0x98] sm:$0xff]
        %v2081 = vld [vmem:[%s2060 + $0xa0] sm:$0xff]
        %v2082 = vld [vmem:[%s2060 + $0xa8] sm:$0xff]
        %v2083 = vld [vmem:[%s2060 + $0xb0] sm:$0xff]
        %v2084 = vld [vmem:[%s2060 + $0xb8] sm:$0xff]
        %v2085 = vld [vmem:[%s2060 + $0xc0] sm:$0xff]
        %v2086 = vld [vmem:[%s2060 + $0xc8] sm:$0xff]
        %v2087 = vld [vmem:[%s2060 + $0xd0] sm:$0xff]
        %v2088 = vld [vmem:[%s2060 + $0xd8] sm:$0xff]
        %v2089 = vld [vmem:[%s2060 + $0xe0] sm:$0xff]
        %v2090 = vld [vmem:[%s2060 + $0xe8] sm:$0xff]
        %v2091 = vld [vmem:[%s2060 + $0xf0] sm:$0xff]
        %v2092 = vld [vmem:[%s2060 + $0xf8] sm:$0xff]
        %v2093 = vrot.slane %v1262, 7
        %v2094 = vrot.slane %v1270, 6
        %v2095 = vsel %vm1348, %v2094, %v2093
        %v2096 = vrot.slane %v1263, 7
        %v2097 = vrot.slane %v1271, 6
        %v2098 = vsel %vm1348, %v2097, %v2096
        %2101 = vmatprep.subr.mxu0 0.0
        %2102 = vmatpush1.msra.mxu0 %v2076
        %2103 = vmatprep.subr.mxu0 0.0
        %2104 = vmatpush1.msra.mxu0 %v2075
        %2105 = vmatprep.subr.mxu0 0.0
        %2106 = vmatpush1.msra.mxu0 %v2074
        %2107 = vmatprep.subr.mxu0 0.0
        %2108 = vmatpush1.msra.mxu0 %v2073
        %2109 = vmatprep.subr.mxu0 0.0
        %2110 = vmatpush1.msra.mxu0 %v2072
        %2111 = vmatprep.subr.mxu0 0.0
        %2112 = vmatpush1.msra.mxu0 %v2071
        %2113 = vmatprep.subr.mxu0 0.0
        %2114 = vmatpush1.msra.mxu0 %v2070
        %2115 = vmatprep.subr.mxu0 0.0
        %2116 = vmatpush1.msra.mxu0 %v2069
        %2117 = vmatprep.subr.mxu0 0.0
        %2118 = vmatpush1.msra.mxu0 %v2068
        %2119 = vmatprep.subr.mxu0 0.0
        %2120 = vmatpush1.msra.mxu0 %v2067
        %2121 = vmatprep.subr.mxu0 0.0
        %2122 = vmatpush1.msra.mxu0 %v2066
        %2123 = vmatprep.subr.mxu0 0.0
        %2124 = vmatpush1.msra.mxu0 %v2065
        %2125 = vmatprep.subr.mxu0 0.0
        %2126 = vmatpush1.msra.mxu0 %v2064
        %2127 = vmatprep.subr.mxu0 0.0
        %2128 = vmatpush1.msra.mxu0 %v2063
        %2129 = vmatprep.subr.mxu0 0.0
        %2130 = vmatpush1.msra.mxu0 %v2062
        %2131 = vmatprep.subr.mxu0 0.0
        %2132 = vmatpush1.msra.mxu0 %v2061
        %2133 = vmatprep.subr.mxu0 0.0
        %2134 = vmatpush2.msra.mxu0 %v2092
        %2135 = vmatprep.subr.mxu0 0.0
        %2136 = vmatpush2.msra.mxu0 %v2091
        %2137 = vmatprep.subr.mxu0 0.0
        %2138 = vmatpush2.msra.mxu0 %v2090
        %2139 = vmatprep.subr.mxu0 0.0
        %2140 = vmatpush2.msra.mxu0 %v2089
        %2141 = vmatprep.subr.mxu0 0.0
        %2142 = vmatpush2.msra.mxu0 %v2088
        %2143 = vmatprep.subr.mxu0 0.0
        %2144 = vmatpush2.msra.mxu0 %v2087
        %2145 = vmatprep.subr.mxu0 0.0
        %2146 = vmatpush2.msra.mxu0 %v2086
        %2147 = vmatprep.subr.mxu0 0.0
        %2148 = vmatpush2.msra.mxu0 %v2085
        %2149 = vmatprep.subr.mxu0 0.0
        %2150 = vmatpush2.msra.mxu0 %v2084
        %2151 = vmatprep.subr.mxu0 0.0
        %2152 = vmatpush2.msra.mxu0 %v2083
        %2153 = vmatprep.subr.mxu0 0.0
        %2154 = vmatpush2.msra.mxu0 %v2082
        %2155 = vmatprep.subr.mxu0 0.0
        %2156 = vmatpush2.msra.mxu0 %v2081
        %2157 = vmatprep.subr.mxu0 0.0
        %2158 = vmatpush2.msra.mxu0 %v2080
        %2159 = vmatprep.subr.mxu0 0.0
        %2160 = vmatpush2.msra.mxu0 %v2079
        %2161 = vmatprep.subr.mxu0 0.0
        %2162 = vmatpush2.msra.mxu0 %v2078
        %2163 = vmatprep.subr.mxu0 0.0
        %2164 = vmatpush2.msra.mxu0 %v2077
        %2165 = vmatprep.mubr.f32.mxu0 %v2098
        %2166 = vmatmul.mubr.f32.gmra.mxu0 %v2095
        %v2167 = vpop.f32.mrf.mxu0
        %v2168 = vadd.f32 0.0, %v2167
        %v2169 = vpop.f32.mrf.mxu0
        %2170 = vdwg.mxu0
        %v2171 = vadd.f32 %v2059, %v2168
        %s2172 = scalar_lea.vmem %s326, 2048 [#allocation10]
        %v2173 = vld [vmem:[%s2172] sm:$0xff]
        %v2174 = vld [vmem:[%s2172 + $0x8] sm:$0xff]
        %v2175 = vld [vmem:[%s2172 + $0x10] sm:$0xff]
        %v2176 = vld [vmem:[%s2172 + $0x18] sm:$0xff]
        %v2177 = vld [vmem:[%s2172 + $0x20] sm:$0xff]
        %v2178 = vld [vmem:[%s2172 + $0x28] sm:$0xff]
        %v2179 = vld [vmem:[%s2172 + $0x30] sm:$0xff]
        %v2180 = vld [vmem:[%s2172 + $0x38] sm:$0xff]
        %v2181 = vld [vmem:[%s2172 + $0x40] sm:$0xff]
        %v2182 = vld [vmem:[%s2172 + $0x48] sm:$0xff]
        %v2183 = vld [vmem:[%s2172 + $0x50] sm:$0xff]
        %v2184 = vld [vmem:[%s2172 + $0x58] sm:$0xff]
        %v2185 = vld [vmem:[%s2172 + $0x60] sm:$0xff]
        %v2186 = vld [vmem:[%s2172 + $0x68] sm:$0xff]
        %v2187 = vld [vmem:[%s2172 + $0x70] sm:$0xff]
        %v2188 = vld [vmem:[%s2172 + $0x78] sm:$0xff]
        %v2189 = vld [vmem:[%s2172 + $0x80] sm:$0xff]
        %v2190 = vld [vmem:[%s2172 + $0x88] sm:$0xff]
        %v2191 = vld [vmem:[%s2172 + $0x90] sm:$0xff]
        %v2192 = vld [vmem:[%s2172 + $0x98] sm:$0xff]
        %v2193 = vld [vmem:[%s2172 + $0xa0] sm:$0xff]
        %v2194 = vld [vmem:[%s2172 + $0xa8] sm:$0xff]
        %v2195 = vld [vmem:[%s2172 + $0xb0] sm:$0xff]
        %v2196 = vld [vmem:[%s2172 + $0xb8] sm:$0xff]
        %v2197 = vld [vmem:[%s2172 + $0xc0] sm:$0xff]
        %v2198 = vld [vmem:[%s2172 + $0xc8] sm:$0xff]
        %v2199 = vld [vmem:[%s2172 + $0xd0] sm:$0xff]
        %v2200 = vld [vmem:[%s2172 + $0xd8] sm:$0xff]
        %v2201 = vld [vmem:[%s2172 + $0xe0] sm:$0xff]
        %v2202 = vld [vmem:[%s2172 + $0xe8] sm:$0xff]
        %v2203 = vld [vmem:[%s2172 + $0xf0] sm:$0xff]
        %v2204 = vld [vmem:[%s2172 + $0xf8] sm:$0xff]
        %v2209 = vrot.slane %v1272, 7
        %v2210 = vsel %vm1348, %v2209, %v1264
        %v2211 = vrot.slane %v1273, 7
        %v2212 = vsel %vm1348, %v2211, %v1265
        %2215 = vmatprep.subr.mxu0 0.0
        %2216 = vmatpush1.msra.mxu0 %v2188
        %2217 = vmatprep.subr.mxu0 0.0
        %2218 = vmatpush1.msra.mxu0 %v2187
        %2219 = vmatprep.subr.mxu0 0.0
        %2220 = vmatpush1.msra.mxu0 %v2186
        %2221 = vmatprep.subr.mxu0 0.0
        %2222 = vmatpush1.msra.mxu0 %v2185
        %2223 = vmatprep.subr.mxu0 0.0
        %2224 = vmatpush1.msra.mxu0 %v2184
        %2225 = vmatprep.subr.mxu0 0.0
        %2226 = vmatpush1.msra.mxu0 %v2183
        %2227 = vmatprep.subr.mxu0 0.0
        %2228 = vmatpush1.msra.mxu0 %v2182
        %2229 = vmatprep.subr.mxu0 0.0
        %2230 = vmatpush1.msra.mxu0 %v2181
        %2231 = vmatprep.subr.mxu0 0.0
        %2232 = vmatpush1.msra.mxu0 %v2180
        %2233 = vmatprep.subr.mxu0 0.0
        %2234 = vmatpush1.msra.mxu0 %v2179
        %2235 = vmatprep.subr.mxu0 0.0
        %2236 = vmatpush1.msra.mxu0 %v2178
        %2237 = vmatprep.subr.mxu0 0.0
        %2238 = vmatpush1.msra.mxu0 %v2177
        %2239 = vmatprep.subr.mxu0 0.0
        %2240 = vmatpush1.msra.mxu0 %v2176
        %2241 = vmatprep.subr.mxu0 0.0
        %2242 = vmatpush1.msra.mxu0 %v2175
        %2243 = vmatprep.subr.mxu0 0.0
        %2244 = vmatpush1.msra.mxu0 %v2174
        %2245 = vmatprep.subr.mxu0 0.0
        %2246 = vmatpush1.msra.mxu0 %v2173
        %2247 = vmatprep.subr.mxu0 0.0
        %2248 = vmatpush2.msra.mxu0 %v2204
        %2249 = vmatprep.subr.mxu0 0.0
        %2250 = vmatpush2.msra.mxu0 %v2203
        %2251 = vmatprep.subr.mxu0 0.0
        %2252 = vmatpush2.msra.mxu0 %v2202
        %2253 = vmatprep.subr.mxu0 0.0
        %2254 = vmatpush2.msra.mxu0 %v2201
        %2255 = vmatprep.subr.mxu0 0.0
        %2256 = vmatpush2.msra.mxu0 %v2200
        %2257 = vmatprep.subr.mxu0 0.0
        %2258 = vmatpush2.msra.mxu0 %v2199
        %2259 = vmatprep.subr.mxu0 0.0
        %2260 = vmatpush2.msra.mxu0 %v2198
        %2261 = vmatprep.subr.mxu0 0.0
        %2262 = vmatpush2.msra.mxu0 %v2197
        %2263 = vmatprep.subr.mxu0 0.0
        %2264 = vmatpush2.msra.mxu0 %v2196
        %2265 = vmatprep.subr.mxu0 0.0
        %2266 = vmatpush2.msra.mxu0 %v2195
        %2267 = vmatprep.subr.mxu0 0.0
        %2268 = vmatpush2.msra.mxu0 %v2194
        %2269 = vmatprep.subr.mxu0 0.0
        %2270 = vmatpush2.msra.mxu0 %v2193
        %2271 = vmatprep.subr.mxu0 0.0
        %2272 = vmatpush2.msra.mxu0 %v2192
        %2273 = vmatprep.subr.mxu0 0.0
        %2274 = vmatpush2.msra.mxu0 %v2191
        %2275 = vmatprep.subr.mxu0 0.0
        %2276 = vmatpush2.msra.mxu0 %v2190
        %2277 = vmatprep.subr.mxu0 0.0
        %2278 = vmatpush2.msra.mxu0 %v2189
        %2279 = vmatprep.mubr.f32.mxu0 %v2212
        %2280 = vmatmul.mubr.f32.gmra.mxu0 %v2210
        %v2281 = vpop.f32.mrf.mxu0
        %v2282 = vadd.f32 0.0, %v2281
        %v2283 = vpop.f32.mrf.mxu0
        %2284 = vdwg.mxu0
        %v2285 = vadd.f32 %v2171, %v2282
        %s2286 = scalar_lea.vmem %s326, 2304 [#allocation10]
        %v2287 = vld [vmem:[%s2286] sm:$0xff]
        %v2288 = vld [vmem:[%s2286 + $0x8] sm:$0xff]
        %v2289 = vld [vmem:[%s2286 + $0x10] sm:$0xff]
        %v2290 = vld [vmem:[%s2286 + $0x18] sm:$0xff]
        %v2291 = vld [vmem:[%s2286 + $0x20] sm:$0xff]
        %v2292 = vld [vmem:[%s2286 + $0x28] sm:$0xff]
        %v2293 = vld [vmem:[%s2286 + $0x30] sm:$0xff]
        %v2294 = vld [vmem:[%s2286 + $0x38] sm:$0xff]
        %v2295 = vld [vmem:[%s2286 + $0x40] sm:$0xff]
        %v2296 = vld [vmem:[%s2286 + $0x48] sm:$0xff]
        %v2297 = vld [vmem:[%s2286 + $0x50] sm:$0xff]
        %v2298 = vld [vmem:[%s2286 + $0x58] sm:$0xff]
        %v2299 = vld [vmem:[%s2286 + $0x60] sm:$0xff]
        %v2300 = vld [vmem:[%s2286 + $0x68] sm:$0xff]
        %v2301 = vld [vmem:[%s2286 + $0x70] sm:$0xff]
        %v2302 = vld [vmem:[%s2286 + $0x78] sm:$0xff]
        %v2303 = vld [vmem:[%s2286 + $0x80] sm:$0xff]
        %v2304 = vld [vmem:[%s2286 + $0x88] sm:$0xff]
        %v2305 = vld [vmem:[%s2286 + $0x90] sm:$0xff]
        %v2306 = vld [vmem:[%s2286 + $0x98] sm:$0xff]
        %v2307 = vld [vmem:[%s2286 + $0xa0] sm:$0xff]
        %v2308 = vld [vmem:[%s2286 + $0xa8] sm:$0xff]
        %v2309 = vld [vmem:[%s2286 + $0xb0] sm:$0xff]
        %v2310 = vld [vmem:[%s2286 + $0xb8] sm:$0xff]
        %v2311 = vld [vmem:[%s2286 + $0xc0] sm:$0xff]
        %v2312 = vld [vmem:[%s2286 + $0xc8] sm:$0xff]
        %v2313 = vld [vmem:[%s2286 + $0xd0] sm:$0xff]
        %v2314 = vld [vmem:[%s2286 + $0xd8] sm:$0xff]
        %v2315 = vld [vmem:[%s2286 + $0xe0] sm:$0xff]
        %v2316 = vld [vmem:[%s2286 + $0xe8] sm:$0xff]
        %v2317 = vld [vmem:[%s2286 + $0xf0] sm:$0xff]
        %v2318 = vld [vmem:[%s2286 + $0xf8] sm:$0xff]
        %v2319 = vrot.slane %v1264, 1
        %v2320 = vsel %vm1348, %v1272, %v2319
        %v2321 = vrot.slane %v1265, 1
        %v2322 = vsel %vm1348, %v1273, %v2321
        %2325 = vmatprep.subr.mxu0 0.0
        %2326 = vmatpush1.msra.mxu0 %v2302
        %2327 = vmatprep.subr.mxu0 0.0
        %2328 = vmatpush1.msra.mxu0 %v2301
        %2329 = vmatprep.subr.mxu0 0.0
        %2330 = vmatpush1.msra.mxu0 %v2300
        %2331 = vmatprep.subr.mxu0 0.0
        %2332 = vmatpush1.msra.mxu0 %v2299
        %2333 = vmatprep.subr.mxu0 0.0
        %2334 = vmatpush1.msra.mxu0 %v2298
        %2335 = vmatprep.subr.mxu0 0.0
        %2336 = vmatpush1.msra.mxu0 %v2297
        %2337 = vmatprep.subr.mxu0 0.0
        %2338 = vmatpush1.msra.mxu0 %v2296
        %2339 = vmatprep.subr.mxu0 0.0
        %2340 = vmatpush1.msra.mxu0 %v2295
        %2341 = vmatprep.subr.mxu0 0.0
        %2342 = vmatpush1.msra.mxu0 %v2294
        %2343 = vmatprep.subr.mxu0 0.0
        %2344 = vmatpush1.msra.mxu0 %v2293
        %2345 = vmatprep.subr.mxu0 0.0
        %2346 = vmatpush1.msra.mxu0 %v2292
        %2347 = vmatprep.subr.mxu0 0.0
        %2348 = vmatpush1.msra.mxu0 %v2291
        %2349 = vmatprep.subr.mxu0 0.0
        %2350 = vmatpush1.msra.mxu0 %v2290
        %2351 = vmatprep.subr.mxu0 0.0
        %2352 = vmatpush1.msra.mxu0 %v2289
        %2353 = vmatprep.subr.mxu0 0.0
        %2354 = vmatpush1.msra.mxu0 %v2288
        %2355 = vmatprep.subr.mxu0 0.0
        %2356 = vmatpush1.msra.mxu0 %v2287
        %2357 = vmatprep.subr.mxu0 0.0
        %2358 = vmatpush2.msra.mxu0 %v2318
        %2359 = vmatprep.subr.mxu0 0.0
        %2360 = vmatpush2.msra.mxu0 %v2317
        %2361 = vmatprep.subr.mxu0 0.0
        %2362 = vmatpush2.msra.mxu0 %v2316
        %2363 = vmatprep.subr.mxu0 0.0
        %2364 = vmatpush2.msra.mxu0 %v2315
        %2365 = vmatprep.subr.mxu0 0.0
        %2366 = vmatpush2.msra.mxu0 %v2314
        %2367 = vmatprep.subr.mxu0 0.0
        %2368 = vmatpush2.msra.mxu0 %v2313
        %2369 = vmatprep.subr.mxu0 0.0
        %2370 = vmatpush2.msra.mxu0 %v2312
        %2371 = vmatprep.subr.mxu0 0.0
        %2372 = vmatpush2.msra.mxu0 %v2311
        %2373 = vmatprep.subr.mxu0 0.0
        %2374 = vmatpush2.msra.mxu0 %v2310
        %2375 = vmatprep.subr.mxu0 0.0
        %2376 = vmatpush2.msra.mxu0 %v2309
        %2377 = vmatprep.subr.mxu0 0.0
        %2378 = vmatpush2.msra.mxu0 %v2308
        %2379 = vmatprep.subr.mxu0 0.0
        %2380 = vmatpush2.msra.mxu0 %v2307
        %2381 = vmatprep.subr.mxu0 0.0
        %2382 = vmatpush2.msra.mxu0 %v2306
        %2383 = vmatprep.subr.mxu0 0.0
        %2384 = vmatpush2.msra.mxu0 %v2305
        %2385 = vmatprep.subr.mxu0 0.0
        %2386 = vmatpush2.msra.mxu0 %v2304
        %2387 = vmatprep.subr.mxu0 0.0
        %2388 = vmatpush2.msra.mxu0 %v2303
        %2389 = vmatprep.mubr.f32.mxu0 %v2322
        %2390 = vmatmul.mubr.f32.gmra.mxu0 %v2320
        %v2391 = vpop.f32.mrf.mxu0
        %v2392 = vadd.f32 0.0, %v2391
        %v2393 = vpop.f32.mrf.mxu0
        %2394 = vdwg.mxu0
        %v2395 = vadd.f32 %v2285, %v2392
        %s2396 = scalar_lea.vmem %s326, 2560 [#allocation10]
        %v2397 = vld [vmem:[%s2396] sm:$0xff]
        %v2398 = vld [vmem:[%s2396 + $0x8] sm:$0xff]
        %v2399 = vld [vmem:[%s2396 + $0x10] sm:$0xff]
        %v2400 = vld [vmem:[%s2396 + $0x18] sm:$0xff]
        %v2401 = vld [vmem:[%s2396 + $0x20] sm:$0xff]
        %v2402 = vld [vmem:[%s2396 + $0x28] sm:$0xff]
        %v2403 = vld [vmem:[%s2396 + $0x30] sm:$0xff]
        %v2404 = vld [vmem:[%s2396 + $0x38] sm:$0xff]
        %v2405 = vld [vmem:[%s2396 + $0x40] sm:$0xff]
        %v2406 = vld [vmem:[%s2396 + $0x48] sm:$0xff]
        %v2407 = vld [vmem:[%s2396 + $0x50] sm:$0xff]
        %v2408 = vld [vmem:[%s2396 + $0x58] sm:$0xff]
        %v2409 = vld [vmem:[%s2396 + $0x60] sm:$0xff]
        %v2410 = vld [vmem:[%s2396 + $0x68] sm:$0xff]
        %v2411 = vld [vmem:[%s2396 + $0x70] sm:$0xff]
        %v2412 = vld [vmem:[%s2396 + $0x78] sm:$0xff]
        %v2413 = vld [vmem:[%s2396 + $0x80] sm:$0xff]
        %v2414 = vld [vmem:[%s2396 + $0x88] sm:$0xff]
        %v2415 = vld [vmem:[%s2396 + $0x90] sm:$0xff]
        %v2416 = vld [vmem:[%s2396 + $0x98] sm:$0xff]
        %v2417 = vld [vmem:[%s2396 + $0xa0] sm:$0xff]
        %v2418 = vld [vmem:[%s2396 + $0xa8] sm:$0xff]
        %v2419 = vld [vmem:[%s2396 + $0xb0] sm:$0xff]
        %v2420 = vld [vmem:[%s2396 + $0xb8] sm:$0xff]
        %v2421 = vld [vmem:[%s2396 + $0xc0] sm:$0xff]
        %v2422 = vld [vmem:[%s2396 + $0xc8] sm:$0xff]
        %v2423 = vld [vmem:[%s2396 + $0xd0] sm:$0xff]
        %v2424 = vld [vmem:[%s2396 + $0xd8] sm:$0xff]
        %v2425 = vld [vmem:[%s2396 + $0xe0] sm:$0xff]
        %v2426 = vld [vmem:[%s2396 + $0xe8] sm:$0xff]
        %v2427 = vld [vmem:[%s2396 + $0xf0] sm:$0xff]
        %v2428 = vld [vmem:[%s2396 + $0xf8] sm:$0xff]
        %v2429 = vrot.slane %v1264, 2
        %v2430 = vrot.slane %v1272, 1
        %v2431 = vsel %vm1348, %v2430, %v2429
        %v2432 = vrot.slane %v1265, 2
        %v2433 = vrot.slane %v1273, 1
        %v2434 = vsel %vm1348, %v2433, %v2432
        %2437 = vmatprep.subr.mxu0 0.0
        %2438 = vmatpush1.msra.mxu0 %v2412
        %2439 = vmatprep.subr.mxu0 0.0
        %2440 = vmatpush1.msra.mxu0 %v2411
        %2441 = vmatprep.subr.mxu0 0.0
        %2442 = vmatpush1.msra.mxu0 %v2410
        %2443 = vmatprep.subr.mxu0 0.0
        %2444 = vmatpush1.msra.mxu0 %v2409
        %2445 = vmatprep.subr.mxu0 0.0
        %2446 = vmatpush1.msra.mxu0 %v2408
        %2447 = vmatprep.subr.mxu0 0.0
        %2448 = vmatpush1.msra.mxu0 %v2407
        %2449 = vmatprep.subr.mxu0 0.0
        %2450 = vmatpush1.msra.mxu0 %v2406
        %2451 = vmatprep.subr.mxu0 0.0
        %2452 = vmatpush1.msra.mxu0 %v2405
        %2453 = vmatprep.subr.mxu0 0.0
        %2454 = vmatpush1.msra.mxu0 %v2404
        %2455 = vmatprep.subr.mxu0 0.0
        %2456 = vmatpush1.msra.mxu0 %v2403
        %2457 = vmatprep.subr.mxu0 0.0
        %2458 = vmatpush1.msra.mxu0 %v2402
        %2459 = vmatprep.subr.mxu0 0.0
        %2460 = vmatpush1.msra.mxu0 %v2401
        %2461 = vmatprep.subr.mxu0 0.0
        %2462 = vmatpush1.msra.mxu0 %v2400
        %2463 = vmatprep.subr.mxu0 0.0
        %2464 = vmatpush1.msra.mxu0 %v2399
        %2465 = vmatprep.subr.mxu0 0.0
        %2466 = vmatpush1.msra.mxu0 %v2398
        %2467 = vmatprep.subr.mxu0 0.0
        %2468 = vmatpush1.msra.mxu0 %v2397
        %2469 = vmatprep.subr.mxu0 0.0
        %2470 = vmatpush2.msra.mxu0 %v2428
        %2471 = vmatprep.subr.mxu0 0.0
        %2472 = vmatpush2.msra.mxu0 %v2427
        %2473 = vmatprep.subr.mxu0 0.0
        %2474 = vmatpush2.msra.mxu0 %v2426
        %2475 = vmatprep.subr.mxu0 0.0
        %2476 = vmatpush2.msra.mxu0 %v2425
        %2477 = vmatprep.subr.mxu0 0.0
        %2478 = vmatpush2.msra.mxu0 %v2424
        %2479 = vmatprep.subr.mxu0 0.0
        %2480 = vmatpush2.msra.mxu0 %v2423
        %2481 = vmatprep.subr.mxu0 0.0
        %2482 = vmatpush2.msra.mxu0 %v2422
        %2483 = vmatprep.subr.mxu0 0.0
        %2484 = vmatpush2.msra.mxu0 %v2421
        %2485 = vmatprep.subr.mxu0 0.0
        %2486 = vmatpush2.msra.mxu0 %v2420
        %2487 = vmatprep.subr.mxu0 0.0
        %2488 = vmatpush2.msra.mxu0 %v2419
        %2489 = vmatprep.subr.mxu0 0.0
        %2490 = vmatpush2.msra.mxu0 %v2418
        %2491 = vmatprep.subr.mxu0 0.0
        %2492 = vmatpush2.msra.mxu0 %v2417
        %2493 = vmatprep.subr.mxu0 0.0
        %2494 = vmatpush2.msra.mxu0 %v2416
        %2495 = vmatprep.subr.mxu0 0.0
        %2496 = vmatpush2.msra.mxu0 %v2415
        %2497 = vmatprep.subr.mxu0 0.0
        %2498 = vmatpush2.msra.mxu0 %v2414
        %2499 = vmatprep.subr.mxu0 0.0
        %2500 = vmatpush2.msra.mxu0 %v2413
        %2501 = vmatprep.mubr.f32.mxu0 %v2434
        %2502 = vmatmul.mubr.f32.gmra.mxu0 %v2431
        %v2503 = vpop.f32.mrf.mxu0
        %v2504 = vadd.f32 0.0, %v2503
        %v2505 = vpop.f32.mrf.mxu0
        %2506 = vdwg.mxu0
        %v2507 = vadd.f32 %v2395, %v2504
        %s2508 = scalar_lea.vmem %s326, 2816 [#allocation10]
        %v2509 = vld [vmem:[%s2508] sm:$0xff]
        %v2510 = vld [vmem:[%s2508 + $0x8] sm:$0xff]
        %v2511 = vld [vmem:[%s2508 + $0x10] sm:$0xff]
        %v2512 = vld [vmem:[%s2508 + $0x18] sm:$0xff]
        %v2513 = vld [vmem:[%s2508 + $0x20] sm:$0xff]
        %v2514 = vld [vmem:[%s2508 + $0x28] sm:$0xff]
        %v2515 = vld [vmem:[%s2508 + $0x30] sm:$0xff]
        %v2516 = vld [vmem:[%s2508 + $0x38] sm:$0xff]
        %v2517 = vld [vmem:[%s2508 + $0x40] sm:$0xff]
        %v2518 = vld [vmem:[%s2508 + $0x48] sm:$0xff]
        %v2519 = vld [vmem:[%s2508 + $0x50] sm:$0xff]
        %v2520 = vld [vmem:[%s2508 + $0x58] sm:$0xff]
        %v2521 = vld [vmem:[%s2508 + $0x60] sm:$0xff]
        %v2522 = vld [vmem:[%s2508 + $0x68] sm:$0xff]
        %v2523 = vld [vmem:[%s2508 + $0x70] sm:$0xff]
        %v2524 = vld [vmem:[%s2508 + $0x78] sm:$0xff]
        %v2525 = vld [vmem:[%s2508 + $0x80] sm:$0xff]
        %v2526 = vld [vmem:[%s2508 + $0x88] sm:$0xff]
        %v2527 = vld [vmem:[%s2508 + $0x90] sm:$0xff]
        %v2528 = vld [vmem:[%s2508 + $0x98] sm:$0xff]
        %v2529 = vld [vmem:[%s2508 + $0xa0] sm:$0xff]
        %v2530 = vld [vmem:[%s2508 + $0xa8] sm:$0xff]
        %v2531 = vld [vmem:[%s2508 + $0xb0] sm:$0xff]
        %v2532 = vld [vmem:[%s2508 + $0xb8] sm:$0xff]
        %v2533 = vld [vmem:[%s2508 + $0xc0] sm:$0xff]
        %v2534 = vld [vmem:[%s2508 + $0xc8] sm:$0xff]
        %v2535 = vld [vmem:[%s2508 + $0xd0] sm:$0xff]
        %v2536 = vld [vmem:[%s2508 + $0xd8] sm:$0xff]
        %v2537 = vld [vmem:[%s2508 + $0xe0] sm:$0xff]
        %v2538 = vld [vmem:[%s2508 + $0xe8] sm:$0xff]
        %v2539 = vld [vmem:[%s2508 + $0xf0] sm:$0xff]
        %v2540 = vld [vmem:[%s2508 + $0xf8] sm:$0xff]
        %v2541 = vrot.slane %v1264, 3
        %v2542 = vrot.slane %v1272, 2
        %v2543 = vsel %vm1348, %v2542, %v2541
        %v2544 = vrot.slane %v1265, 3
        %v2545 = vrot.slane %v1273, 2
        %v2546 = vsel %vm1348, %v2545, %v2544
        %2549 = vmatprep.subr.mxu0 0.0
        %2550 = vmatpush1.msra.mxu0 %v2524
        %2551 = vmatprep.subr.mxu0 0.0
        %2552 = vmatpush1.msra.mxu0 %v2523
        %2553 = vmatprep.subr.mxu0 0.0
        %2554 = vmatpush1.msra.mxu0 %v2522
        %2555 = vmatprep.subr.mxu0 0.0
        %2556 = vmatpush1.msra.mxu0 %v2521
        %2557 = vmatprep.subr.mxu0 0.0
        %2558 = vmatpush1.msra.mxu0 %v2520
        %2559 = vmatprep.subr.mxu0 0.0
        %2560 = vmatpush1.msra.mxu0 %v2519
        %2561 = vmatprep.subr.mxu0 0.0
        %2562 = vmatpush1.msra.mxu0 %v2518
        %2563 = vmatprep.subr.mxu0 0.0
        %2564 = vmatpush1.msra.mxu0 %v2517
        %2565 = vmatprep.subr.mxu0 0.0
        %2566 = vmatpush1.msra.mxu0 %v2516
        %2567 = vmatprep.subr.mxu0 0.0
        %2568 = vmatpush1.msra.mxu0 %v2515
        %2569 = vmatprep.subr.mxu0 0.0
        %2570 = vmatpush1.msra.mxu0 %v2514
        %2571 = vmatprep.subr.mxu0 0.0
        %2572 = vmatpush1.msra.mxu0 %v2513
        %2573 = vmatprep.subr.mxu0 0.0
        %2574 = vmatpush1.msra.mxu0 %v2512
        %2575 = vmatprep.subr.mxu0 0.0
        %2576 = vmatpush1.msra.mxu0 %v2511
        %2577 = vmatprep.subr.mxu0 0.0
        %2578 = vmatpush1.msra.mxu0 %v2510
        %2579 = vmatprep.subr.mxu0 0.0
        %2580 = vmatpush1.msra.mxu0 %v2509
        %2581 = vmatprep.subr.mxu0 0.0
        %2582 = vmatpush2.msra.mxu0 %v2540
        %2583 = vmatprep.subr.mxu0 0.0
        %2584 = vmatpush2.msra.mxu0 %v2539
        %2585 = vmatprep.subr.mxu0 0.0
        %2586 = vmatpush2.msra.mxu0 %v2538
        %2587 = vmatprep.subr.mxu0 0.0
        %2588 = vmatpush2.msra.mxu0 %v2537
        %2589 = vmatprep.subr.mxu0 0.0
        %2590 = vmatpush2.msra.mxu0 %v2536
        %2591 = vmatprep.subr.mxu0 0.0
        %2592 = vmatpush2.msra.mxu0 %v2535
        %2593 = vmatprep.subr.mxu0 0.0
        %2594 = vmatpush2.msra.mxu0 %v2534
        %2595 = vmatprep.subr.mxu0 0.0
        %2596 = vmatpush2.msra.mxu0 %v2533
        %2597 = vmatprep.subr.mxu0 0.0
        %2598 = vmatpush2.msra.mxu0 %v2532
        %2599 = vmatprep.subr.mxu0 0.0
        %2600 = vmatpush2.msra.mxu0 %v2531
        %2601 = vmatprep.subr.mxu0 0.0
        %2602 = vmatpush2.msra.mxu0 %v2530
        %2603 = vmatprep.subr.mxu0 0.0
        %2604 = vmatpush2.msra.mxu0 %v2529
        %2605 = vmatprep.subr.mxu0 0.0
        %2606 = vmatpush2.msra.mxu0 %v2528
        %2607 = vmatprep.subr.mxu0 0.0
        %2608 = vmatpush2.msra.mxu0 %v2527
        %2609 = vmatprep.subr.mxu0 0.0
        %2610 = vmatpush2.msra.mxu0 %v2526
        %2611 = vmatprep.subr.mxu0 0.0
        %2612 = vmatpush2.msra.mxu0 %v2525
        %2613 = vmatprep.mubr.f32.mxu0 %v2546
        %2614 = vmatmul.mubr.f32.gmra.mxu0 %v2543
        %v2615 = vpop.f32.mrf.mxu0
        %v2616 = vadd.f32 0.0, %v2615
        %v2617 = vpop.f32.mrf.mxu0
        %2618 = vdwg.mxu0
        %v2619 = vadd.f32 %v2507, %v2616
        %s2620 = scalar_lea.vmem %s326, 3072 [#allocation10]
        %v2621 = vld [vmem:[%s2620] sm:$0xff]
        %v2622 = vld [vmem:[%s2620 + $0x8] sm:$0xff]
        %v2623 = vld [vmem:[%s2620 + $0x10] sm:$0xff]
        %v2624 = vld [vmem:[%s2620 + $0x18] sm:$0xff]
        %v2625 = vld [vmem:[%s2620 + $0x20] sm:$0xff]
        %v2626 = vld [vmem:[%s2620 + $0x28] sm:$0xff]
        %v2627 = vld [vmem:[%s2620 + $0x30] sm:$0xff]
        %v2628 = vld [vmem:[%s2620 + $0x38] sm:$0xff]
        %v2629 = vld [vmem:[%s2620 + $0x40] sm:$0xff]
        %v2630 = vld [vmem:[%s2620 + $0x48] sm:$0xff]
        %v2631 = vld [vmem:[%s2620 + $0x50] sm:$0xff]
        %v2632 = vld [vmem:[%s2620 + $0x58] sm:$0xff]
        %v2633 = vld [vmem:[%s2620 + $0x60] sm:$0xff]
        %v2634 = vld [vmem:[%s2620 + $0x68] sm:$0xff]
        %v2635 = vld [vmem:[%s2620 + $0x70] sm:$0xff]
        %v2636 = vld [vmem:[%s2620 + $0x78] sm:$0xff]
        %v2637 = vld [vmem:[%s2620 + $0x80] sm:$0xff]
        %v2638 = vld [vmem:[%s2620 + $0x88] sm:$0xff]
        %v2639 = vld [vmem:[%s2620 + $0x90] sm:$0xff]
        %v2640 = vld [vmem:[%s2620 + $0x98] sm:$0xff]
        %v2641 = vld [vmem:[%s2620 + $0xa0] sm:$0xff]
        %v2642 = vld [vmem:[%s2620 + $0xa8] sm:$0xff]
        %v2643 = vld [vmem:[%s2620 + $0xb0] sm:$0xff]
        %v2644 = vld [vmem:[%s2620 + $0xb8] sm:$0xff]
        %v2645 = vld [vmem:[%s2620 + $0xc0] sm:$0xff]
        %v2646 = vld [vmem:[%s2620 + $0xc8] sm:$0xff]
        %v2647 = vld [vmem:[%s2620 + $0xd0] sm:$0xff]
        %v2648 = vld [vmem:[%s2620 + $0xd8] sm:$0xff]
        %v2649 = vld [vmem:[%s2620 + $0xe0] sm:$0xff]
        %v2650 = vld [vmem:[%s2620 + $0xe8] sm:$0xff]
        %v2651 = vld [vmem:[%s2620 + $0xf0] sm:$0xff]
        %v2652 = vld [vmem:[%s2620 + $0xf8] sm:$0xff]
        %v2653 = vrot.slane %v1264, 4
        %v2654 = vrot.slane %v1272, 3
        %v2655 = vsel %vm1348, %v2654, %v2653
        %v2656 = vrot.slane %v1265, 4
        %v2657 = vrot.slane %v1273, 3
        %v2658 = vsel %vm1348, %v2657, %v2656
        %2661 = vmatprep.subr.mxu0 0.0
        %2662 = vmatpush1.msra.mxu0 %v2636
        %2663 = vmatprep.subr.mxu0 0.0
        %2664 = vmatpush1.msra.mxu0 %v2635
        %2665 = vmatprep.subr.mxu0 0.0
        %2666 = vmatpush1.msra.mxu0 %v2634
        %2667 = vmatprep.subr.mxu0 0.0
        %2668 = vmatpush1.msra.mxu0 %v2633
        %2669 = vmatprep.subr.mxu0 0.0
        %2670 = vmatpush1.msra.mxu0 %v2632
        %2671 = vmatprep.subr.mxu0 0.0
        %2672 = vmatpush1.msra.mxu0 %v2631
        %2673 = vmatprep.subr.mxu0 0.0
        %2674 = vmatpush1.msra.mxu0 %v2630
        %2675 = vmatprep.subr.mxu0 0.0
        %2676 = vmatpush1.msra.mxu0 %v2629
        %2677 = vmatprep.subr.mxu0 0.0
        %2678 = vmatpush1.msra.mxu0 %v2628
        %2679 = vmatprep.subr.mxu0 0.0
        %2680 = vmatpush1.msra.mxu0 %v2627
        %2681 = vmatprep.subr.mxu0 0.0
        %2682 = vmatpush1.msra.mxu0 %v2626
        %2683 = vmatprep.subr.mxu0 0.0
        %2684 = vmatpush1.msra.mxu0 %v2625
        %2685 = vmatprep.subr.mxu0 0.0
        %2686 = vmatpush1.msra.mxu0 %v2624
        %2687 = vmatprep.subr.mxu0 0.0
        %2688 = vmatpush1.msra.mxu0 %v2623
        %2689 = vmatprep.subr.mxu0 0.0
        %2690 = vmatpush1.msra.mxu0 %v2622
        %2691 = vmatprep.subr.mxu0 0.0
        %2692 = vmatpush1.msra.mxu0 %v2621
        %2693 = vmatprep.subr.mxu0 0.0
        %2694 = vmatpush2.msra.mxu0 %v2652
        %2695 = vmatprep.subr.mxu0 0.0
        %2696 = vmatpush2.msra.mxu0 %v2651
        %2697 = vmatprep.subr.mxu0 0.0
        %2698 = vmatpush2.msra.mxu0 %v2650
        %2699 = vmatprep.subr.mxu0 0.0
        %2700 = vmatpush2.msra.mxu0 %v2649
        %2701 = vmatprep.subr.mxu0 0.0
        %2702 = vmatpush2.msra.mxu0 %v2648
        %2703 = vmatprep.subr.mxu0 0.0
        %2704 = vmatpush2.msra.mxu0 %v2647
        %2705 = vmatprep.subr.mxu0 0.0
        %2706 = vmatpush2.msra.mxu0 %v2646
        %2707 = vmatprep.subr.mxu0 0.0
        %2708 = vmatpush2.msra.mxu0 %v2645
        %2709 = vmatprep.subr.mxu0 0.0
        %2710 = vmatpush2.msra.mxu0 %v2644
        %2711 = vmatprep.subr.mxu0 0.0
        %2712 = vmatpush2.msra.mxu0 %v2643
        %2713 = vmatprep.subr.mxu0 0.0
        %2714 = vmatpush2.msra.mxu0 %v2642
        %2715 = vmatprep.subr.mxu0 0.0
        %2716 = vmatpush2.msra.mxu0 %v2641
        %2717 = vmatprep.subr.mxu0 0.0
        %2718 = vmatpush2.msra.mxu0 %v2640
        %2719 = vmatprep.subr.mxu0 0.0
        %2720 = vmatpush2.msra.mxu0 %v2639
        %2721 = vmatprep.subr.mxu0 0.0
        %2722 = vmatpush2.msra.mxu0 %v2638
        %2723 = vmatprep.subr.mxu0 0.0
        %2724 = vmatpush2.msra.mxu0 %v2637
        %2725 = vmatprep.mubr.f32.mxu0 %v2658
        %2726 = vmatmul.mubr.f32.gmra.mxu0 %v2655
        %v2727 = vpop.f32.mrf.mxu0
        %v2728 = vadd.f32 0.0, %v2727
        %v2729 = vpop.f32.mrf.mxu0
        %2730 = vdwg.mxu0
        %v2731 = vadd.f32 %v2619, %v2728
        %s2732 = scalar_lea.vmem %s326, 3328 [#allocation10]
        %v2733 = vld [vmem:[%s2732] sm:$0xff]
        %v2734 = vld [vmem:[%s2732 + $0x8] sm:$0xff]
        %v2735 = vld [vmem:[%s2732 + $0x10] sm:$0xff]
        %v2736 = vld [vmem:[%s2732 + $0x18] sm:$0xff]
        %v2737 = vld [vmem:[%s2732 + $0x20] sm:$0xff]
        %v2738 = vld [vmem:[%s2732 + $0x28] sm:$0xff]
        %v2739 = vld [vmem:[%s2732 + $0x30] sm:$0xff]
        %v2740 = vld [vmem:[%s2732 + $0x38] sm:$0xff]
        %v2741 = vld [vmem:[%s2732 + $0x40] sm:$0xff]
        %v2742 = vld [vmem:[%s2732 + $0x48] sm:$0xff]
        %v2743 = vld [vmem:[%s2732 + $0x50] sm:$0xff]
        %v2744 = vld [vmem:[%s2732 + $0x58] sm:$0xff]
        %v2745 = vld [vmem:[%s2732 + $0x60] sm:$0xff]
        %v2746 = vld [vmem:[%s2732 + $0x68] sm:$0xff]
        %v2747 = vld [vmem:[%s2732 + $0x70] sm:$0xff]
        %v2748 = vld [vmem:[%s2732 + $0x78] sm:$0xff]
        %v2749 = vld [vmem:[%s2732 + $0x80] sm:$0xff]
        %v2750 = vld [vmem:[%s2732 + $0x88] sm:$0xff]
        %v2751 = vld [vmem:[%s2732 + $0x90] sm:$0xff]
        %v2752 = vld [vmem:[%s2732 + $0x98] sm:$0xff]
        %v2753 = vld [vmem:[%s2732 + $0xa0] sm:$0xff]
        %v2754 = vld [vmem:[%s2732 + $0xa8] sm:$0xff]
        %v2755 = vld [vmem:[%s2732 + $0xb0] sm:$0xff]
        %v2756 = vld [vmem:[%s2732 + $0xb8] sm:$0xff]
        %v2757 = vld [vmem:[%s2732 + $0xc0] sm:$0xff]
        %v2758 = vld [vmem:[%s2732 + $0xc8] sm:$0xff]
        %v2759 = vld [vmem:[%s2732 + $0xd0] sm:$0xff]
        %v2760 = vld [vmem:[%s2732 + $0xd8] sm:$0xff]
        %v2761 = vld [vmem:[%s2732 + $0xe0] sm:$0xff]
        %v2762 = vld [vmem:[%s2732 + $0xe8] sm:$0xff]
        %v2763 = vld [vmem:[%s2732 + $0xf0] sm:$0xff]
        %v2764 = vld [vmem:[%s2732 + $0xf8] sm:$0xff]
        %v2765 = vrot.slane %v1264, 5
        %v2766 = vrot.slane %v1272, 4
        %v2767 = vsel %vm1348, %v2766, %v2765
        %v2768 = vrot.slane %v1265, 5
        %v2769 = vrot.slane %v1273, 4
        %v2770 = vsel %vm1348, %v2769, %v2768
        %2773 = vmatprep.subr.mxu0 0.0
        %2774 = vmatpush1.msra.mxu0 %v2748
        %2775 = vmatprep.subr.mxu0 0.0
        %2776 = vmatpush1.msra.mxu0 %v2747
        %2777 = vmatprep.subr.mxu0 0.0
        %2778 = vmatpush1.msra.mxu0 %v2746
        %2779 = vmatprep.subr.mxu0 0.0
        %2780 = vmatpush1.msra.mxu0 %v2745
        %2781 = vmatprep.subr.mxu0 0.0
        %2782 = vmatpush1.msra.mxu0 %v2744
        %2783 = vmatprep.subr.mxu0 0.0
        %2784 = vmatpush1.msra.mxu0 %v2743
        %2785 = vmatprep.subr.mxu0 0.0
        %2786 = vmatpush1.msra.mxu0 %v2742
        %2787 = vmatprep.subr.mxu0 0.0
        %2788 = vmatpush1.msra.mxu0 %v2741
        %2789 = vmatprep.subr.mxu0 0.0
        %2790 = vmatpush1.msra.mxu0 %v2740
        %2791 = vmatprep.subr.mxu0 0.0
        %2792 = vmatpush1.msra.mxu0 %v2739
        %2793 = vmatprep.subr.mxu0 0.0
        %2794 = vmatpush1.msra.mxu0 %v2738
        %2795 = vmatprep.subr.mxu0 0.0
        %2796 = vmatpush1.msra.mxu0 %v2737
        %2797 = vmatprep.subr.mxu0 0.0
        %2798 = vmatpush1.msra.mxu0 %v2736
        %2799 = vmatprep.subr.mxu0 0.0
        %2800 = vmatpush1.msra.mxu0 %v2735
        %2801 = vmatprep.subr.mxu0 0.0
        %2802 = vmatpush1.msra.mxu0 %v2734
        %2803 = vmatprep.subr.mxu0 0.0
        %2804 = vmatpush1.msra.mxu0 %v2733
        %2805 = vmatprep.subr.mxu0 0.0
        %2806 = vmatpush2.msra.mxu0 %v2764
        %2807 = vmatprep.subr.mxu0 0.0
        %2808 = vmatpush2.msra.mxu0 %v2763
        %2809 = vmatprep.subr.mxu0 0.0
        %2810 = vmatpush2.msra.mxu0 %v2762
        %2811 = vmatprep.subr.mxu0 0.0
        %2812 = vmatpush2.msra.mxu0 %v2761
        %2813 = vmatprep.subr.mxu0 0.0
        %2814 = vmatpush2.msra.mxu0 %v2760
        %2815 = vmatprep.subr.mxu0 0.0
        %2816 = vmatpush2.msra.mxu0 %v2759
        %2817 = vmatprep.subr.mxu0 0.0
        %2818 = vmatpush2.msra.mxu0 %v2758
        %2819 = vmatprep.subr.mxu0 0.0
        %2820 = vmatpush2.msra.mxu0 %v2757
        %2821 = vmatprep.subr.mxu0 0.0
        %2822 = vmatpush2.msra.mxu0 %v2756
        %2823 = vmatprep.subr.mxu0 0.0
        %2824 = vmatpush2.msra.mxu0 %v2755
        %2825 = vmatprep.subr.mxu0 0.0
        %2826 = vmatpush2.msra.mxu0 %v2754
        %2827 = vmatprep.subr.mxu0 0.0
        %2828 = vmatpush2.msra.mxu0 %v2753
        %2829 = vmatprep.subr.mxu0 0.0
        %2830 = vmatpush2.msra.mxu0 %v2752
        %2831 = vmatprep.subr.mxu0 0.0
        %2832 = vmatpush2.msra.mxu0 %v2751
        %2833 = vmatprep.subr.mxu0 0.0
        %2834 = vmatpush2.msra.mxu0 %v2750
        %2835 = vmatprep.subr.mxu0 0.0
        %2836 = vmatpush2.msra.mxu0 %v2749
        %2837 = vmatprep.mubr.f32.mxu0 %v2770
        %2838 = vmatmul.mubr.f32.gmra.mxu0 %v2767
        %v2839 = vpop.f32.mrf.mxu0
        %v2840 = vadd.f32 0.0, %v2839
        %v2841 = vpop.f32.mrf.mxu0
        %2842 = vdwg.mxu0
        %v2843 = vadd.f32 %v2731, %v2840
        %s2844 = scalar_lea.vmem %s326, 3584 [#allocation10]
        %v2845 = vld [vmem:[%s2844] sm:$0xff]
        %v2846 = vld [vmem:[%s2844 + $0x8] sm:$0xff]
        %v2847 = vld [vmem:[%s2844 + $0x10] sm:$0xff]
        %v2848 = vld [vmem:[%s2844 + $0x18] sm:$0xff]
        %v2849 = vld [vmem:[%s2844 + $0x20] sm:$0xff]
        %v2850 = vld [vmem:[%s2844 + $0x28] sm:$0xff]
        %v2851 = vld [vmem:[%s2844 + $0x30] sm:$0xff]
        %v2852 = vld [vmem:[%s2844 + $0x38] sm:$0xff]
        %v2853 = vld [vmem:[%s2844 + $0x40] sm:$0xff]
        %v2854 = vld [vmem:[%s2844 + $0x48] sm:$0xff]
        %v2855 = vld [vmem:[%s2844 + $0x50] sm:$0xff]
        %v2856 = vld [vmem:[%s2844 + $0x58] sm:$0xff]
        %v2857 = vld [vmem:[%s2844 + $0x60] sm:$0xff]
        %v2858 = vld [vmem:[%s2844 + $0x68] sm:$0xff]
        %v2859 = vld [vmem:[%s2844 + $0x70] sm:$0xff]
        %v2860 = vld [vmem:[%s2844 + $0x78] sm:$0xff]
        %v2861 = vld [vmem:[%s2844 + $0x80] sm:$0xff]
        %v2862 = vld [vmem:[%s2844 + $0x88] sm:$0xff]
        %v2863 = vld [vmem:[%s2844 + $0x90] sm:$0xff]
        %v2864 = vld [vmem:[%s2844 + $0x98] sm:$0xff]
        %v2865 = vld [vmem:[%s2844 + $0xa0] sm:$0xff]
        %v2866 = vld [vmem:[%s2844 + $0xa8] sm:$0xff]
        %v2867 = vld [vmem:[%s2844 + $0xb0] sm:$0xff]
        %v2868 = vld [vmem:[%s2844 + $0xb8] sm:$0xff]
        %v2869 = vld [vmem:[%s2844 + $0xc0] sm:$0xff]
        %v2870 = vld [vmem:[%s2844 + $0xc8] sm:$0xff]
        %v2871 = vld [vmem:[%s2844 + $0xd0] sm:$0xff]
        %v2872 = vld [vmem:[%s2844 + $0xd8] sm:$0xff]
        %v2873 = vld [vmem:[%s2844 + $0xe0] sm:$0xff]
        %v2874 = vld [vmem:[%s2844 + $0xe8] sm:$0xff]
        %v2875 = vld [vmem:[%s2844 + $0xf0] sm:$0xff]
        %v2876 = vld [vmem:[%s2844 + $0xf8] sm:$0xff]
        %v2877 = vrot.slane %v1264, 6
        %v2878 = vrot.slane %v1272, 5
        %v2879 = vsel %vm1348, %v2878, %v2877
        %v2880 = vrot.slane %v1265, 6
        %v2881 = vrot.slane %v1273, 5
        %v2882 = vsel %vm1348, %v2881, %v2880
        %2885 = vmatprep.subr.mxu0 0.0
        %2886 = vmatpush1.msra.mxu0 %v2860
        %2887 = vmatprep.subr.mxu0 0.0
        %2888 = vmatpush1.msra.mxu0 %v2859
        %2889 = vmatprep.subr.mxu0 0.0
        %2890 = vmatpush1.msra.mxu0 %v2858
        %2891 = vmatprep.subr.mxu0 0.0
        %2892 = vmatpush1.msra.mxu0 %v2857
        %2893 = vmatprep.subr.mxu0 0.0
        %2894 = vmatpush1.msra.mxu0 %v2856
        %2895 = vmatprep.subr.mxu0 0.0
        %2896 = vmatpush1.msra.mxu0 %v2855
        %2897 = vmatprep.subr.mxu0 0.0
        %2898 = vmatpush1.msra.mxu0 %v2854
        %2899 = vmatprep.subr.mxu0 0.0
        %2900 = vmatpush1.msra.mxu0 %v2853
        %2901 = vmatprep.subr.mxu0 0.0
        %2902 = vmatpush1.msra.mxu0 %v2852
        %2903 = vmatprep.subr.mxu0 0.0
        %2904 = vmatpush1.msra.mxu0 %v2851
        %2905 = vmatprep.subr.mxu0 0.0
        %2906 = vmatpush1.msra.mxu0 %v2850
        %2907 = vmatprep.subr.mxu0 0.0
        %2908 = vmatpush1.msra.mxu0 %v2849
        %2909 = vmatprep.subr.mxu0 0.0
        %2910 = vmatpush1.msra.mxu0 %v2848
        %2911 = vmatprep.subr.mxu0 0.0
        %2912 = vmatpush1.msra.mxu0 %v2847
        %2913 = vmatprep.subr.mxu0 0.0
        %2914 = vmatpush1.msra.mxu0 %v2846
        %2915 = vmatprep.subr.mxu0 0.0
        %2916 = vmatpush1.msra.mxu0 %v2845
        %2917 = vmatprep.subr.mxu0 0.0
        %2918 = vmatpush2.msra.mxu0 %v2876
        %2919 = vmatprep.subr.mxu0 0.0
        %2920 = vmatpush2.msra.mxu0 %v2875
        %2921 = vmatprep.subr.mxu0 0.0
        %2922 = vmatpush2.msra.mxu0 %v2874
        %2923 = vmatprep.subr.mxu0 0.0
        %2924 = vmatpush2.msra.mxu0 %v2873
        %2925 = vmatprep.subr.mxu0 0.0
        %2926 = vmatpush2.msra.mxu0 %v2872
        %2927 = vmatprep.subr.mxu0 0.0
        %2928 = vmatpush2.msra.mxu0 %v2871
        %2929 = vmatprep.subr.mxu0 0.0
        %2930 = vmatpush2.msra.mxu0 %v2870
        %2931 = vmatprep.subr.mxu0 0.0
        %2932 = vmatpush2.msra.mxu0 %v2869
        %2933 = vmatprep.subr.mxu0 0.0
        %2934 = vmatpush2.msra.mxu0 %v2868
        %2935 = vmatprep.subr.mxu0 0.0
        %2936 = vmatpush2.msra.mxu0 %v2867
        %2937 = vmatprep.subr.mxu0 0.0
        %2938 = vmatpush2.msra.mxu0 %v2866
        %2939 = vmatprep.subr.mxu0 0.0
        %2940 = vmatpush2.msra.mxu0 %v2865
        %2941 = vmatprep.subr.mxu0 0.0
        %2942 = vmatpush2.msra.mxu0 %v2864
        %2943 = vmatprep.subr.mxu0 0.0
        %2944 = vmatpush2.msra.mxu0 %v2863
        %2945 = vmatprep.subr.mxu0 0.0
        %2946 = vmatpush2.msra.mxu0 %v2862
        %2947 = vmatprep.subr.mxu0 0.0
        %2948 = vmatpush2.msra.mxu0 %v2861
        %2949 = vmatprep.mubr.f32.mxu0 %v2882
        %2950 = vmatmul.mubr.f32.gmra.mxu0 %v2879
        %v2951 = vpop.f32.mrf.mxu0
        %v2952 = vadd.f32 0.0, %v2951
        %v2953 = vpop.f32.mrf.mxu0
        %2954 = vdwg.mxu0
        %v2955 = vadd.f32 %v2843, %v2952
        %s2956 = scalar_lea.vmem %s326, 3840 [#allocation10]
        %v2957 = vld [vmem:[%s2956] sm:$0xff]
        %v2958 = vld [vmem:[%s2956 + $0x8] sm:$0xff]
        %v2959 = vld [vmem:[%s2956 + $0x10] sm:$0xff]
        %v2960 = vld [vmem:[%s2956 + $0x18] sm:$0xff]
        %v2961 = vld [vmem:[%s2956 + $0x20] sm:$0xff]
        %v2962 = vld [vmem:[%s2956 + $0x28] sm:$0xff]
        %v2963 = vld [vmem:[%s2956 + $0x30] sm:$0xff]
        %v2964 = vld [vmem:[%s2956 + $0x38] sm:$0xff]
        %v2965 = vld [vmem:[%s2956 + $0x40] sm:$0xff]
        %v2966 = vld [vmem:[%s2956 + $0x48] sm:$0xff]
        %v2967 = vld [vmem:[%s2956 + $0x50] sm:$0xff]
        %v2968 = vld [vmem:[%s2956 + $0x58] sm:$0xff]
        %v2969 = vld [vmem:[%s2956 + $0x60] sm:$0xff]
        %v2970 = vld [vmem:[%s2956 + $0x68] sm:$0xff]
        %v2971 = vld [vmem:[%s2956 + $0x70] sm:$0xff]
        %v2972 = vld [vmem:[%s2956 + $0x78] sm:$0xff]
        %v2973 = vld [vmem:[%s2956 + $0x80] sm:$0xff]
        %v2974 = vld [vmem:[%s2956 + $0x88] sm:$0xff]
        %v2975 = vld [vmem:[%s2956 + $0x90] sm:$0xff]
        %v2976 = vld [vmem:[%s2956 + $0x98] sm:$0xff]
        %v2977 = vld [vmem:[%s2956 + $0xa0] sm:$0xff]
        %v2978 = vld [vmem:[%s2956 + $0xa8] sm:$0xff]
        %v2979 = vld [vmem:[%s2956 + $0xb0] sm:$0xff]
        %v2980 = vld [vmem:[%s2956 + $0xb8] sm:$0xff]
        %v2981 = vld [vmem:[%s2956 + $0xc0] sm:$0xff]
        %v2982 = vld [vmem:[%s2956 + $0xc8] sm:$0xff]
        %v2983 = vld [vmem:[%s2956 + $0xd0] sm:$0xff]
        %v2984 = vld [vmem:[%s2956 + $0xd8] sm:$0xff]
        %v2985 = vld [vmem:[%s2956 + $0xe0] sm:$0xff]
        %v2986 = vld [vmem:[%s2956 + $0xe8] sm:$0xff]
        %v2987 = vld [vmem:[%s2956 + $0xf0] sm:$0xff]
        %v2988 = vld [vmem:[%s2956 + $0xf8] sm:$0xff]
        %v2989 = vrot.slane %v1264, 7
        %v2990 = vrot.slane %v1272, 6
        %v2991 = vsel %vm1348, %v2990, %v2989
        %v2992 = vrot.slane %v1265, 7
        %v2993 = vrot.slane %v1273, 6
        %v2994 = vsel %vm1348, %v2993, %v2992
        %2997 = vmatprep.subr.mxu0 0.0
        %2998 = vmatpush1.msra.mxu0 %v2972
        %2999 = vmatprep.subr.mxu0 0.0
        %3000 = vmatpush1.msra.mxu0 %v2971
        %3001 = vmatprep.subr.mxu0 0.0
        %3002 = vmatpush1.msra.mxu0 %v2970
        %3003 = vmatprep.subr.mxu0 0.0
        %3004 = vmatpush1.msra.mxu0 %v2969
        %3005 = vmatprep.subr.mxu0 0.0
        %3006 = vmatpush1.msra.mxu0 %v2968
        %3007 = vmatprep.subr.mxu0 0.0
        %3008 = vmatpush1.msra.mxu0 %v2967
        %3009 = vmatprep.subr.mxu0 0.0
        %3010 = vmatpush1.msra.mxu0 %v2966
        %3011 = vmatprep.subr.mxu0 0.0
        %3012 = vmatpush1.msra.mxu0 %v2965
        %3013 = vmatprep.subr.mxu0 0.0
        %3014 = vmatpush1.msra.mxu0 %v2964
        %3015 = vmatprep.subr.mxu0 0.0
        %3016 = vmatpush1.msra.mxu0 %v2963
        %3017 = vmatprep.subr.mxu0 0.0
        %3018 = vmatpush1.msra.mxu0 %v2962
        %3019 = vmatprep.subr.mxu0 0.0
        %3020 = vmatpush1.msra.mxu0 %v2961
        %3021 = vmatprep.subr.mxu0 0.0
        %3022 = vmatpush1.msra.mxu0 %v2960
        %3023 = vmatprep.subr.mxu0 0.0
        %3024 = vmatpush1.msra.mxu0 %v2959
        %3025 = vmatprep.subr.mxu0 0.0
        %3026 = vmatpush1.msra.mxu0 %v2958
        %3027 = vmatprep.subr.mxu0 0.0
        %3028 = vmatpush1.msra.mxu0 %v2957
        %3029 = vmatprep.subr.mxu0 0.0
        %3030 = vmatpush2.msra.mxu0 %v2988
        %3031 = vmatprep.subr.mxu0 0.0
        %3032 = vmatpush2.msra.mxu0 %v2987
        %3033 = vmatprep.subr.mxu0 0.0
        %3034 = vmatpush2.msra.mxu0 %v2986
        %3035 = vmatprep.subr.mxu0 0.0
        %3036 = vmatpush2.msra.mxu0 %v2985
        %3037 = vmatprep.subr.mxu0 0.0
        %3038 = vmatpush2.msra.mxu0 %v2984
        %3039 = vmatprep.subr.mxu0 0.0
        %3040 = vmatpush2.msra.mxu0 %v2983
        %3041 = vmatprep.subr.mxu0 0.0
        %3042 = vmatpush2.msra.mxu0 %v2982
        %3043 = vmatprep.subr.mxu0 0.0
        %3044 = vmatpush2.msra.mxu0 %v2981
        %3045 = vmatprep.subr.mxu0 0.0
        %3046 = vmatpush2.msra.mxu0 %v2980
        %3047 = vmatprep.subr.mxu0 0.0
        %3048 = vmatpush2.msra.mxu0 %v2979
        %3049 = vmatprep.subr.mxu0 0.0
        %3050 = vmatpush2.msra.mxu0 %v2978
        %3051 = vmatprep.subr.mxu0 0.0
        %3052 = vmatpush2.msra.mxu0 %v2977
        %3053 = vmatprep.subr.mxu0 0.0
        %3054 = vmatpush2.msra.mxu0 %v2976
        %3055 = vmatprep.subr.mxu0 0.0
        %3056 = vmatpush2.msra.mxu0 %v2975
        %3057 = vmatprep.subr.mxu0 0.0
        %3058 = vmatpush2.msra.mxu0 %v2974
        %3059 = vmatprep.subr.mxu0 0.0
        %3060 = vmatpush2.msra.mxu0 %v2973
        %3061 = vmatprep.mubr.f32.mxu0 %v2994
        %3062 = vmatmul.mubr.f32.gmra.mxu0 %v2991
        %v3063 = vpop.f32.mrf.mxu0
        %v3064 = vadd.f32 0.0, %v3063
        %v3065 = vpop.f32.mrf.mxu0
        %3066 = vdwg.mxu0
        %v3067 = vadd.f32 %v2955, %v3064
        %s3068 = scalar_lea.vmem %s326, 4096 [#allocation10]
        %v3069 = vld [vmem:[%s3068] sm:$0xff]
        %v3070 = vld [vmem:[%s3068 + $0x8] sm:$0xff]
        %v3071 = vld [vmem:[%s3068 + $0x10] sm:$0xff]
        %v3072 = vld [vmem:[%s3068 + $0x18] sm:$0xff]
        %v3073 = vld [vmem:[%s3068 + $0x20] sm:$0xff]
        %v3074 = vld [vmem:[%s3068 + $0x28] sm:$0xff]
        %v3075 = vld [vmem:[%s3068 + $0x30] sm:$0xff]
        %v3076 = vld [vmem:[%s3068 + $0x38] sm:$0xff]
        %v3077 = vld [vmem:[%s3068 + $0x40] sm:$0xff]
        %v3078 = vld [vmem:[%s3068 + $0x48] sm:$0xff]
        %v3079 = vld [vmem:[%s3068 + $0x50] sm:$0xff]
        %v3080 = vld [vmem:[%s3068 + $0x58] sm:$0xff]
        %v3081 = vld [vmem:[%s3068 + $0x60] sm:$0xff]
        %v3082 = vld [vmem:[%s3068 + $0x68] sm:$0xff]
        %v3083 = vld [vmem:[%s3068 + $0x70] sm:$0xff]
        %v3084 = vld [vmem:[%s3068 + $0x78] sm:$0xff]
        %v3085 = vld [vmem:[%s3068 + $0x80] sm:$0xff]
        %v3086 = vld [vmem:[%s3068 + $0x88] sm:$0xff]
        %v3087 = vld [vmem:[%s3068 + $0x90] sm:$0xff]
        %v3088 = vld [vmem:[%s3068 + $0x98] sm:$0xff]
        %v3089 = vld [vmem:[%s3068 + $0xa0] sm:$0xff]
        %v3090 = vld [vmem:[%s3068 + $0xa8] sm:$0xff]
        %v3091 = vld [vmem:[%s3068 + $0xb0] sm:$0xff]
        %v3092 = vld [vmem:[%s3068 + $0xb8] sm:$0xff]
        %v3093 = vld [vmem:[%s3068 + $0xc0] sm:$0xff]
        %v3094 = vld [vmem:[%s3068 + $0xc8] sm:$0xff]
        %v3095 = vld [vmem:[%s3068 + $0xd0] sm:$0xff]
        %v3096 = vld [vmem:[%s3068 + $0xd8] sm:$0xff]
        %v3097 = vld [vmem:[%s3068 + $0xe0] sm:$0xff]
        %v3098 = vld [vmem:[%s3068 + $0xe8] sm:$0xff]
        %v3099 = vld [vmem:[%s3068 + $0xf0] sm:$0xff]
        %v3100 = vld [vmem:[%s3068 + $0xf8] sm:$0xff]
        %v3105 = vrot.slane %v1274, 7
        %v3106 = vsel %vm1348, %v3105, %v1266
        %v3107 = vrot.slane %v1275, 7
        %v3108 = vsel %vm1348, %v3107, %v1267
        %3111 = vmatprep.subr.mxu0 0.0
        %3112 = vmatpush1.msra.mxu0 %v3084
        %3113 = vmatprep.subr.mxu0 0.0
        %3114 = vmatpush1.msra.mxu0 %v3083
        %3115 = vmatprep.subr.mxu0 0.0
        %3116 = vmatpush1.msra.mxu0 %v3082
        %3117 = vmatprep.subr.mxu0 0.0
        %3118 = vmatpush1.msra.mxu0 %v3081
        %3119 = vmatprep.subr.mxu0 0.0
        %3120 = vmatpush1.msra.mxu0 %v3080
        %3121 = vmatprep.subr.mxu0 0.0
        %3122 = vmatpush1.msra.mxu0 %v3079
        %3123 = vmatprep.subr.mxu0 0.0
        %3124 = vmatpush1.msra.mxu0 %v3078
        %3125 = vmatprep.subr.mxu0 0.0
        %3126 = vmatpush1.msra.mxu0 %v3077
        %3127 = vmatprep.subr.mxu0 0.0
        %3128 = vmatpush1.msra.mxu0 %v3076
        %3129 = vmatprep.subr.mxu0 0.0
        %3130 = vmatpush1.msra.mxu0 %v3075
        %3131 = vmatprep.subr.mxu0 0.0
        %3132 = vmatpush1.msra.mxu0 %v3074
        %3133 = vmatprep.subr.mxu0 0.0
        %3134 = vmatpush1.msra.mxu0 %v3073
        %3135 = vmatprep.subr.mxu0 0.0
        %3136 = vmatpush1.msra.mxu0 %v3072
        %3137 = vmatprep.subr.mxu0 0.0
        %3138 = vmatpush1.msra.mxu0 %v3071
        %3139 = vmatprep.subr.mxu0 0.0
        %3140 = vmatpush1.msra.mxu0 %v3070
        %3141 = vmatprep.subr.mxu0 0.0
        %3142 = vmatpush1.msra.mxu0 %v3069
        %3143 = vmatprep.subr.mxu0 0.0
        %3144 = vmatpush2.msra.mxu0 %v3100
        %3145 = vmatprep.subr.mxu0 0.0
        %3146 = vmatpush2.msra.mxu0 %v3099
        %3147 = vmatprep.subr.mxu0 0.0
        %3148 = vmatpush2.msra.mxu0 %v3098
        %3149 = vmatprep.subr.mxu0 0.0
        %3150 = vmatpush2.msra.mxu0 %v3097
        %3151 = vmatprep.subr.mxu0 0.0
        %3152 = vmatpush2.msra.mxu0 %v3096
        %3153 = vmatprep.subr.mxu0 0.0
        %3154 = vmatpush2.msra.mxu0 %v3095
        %3155 = vmatprep.subr.mxu0 0.0
        %3156 = vmatpush2.msra.mxu0 %v3094
        %3157 = vmatprep.subr.mxu0 0.0
        %3158 = vmatpush2.msra.mxu0 %v3093
        %3159 = vmatprep.subr.mxu0 0.0
        %3160 = vmatpush2.msra.mxu0 %v3092
        %3161 = vmatprep.subr.mxu0 0.0
        %3162 = vmatpush2.msra.mxu0 %v3091
        %3163 = vmatprep.subr.mxu0 0.0
        %3164 = vmatpush2.msra.mxu0 %v3090
        %3165 = vmatprep.subr.mxu0 0.0
        %3166 = vmatpush2.msra.mxu0 %v3089
        %3167 = vmatprep.subr.mxu0 0.0
        %3168 = vmatpush2.msra.mxu0 %v3088
        %3169 = vmatprep.subr.mxu0 0.0
        %3170 = vmatpush2.msra.mxu0 %v3087
        %3171 = vmatprep.subr.mxu0 0.0
        %3172 = vmatpush2.msra.mxu0 %v3086
        %3173 = vmatprep.subr.mxu0 0.0
        %3174 = vmatpush2.msra.mxu0 %v3085
        %3175 = vmatprep.mubr.f32.mxu0 %v3108
        %3176 = vmatmul.mubr.f32.gmra.mxu0 %v3106
        %v3177 = vpop.f32.mrf.mxu0
        %v3178 = vadd.f32 0.0, %v3177
        %v3179 = vpop.f32.mrf.mxu0
        %3180 = vdwg.mxu0
        %v3181 = vadd.f32 %v3067, %v3178
        %s3182 = scalar_lea.vmem %s326, 4352 [#allocation10]
        %v3183 = vld [vmem:[%s3182] sm:$0xff]
        %v3184 = vld [vmem:[%s3182 + $0x8] sm:$0xff]
        %v3185 = vld [vmem:[%s3182 + $0x10] sm:$0xff]
        %v3186 = vld [vmem:[%s3182 + $0x18] sm:$0xff]
        %v3187 = vld [vmem:[%s3182 + $0x20] sm:$0xff]
        %v3188 = vld [vmem:[%s3182 + $0x28] sm:$0xff]
        %v3189 = vld [vmem:[%s3182 + $0x30] sm:$0xff]
        %v3190 = vld [vmem:[%s3182 + $0x38] sm:$0xff]
        %v3191 = vld [vmem:[%s3182 + $0x40] sm:$0xff]
        %v3192 = vld [vmem:[%s3182 + $0x48] sm:$0xff]
        %v3193 = vld [vmem:[%s3182 + $0x50] sm:$0xff]
        %v3194 = vld [vmem:[%s3182 + $0x58] sm:$0xff]
        %v3195 = vld [vmem:[%s3182 + $0x60] sm:$0xff]
        %v3196 = vld [vmem:[%s3182 + $0x68] sm:$0xff]
        %v3197 = vld [vmem:[%s3182 + $0x70] sm:$0xff]
        %v3198 = vld [vmem:[%s3182 + $0x78] sm:$0xff]
        %v3199 = vld [vmem:[%s3182 + $0x80] sm:$0xff]
        %v3200 = vld [vmem:[%s3182 + $0x88] sm:$0xff]
        %v3201 = vld [vmem:[%s3182 + $0x90] sm:$0xff]
        %v3202 = vld [vmem:[%s3182 + $0x98] sm:$0xff]
        %v3203 = vld [vmem:[%s3182 + $0xa0] sm:$0xff]
        %v3204 = vld [vmem:[%s3182 + $0xa8] sm:$0xff]
        %v3205 = vld [vmem:[%s3182 + $0xb0] sm:$0xff]
        %v3206 = vld [vmem:[%s3182 + $0xb8] sm:$0xff]
        %v3207 = vld [vmem:[%s3182 + $0xc0] sm:$0xff]
        %v3208 = vld [vmem:[%s3182 + $0xc8] sm:$0xff]
        %v3209 = vld [vmem:[%s3182 + $0xd0] sm:$0xff]
        %v3210 = vld [vmem:[%s3182 + $0xd8] sm:$0xff]
        %v3211 = vld [vmem:[%s3182 + $0xe0] sm:$0xff]
        %v3212 = vld [vmem:[%s3182 + $0xe8] sm:$0xff]
        %v3213 = vld [vmem:[%s3182 + $0xf0] sm:$0xff]
        %v3214 = vld [vmem:[%s3182 + $0xf8] sm:$0xff]
        %v3215 = vrot.slane %v1266, 1
        %v3216 = vsel %vm1348, %v1274, %v3215
        %v3217 = vrot.slane %v1267, 1
        %v3218 = vsel %vm1348, %v1275, %v3217
        %3221 = vmatprep.subr.mxu0 0.0
        %3222 = vmatpush1.msra.mxu0 %v3198
        %3223 = vmatprep.subr.mxu0 0.0
        %3224 = vmatpush1.msra.mxu0 %v3197
        %3225 = vmatprep.subr.mxu0 0.0
        %3226 = vmatpush1.msra.mxu0 %v3196
        %3227 = vmatprep.subr.mxu0 0.0
        %3228 = vmatpush1.msra.mxu0 %v3195
        %3229 = vmatprep.subr.mxu0 0.0
        %3230 = vmatpush1.msra.mxu0 %v3194
        %3231 = vmatprep.subr.mxu0 0.0
        %3232 = vmatpush1.msra.mxu0 %v3193
        %3233 = vmatprep.subr.mxu0 0.0
        %3234 = vmatpush1.msra.mxu0 %v3192
        %3235 = vmatprep.subr.mxu0 0.0
        %3236 = vmatpush1.msra.mxu0 %v3191
        %3237 = vmatprep.subr.mxu0 0.0
        %3238 = vmatpush1.msra.mxu0 %v3190
        %3239 = vmatprep.subr.mxu0 0.0
        %3240 = vmatpush1.msra.mxu0 %v3189
        %3241 = vmatprep.subr.mxu0 0.0
        %3242 = vmatpush1.msra.mxu0 %v3188
        %3243 = vmatprep.subr.mxu0 0.0
        %3244 = vmatpush1.msra.mxu0 %v3187
        %3245 = vmatprep.subr.mxu0 0.0
        %3246 = vmatpush1.msra.mxu0 %v3186
        %3247 = vmatprep.subr.mxu0 0.0
        %3248 = vmatpush1.msra.mxu0 %v3185
        %3249 = vmatprep.subr.mxu0 0.0
        %3250 = vmatpush1.msra.mxu0 %v3184
        %3251 = vmatprep.subr.mxu0 0.0
        %3252 = vmatpush1.msra.mxu0 %v3183
        %3253 = vmatprep.subr.mxu0 0.0
        %3254 = vmatpush2.msra.mxu0 %v3214
        %3255 = vmatprep.subr.mxu0 0.0
        %3256 = vmatpush2.msra.mxu0 %v3213
        %3257 = vmatprep.subr.mxu0 0.0
        %3258 = vmatpush2.msra.mxu0 %v3212
        %3259 = vmatprep.subr.mxu0 0.0
        %3260 = vmatpush2.msra.mxu0 %v3211
        %3261 = vmatprep.subr.mxu0 0.0
        %3262 = vmatpush2.msra.mxu0 %v3210
        %3263 = vmatprep.subr.mxu0 0.0
        %3264 = vmatpush2.msra.mxu0 %v3209
        %3265 = vmatprep.subr.mxu0 0.0
        %3266 = vmatpush2.msra.mxu0 %v3208
        %3267 = vmatprep.subr.mxu0 0.0
        %3268 = vmatpush2.msra.mxu0 %v3207
        %3269 = vmatprep.subr.mxu0 0.0
        %3270 = vmatpush2.msra.mxu0 %v3206
        %3271 = vmatprep.subr.mxu0 0.0
        %3272 = vmatpush2.msra.mxu0 %v3205
        %3273 = vmatprep.subr.mxu0 0.0
        %3274 = vmatpush2.msra.mxu0 %v3204
        %3275 = vmatprep.subr.mxu0 0.0
        %3276 = vmatpush2.msra.mxu0 %v3203
        %3277 = vmatprep.subr.mxu0 0.0
        %3278 = vmatpush2.msra.mxu0 %v3202
        %3279 = vmatprep.subr.mxu0 0.0
        %3280 = vmatpush2.msra.mxu0 %v3201
        %3281 = vmatprep.subr.mxu0 0.0
        %3282 = vmatpush2.msra.mxu0 %v3200
        %3283 = vmatprep.subr.mxu0 0.0
        %3284 = vmatpush2.msra.mxu0 %v3199
        %3285 = vmatprep.mubr.f32.mxu0 %v3218
        %3286 = vmatmul.mubr.f32.gmra.mxu0 %v3216
        %v3287 = vpop.f32.mrf.mxu0
        %v3288 = vadd.f32 0.0, %v3287
        %v3289 = vpop.f32.mrf.mxu0
        %3290 = vdwg.mxu0
        %v3291 = vadd.f32 %v3181, %v3288
        %s3292 = scalar_lea.vmem %s326, 4608 [#allocation10]
        %v3293 = vld [vmem:[%s3292] sm:$0xff]
        %v3294 = vld [vmem:[%s3292 + $0x8] sm:$0xff]
        %v3295 = vld [vmem:[%s3292 + $0x10] sm:$0xff]
        %v3296 = vld [vmem:[%s3292 + $0x18] sm:$0xff]
        %v3297 = vld [vmem:[%s3292 + $0x20] sm:$0xff]
        %v3298 = vld [vmem:[%s3292 + $0x28] sm:$0xff]
        %v3299 = vld [vmem:[%s3292 + $0x30] sm:$0xff]
        %v3300 = vld [vmem:[%s3292 + $0x38] sm:$0xff]
        %v3301 = vld [vmem:[%s3292 + $0x40] sm:$0xff]
        %v3302 = vld [vmem:[%s3292 + $0x48] sm:$0xff]
        %v3303 = vld [vmem:[%s3292 + $0x50] sm:$0xff]
        %v3304 = vld [vmem:[%s3292 + $0x58] sm:$0xff]
        %v3305 = vld [vmem:[%s3292 + $0x60] sm:$0xff]
        %v3306 = vld [vmem:[%s3292 + $0x68] sm:$0xff]
        %v3307 = vld [vmem:[%s3292 + $0x70] sm:$0xff]
        %v3308 = vld [vmem:[%s3292 + $0x78] sm:$0xff]
        %v3309 = vld [vmem:[%s3292 + $0x80] sm:$0xff]
        %v3310 = vld [vmem:[%s3292 + $0x88] sm:$0xff]
        %v3311 = vld [vmem:[%s3292 + $0x90] sm:$0xff]
        %v3312 = vld [vmem:[%s3292 + $0x98] sm:$0xff]
        %v3313 = vld [vmem:[%s3292 + $0xa0] sm:$0xff]
        %v3314 = vld [vmem:[%s3292 + $0xa8] sm:$0xff]
        %v3315 = vld [vmem:[%s3292 + $0xb0] sm:$0xff]
        %v3316 = vld [vmem:[%s3292 + $0xb8] sm:$0xff]
        %v3317 = vld [vmem:[%s3292 + $0xc0] sm:$0xff]
        %v3318 = vld [vmem:[%s3292 + $0xc8] sm:$0xff]
        %v3319 = vld [vmem:[%s3292 + $0xd0] sm:$0xff]
        %v3320 = vld [vmem:[%s3292 + $0xd8] sm:$0xff]
        %v3321 = vld [vmem:[%s3292 + $0xe0] sm:$0xff]
        %v3322 = vld [vmem:[%s3292 + $0xe8] sm:$0xff]
        %v3323 = vld [vmem:[%s3292 + $0xf0] sm:$0xff]
        %v3324 = vld [vmem:[%s3292 + $0xf8] sm:$0xff]
        %v3325 = vrot.slane %v1266, 2
        %v3326 = vrot.slane %v1274, 1
        %v3327 = vsel %vm1348, %v3326, %v3325
        %v3328 = vrot.slane %v1267, 2
        %v3329 = vrot.slane %v1275, 1
        %v3330 = vsel %vm1348, %v3329, %v3328
        %3333 = vmatprep.subr.mxu0 0.0
        %3334 = vmatpush1.msra.mxu0 %v3308
        %3335 = vmatprep.subr.mxu0 0.0
        %3336 = vmatpush1.msra.mxu0 %v3307
        %3337 = vmatprep.subr.mxu0 0.0
        %3338 = vmatpush1.msra.mxu0 %v3306
        %3339 = vmatprep.subr.mxu0 0.0
        %3340 = vmatpush1.msra.mxu0 %v3305
        %3341 = vmatprep.subr.mxu0 0.0
        %3342 = vmatpush1.msra.mxu0 %v3304
        %3343 = vmatprep.subr.mxu0 0.0
        %3344 = vmatpush1.msra.mxu0 %v3303
        %3345 = vmatprep.subr.mxu0 0.0
        %3346 = vmatpush1.msra.mxu0 %v3302
        %3347 = vmatprep.subr.mxu0 0.0
        %3348 = vmatpush1.msra.mxu0 %v3301
        %3349 = vmatprep.subr.mxu0 0.0
        %3350 = vmatpush1.msra.mxu0 %v3300
        %3351 = vmatprep.subr.mxu0 0.0
        %3352 = vmatpush1.msra.mxu0 %v3299
        %3353 = vmatprep.subr.mxu0 0.0
        %3354 = vmatpush1.msra.mxu0 %v3298
        %3355 = vmatprep.subr.mxu0 0.0
        %3356 = vmatpush1.msra.mxu0 %v3297
        %3357 = vmatprep.subr.mxu0 0.0
        %3358 = vmatpush1.msra.mxu0 %v3296
        %3359 = vmatprep.subr.mxu0 0.0
        %3360 = vmatpush1.msra.mxu0 %v3295
        %3361 = vmatprep.subr.mxu0 0.0
        %3362 = vmatpush1.msra.mxu0 %v3294
        %3363 = vmatprep.subr.mxu0 0.0
        %3364 = vmatpush1.msra.mxu0 %v3293
        %3365 = vmatprep.subr.mxu0 0.0
        %3366 = vmatpush2.msra.mxu0 %v3324
        %3367 = vmatprep.subr.mxu0 0.0
        %3368 = vmatpush2.msra.mxu0 %v3323
        %3369 = vmatprep.subr.mxu0 0.0
        %3370 = vmatpush2.msra.mxu0 %v3322
        %3371 = vmatprep.subr.mxu0 0.0
        %3372 = vmatpush2.msra.mxu0 %v3321
        %3373 = vmatprep.subr.mxu0 0.0
        %3374 = vmatpush2.msra.mxu0 %v3320
        %3375 = vmatprep.subr.mxu0 0.0
        %3376 = vmatpush2.msra.mxu0 %v3319
        %3377 = vmatprep.subr.mxu0 0.0
        %3378 = vmatpush2.msra.mxu0 %v3318
        %3379 = vmatprep.subr.mxu0 0.0
        %3380 = vmatpush2.msra.mxu0 %v3317
        %3381 = vmatprep.subr.mxu0 0.0
        %3382 = vmatpush2.msra.mxu0 %v3316
        %3383 = vmatprep.subr.mxu0 0.0
        %3384 = vmatpush2.msra.mxu0 %v3315
        %3385 = vmatprep.subr.mxu0 0.0
        %3386 = vmatpush2.msra.mxu0 %v3314
        %3387 = vmatprep.subr.mxu0 0.0
        %3388 = vmatpush2.msra.mxu0 %v3313
        %3389 = vmatprep.subr.mxu0 0.0
        %3390 = vmatpush2.msra.mxu0 %v3312
        %3391 = vmatprep.subr.mxu0 0.0
        %3392 = vmatpush2.msra.mxu0 %v3311
        %3393 = vmatprep.subr.mxu0 0.0
        %3394 = vmatpush2.msra.mxu0 %v3310
        %3395 = vmatprep.subr.mxu0 0.0
        %3396 = vmatpush2.msra.mxu0 %v3309
        %3397 = vmatprep.mubr.f32.mxu0 %v3330
        %3398 = vmatmul.mubr.f32.gmra.mxu0 %v3327
        %v3399 = vpop.f32.mrf.mxu0
        %v3400 = vadd.f32 0.0, %v3399
        %v3401 = vpop.f32.mrf.mxu0
        %3402 = vdwg.mxu0
        %v3403 = vadd.f32 %v3291, %v3400
        %s3404 = scalar_lea.vmem %s326, 4864 [#allocation10]
        %v3405 = vld [vmem:[%s3404] sm:$0xff]
        %v3406 = vld [vmem:[%s3404 + $0x8] sm:$0xff]
        %v3407 = vld [vmem:[%s3404 + $0x10] sm:$0xff]
        %v3408 = vld [vmem:[%s3404 + $0x18] sm:$0xff]
        %v3409 = vld [vmem:[%s3404 + $0x20] sm:$0xff]
        %v3410 = vld [vmem:[%s3404 + $0x28] sm:$0xff]
        %v3411 = vld [vmem:[%s3404 + $0x30] sm:$0xff]
        %v3412 = vld [vmem:[%s3404 + $0x38] sm:$0xff]
        %v3413 = vld [vmem:[%s3404 + $0x40] sm:$0xff]
        %v3414 = vld [vmem:[%s3404 + $0x48] sm:$0xff]
        %v3415 = vld [vmem:[%s3404 + $0x50] sm:$0xff]
        %v3416 = vld [vmem:[%s3404 + $0x58] sm:$0xff]
        %v3417 = vld [vmem:[%s3404 + $0x60] sm:$0xff]
        %v3418 = vld [vmem:[%s3404 + $0x68] sm:$0xff]
        %v3419 = vld [vmem:[%s3404 + $0x70] sm:$0xff]
        %v3420 = vld [vmem:[%s3404 + $0x78] sm:$0xff]
        %v3421 = vld [vmem:[%s3404 + $0x80] sm:$0xff]
        %v3422 = vld [vmem:[%s3404 + $0x88] sm:$0xff]
        %v3423 = vld [vmem:[%s3404 + $0x90] sm:$0xff]
        %v3424 = vld [vmem:[%s3404 + $0x98] sm:$0xff]
        %v3425 = vld [vmem:[%s3404 + $0xa0] sm:$0xff]
        %v3426 = vld [vmem:[%s3404 + $0xa8] sm:$0xff]
        %v3427 = vld [vmem:[%s3404 + $0xb0] sm:$0xff]
        %v3428 = vld [vmem:[%s3404 + $0xb8] sm:$0xff]
        %v3429 = vld [vmem:[%s3404 + $0xc0] sm:$0xff]
        %v3430 = vld [vmem:[%s3404 + $0xc8] sm:$0xff]
        %v3431 = vld [vmem:[%s3404 + $0xd0] sm:$0xff]
        %v3432 = vld [vmem:[%s3404 + $0xd8] sm:$0xff]
        %v3433 = vld [vmem:[%s3404 + $0xe0] sm:$0xff]
        %v3434 = vld [vmem:[%s3404 + $0xe8] sm:$0xff]
        %v3435 = vld [vmem:[%s3404 + $0xf0] sm:$0xff]
        %v3436 = vld [vmem:[%s3404 + $0xf8] sm:$0xff]
        %v3437 = vrot.slane %v1266, 3
        %v3438 = vrot.slane %v1274, 2
        %v3439 = vsel %vm1348, %v3438, %v3437
        %v3440 = vrot.slane %v1267, 3
        %v3441 = vrot.slane %v1275, 2
        %v3442 = vsel %vm1348, %v3441, %v3440
        %3445 = vmatprep.subr.mxu0 0.0
        %3446 = vmatpush1.msra.mxu0 %v3420
        %3447 = vmatprep.subr.mxu0 0.0
        %3448 = vmatpush1.msra.mxu0 %v3419
        %3449 = vmatprep.subr.mxu0 0.0
        %3450 = vmatpush1.msra.mxu0 %v3418
        %3451 = vmatprep.subr.mxu0 0.0
        %3452 = vmatpush1.msra.mxu0 %v3417
        %3453 = vmatprep.subr.mxu0 0.0
        %3454 = vmatpush1.msra.mxu0 %v3416
        %3455 = vmatprep.subr.mxu0 0.0
        %3456 = vmatpush1.msra.mxu0 %v3415
        %3457 = vmatprep.subr.mxu0 0.0
        %3458 = vmatpush1.msra.mxu0 %v3414
        %3459 = vmatprep.subr.mxu0 0.0
        %3460 = vmatpush1.msra.mxu0 %v3413
        %3461 = vmatprep.subr.mxu0 0.0
        %3462 = vmatpush1.msra.mxu0 %v3412
        %3463 = vmatprep.subr.mxu0 0.0
        %3464 = vmatpush1.msra.mxu0 %v3411
        %3465 = vmatprep.subr.mxu0 0.0
        %3466 = vmatpush1.msra.mxu0 %v3410
        %3467 = vmatprep.subr.mxu0 0.0
        %3468 = vmatpush1.msra.mxu0 %v3409
        %3469 = vmatprep.subr.mxu0 0.0
        %3470 = vmatpush1.msra.mxu0 %v3408
        %3471 = vmatprep.subr.mxu0 0.0
        %3472 = vmatpush1.msra.mxu0 %v3407
        %3473 = vmatprep.subr.mxu0 0.0
        %3474 = vmatpush1.msra.mxu0 %v3406
        %3475 = vmatprep.subr.mxu0 0.0
        %3476 = vmatpush1.msra.mxu0 %v3405
        %3477 = vmatprep.subr.mxu0 0.0
        %3478 = vmatpush2.msra.mxu0 %v3436
        %3479 = vmatprep.subr.mxu0 0.0
        %3480 = vmatpush2.msra.mxu0 %v3435
        %3481 = vmatprep.subr.mxu0 0.0
        %3482 = vmatpush2.msra.mxu0 %v3434
        %3483 = vmatprep.subr.mxu0 0.0
        %3484 = vmatpush2.msra.mxu0 %v3433
        %3485 = vmatprep.subr.mxu0 0.0
        %3486 = vmatpush2.msra.mxu0 %v3432
        %3487 = vmatprep.subr.mxu0 0.0
        %3488 = vmatpush2.msra.mxu0 %v3431
        %3489 = vmatprep.subr.mxu0 0.0
        %3490 = vmatpush2.msra.mxu0 %v3430
        %3491 = vmatprep.subr.mxu0 0.0
        %3492 = vmatpush2.msra.mxu0 %v3429
        %3493 = vmatprep.subr.mxu0 0.0
        %3494 = vmatpush2.msra.mxu0 %v3428
        %3495 = vmatprep.subr.mxu0 0.0
        %3496 = vmatpush2.msra.mxu0 %v3427
        %3497 = vmatprep.subr.mxu0 0.0
        %3498 = vmatpush2.msra.mxu0 %v3426
        %3499 = vmatprep.subr.mxu0 0.0
        %3500 = vmatpush2.msra.mxu0 %v3425
        %3501 = vmatprep.subr.mxu0 0.0
        %3502 = vmatpush2.msra.mxu0 %v3424
        %3503 = vmatprep.subr.mxu0 0.0
        %3504 = vmatpush2.msra.mxu0 %v3423
        %3505 = vmatprep.subr.mxu0 0.0
        %3506 = vmatpush2.msra.mxu0 %v3422
        %3507 = vmatprep.subr.mxu0 0.0
        %3508 = vmatpush2.msra.mxu0 %v3421
        %3509 = vmatprep.mubr.f32.mxu0 %v3442
        %3510 = vmatmul.mubr.f32.gmra.mxu0 %v3439
        %v3511 = vpop.f32.mrf.mxu0
        %v3512 = vadd.f32 0.0, %v3511
        %v3513 = vpop.f32.mrf.mxu0
        %3514 = vdwg.mxu0
        %v3515 = vadd.f32 %v3403, %v3512
        %s3516 = scalar_lea.vmem %s326, 5120 [#allocation10]
        %v3517 = vld [vmem:[%s3516] sm:$0xff]
        %v3518 = vld [vmem:[%s3516 + $0x8] sm:$0xff]
        %v3519 = vld [vmem:[%s3516 + $0x10] sm:$0xff]
        %v3520 = vld [vmem:[%s3516 + $0x18] sm:$0xff]
        %v3521 = vld [vmem:[%s3516 + $0x20] sm:$0xff]
        %v3522 = vld [vmem:[%s3516 + $0x28] sm:$0xff]
        %v3523 = vld [vmem:[%s3516 + $0x30] sm:$0xff]
        %v3524 = vld [vmem:[%s3516 + $0x38] sm:$0xff]
        %v3525 = vld [vmem:[%s3516 + $0x40] sm:$0xff]
        %v3526 = vld [vmem:[%s3516 + $0x48] sm:$0xff]
        %v3527 = vld [vmem:[%s3516 + $0x50] sm:$0xff]
        %v3528 = vld [vmem:[%s3516 + $0x58] sm:$0xff]
        %v3529 = vld [vmem:[%s3516 + $0x60] sm:$0xff]
        %v3530 = vld [vmem:[%s3516 + $0x68] sm:$0xff]
        %v3531 = vld [vmem:[%s3516 + $0x70] sm:$0xff]
        %v3532 = vld [vmem:[%s3516 + $0x78] sm:$0xff]
        %v3533 = vld [vmem:[%s3516 + $0x80] sm:$0xff]
        %v3534 = vld [vmem:[%s3516 + $0x88] sm:$0xff]
        %v3535 = vld [vmem:[%s3516 + $0x90] sm:$0xff]
        %v3536 = vld [vmem:[%s3516 + $0x98] sm:$0xff]
        %v3537 = vld [vmem:[%s3516 + $0xa0] sm:$0xff]
        %v3538 = vld [vmem:[%s3516 + $0xa8] sm:$0xff]
        %v3539 = vld [vmem:[%s3516 + $0xb0] sm:$0xff]
        %v3540 = vld [vmem:[%s3516 + $0xb8] sm:$0xff]
        %v3541 = vld [vmem:[%s3516 + $0xc0] sm:$0xff]
        %v3542 = vld [vmem:[%s3516 + $0xc8] sm:$0xff]
        %v3543 = vld [vmem:[%s3516 + $0xd0] sm:$0xff]
        %v3544 = vld [vmem:[%s3516 + $0xd8] sm:$0xff]
        %v3545 = vld [vmem:[%s3516 + $0xe0] sm:$0xff]
        %v3546 = vld [vmem:[%s3516 + $0xe8] sm:$0xff]
        %v3547 = vld [vmem:[%s3516 + $0xf0] sm:$0xff]
        %v3548 = vld [vmem:[%s3516 + $0xf8] sm:$0xff]
        %v3549 = vrot.slane %v1266, 4
        %v3550 = vrot.slane %v1274, 3
        %v3551 = vsel %vm1348, %v3550, %v3549
        %v3552 = vrot.slane %v1267, 4
        %v3553 = vrot.slane %v1275, 3
        %v3554 = vsel %vm1348, %v3553, %v3552
        %3557 = vmatprep.subr.mxu0 0.0
        %3558 = vmatpush1.msra.mxu0 %v3532
        %3559 = vmatprep.subr.mxu0 0.0
        %3560 = vmatpush1.msra.mxu0 %v3531
        %3561 = vmatprep.subr.mxu0 0.0
        %3562 = vmatpush1.msra.mxu0 %v3530
        %3563 = vmatprep.subr.mxu0 0.0
        %3564 = vmatpush1.msra.mxu0 %v3529
        %3565 = vmatprep.subr.mxu0 0.0
        %3566 = vmatpush1.msra.mxu0 %v3528
        %3567 = vmatprep.subr.mxu0 0.0
        %3568 = vmatpush1.msra.mxu0 %v3527
        %3569 = vmatprep.subr.mxu0 0.0
        %3570 = vmatpush1.msra.mxu0 %v3526
        %3571 = vmatprep.subr.mxu0 0.0
        %3572 = vmatpush1.msra.mxu0 %v3525
        %3573 = vmatprep.subr.mxu0 0.0
        %3574 = vmatpush1.msra.mxu0 %v3524
        %3575 = vmatprep.subr.mxu0 0.0
        %3576 = vmatpush1.msra.mxu0 %v3523
        %3577 = vmatprep.subr.mxu0 0.0
        %3578 = vmatpush1.msra.mxu0 %v3522
        %3579 = vmatprep.subr.mxu0 0.0
        %3580 = vmatpush1.msra.mxu0 %v3521
        %3581 = vmatprep.subr.mxu0 0.0
        %3582 = vmatpush1.msra.mxu0 %v3520
        %3583 = vmatprep.subr.mxu0 0.0
        %3584 = vmatpush1.msra.mxu0 %v3519
        %3585 = vmatprep.subr.mxu0 0.0
        %3586 = vmatpush1.msra.mxu0 %v3518
        %3587 = vmatprep.subr.mxu0 0.0
        %3588 = vmatpush1.msra.mxu0 %v3517
        %3589 = vmatprep.subr.mxu0 0.0
        %3590 = vmatpush2.msra.mxu0 %v3548
        %3591 = vmatprep.subr.mxu0 0.0
        %3592 = vmatpush2.msra.mxu0 %v3547
        %3593 = vmatprep.subr.mxu0 0.0
        %3594 = vmatpush2.msra.mxu0 %v3546
        %3595 = vmatprep.subr.mxu0 0.0
        %3596 = vmatpush2.msra.mxu0 %v3545
        %3597 = vmatprep.subr.mxu0 0.0
        %3598 = vmatpush2.msra.mxu0 %v3544
        %3599 = vmatprep.subr.mxu0 0.0
        %3600 = vmatpush2.msra.mxu0 %v3543
        %3601 = vmatprep.subr.mxu0 0.0
        %3602 = vmatpush2.msra.mxu0 %v3542
        %3603 = vmatprep.subr.mxu0 0.0
        %3604 = vmatpush2.msra.mxu0 %v3541
        %3605 = vmatprep.subr.mxu0 0.0
        %3606 = vmatpush2.msra.mxu0 %v3540
        %3607 = vmatprep.subr.mxu0 0.0
        %3608 = vmatpush2.msra.mxu0 %v3539
        %3609 = vmatprep.subr.mxu0 0.0
        %3610 = vmatpush2.msra.mxu0 %v3538
        %3611 = vmatprep.subr.mxu0 0.0
        %3612 = vmatpush2.msra.mxu0 %v3537
        %3613 = vmatprep.subr.mxu0 0.0
        %3614 = vmatpush2.msra.mxu0 %v3536
        %3615 = vmatprep.subr.mxu0 0.0
        %3616 = vmatpush2.msra.mxu0 %v3535
        %3617 = vmatprep.subr.mxu0 0.0
        %3618 = vmatpush2.msra.mxu0 %v3534
        %3619 = vmatprep.subr.mxu0 0.0
        %3620 = vmatpush2.msra.mxu0 %v3533
        %3621 = vmatprep.mubr.f32.mxu0 %v3554
        %3622 = vmatmul.mubr.f32.gmra.mxu0 %v3551
        %v3623 = vpop.f32.mrf.mxu0
        %v3624 = vadd.f32 0.0, %v3623
        %v3625 = vpop.f32.mrf.mxu0
        %3626 = vdwg.mxu0
        %v3627 = vadd.f32 %v3515, %v3624
        %s3628 = scalar_lea.vmem %s326, 5376 [#allocation10]
        %v3629 = vld [vmem:[%s3628] sm:$0xff]
        %v3630 = vld [vmem:[%s3628 + $0x8] sm:$0xff]
        %v3631 = vld [vmem:[%s3628 + $0x10] sm:$0xff]
        %v3632 = vld [vmem:[%s3628 + $0x18] sm:$0xff]
        %v3633 = vld [vmem:[%s3628 + $0x20] sm:$0xff]
        %v3634 = vld [vmem:[%s3628 + $0x28] sm:$0xff]
        %v3635 = vld [vmem:[%s3628 + $0x30] sm:$0xff]
        %v3636 = vld [vmem:[%s3628 + $0x38] sm:$0xff]
        %v3637 = vld [vmem:[%s3628 + $0x40] sm:$0xff]
        %v3638 = vld [vmem:[%s3628 + $0x48] sm:$0xff]
        %v3639 = vld [vmem:[%s3628 + $0x50] sm:$0xff]
        %v3640 = vld [vmem:[%s3628 + $0x58] sm:$0xff]
        %v3641 = vld [vmem:[%s3628 + $0x60] sm:$0xff]
        %v3642 = vld [vmem:[%s3628 + $0x68] sm:$0xff]
        %v3643 = vld [vmem:[%s3628 + $0x70] sm:$0xff]
        %v3644 = vld [vmem:[%s3628 + $0x78] sm:$0xff]
        %v3645 = vld [vmem:[%s3628 + $0x80] sm:$0xff]
        %v3646 = vld [vmem:[%s3628 + $0x88] sm:$0xff]
        %v3647 = vld [vmem:[%s3628 + $0x90] sm:$0xff]
        %v3648 = vld [vmem:[%s3628 + $0x98] sm:$0xff]
        %v3649 = vld [vmem:[%s3628 + $0xa0] sm:$0xff]
        %v3650 = vld [vmem:[%s3628 + $0xa8] sm:$0xff]
        %v3651 = vld [vmem:[%s3628 + $0xb0] sm:$0xff]
        %v3652 = vld [vmem:[%s3628 + $0xb8] sm:$0xff]
        %v3653 = vld [vmem:[%s3628 + $0xc0] sm:$0xff]
        %v3654 = vld [vmem:[%s3628 + $0xc8] sm:$0xff]
        %v3655 = vld [vmem:[%s3628 + $0xd0] sm:$0xff]
        %v3656 = vld [vmem:[%s3628 + $0xd8] sm:$0xff]
        %v3657 = vld [vmem:[%s3628 + $0xe0] sm:$0xff]
        %v3658 = vld [vmem:[%s3628 + $0xe8] sm:$0xff]
        %v3659 = vld [vmem:[%s3628 + $0xf0] sm:$0xff]
        %v3660 = vld [vmem:[%s3628 + $0xf8] sm:$0xff]
        %v3661 = vrot.slane %v1266, 5
        %v3662 = vrot.slane %v1274, 4
        %v3663 = vsel %vm1348, %v3662, %v3661
        %v3664 = vrot.slane %v1267, 5
        %v3665 = vrot.slane %v1275, 4
        %v3666 = vsel %vm1348, %v3665, %v3664
        %3669 = vmatprep.subr.mxu0 0.0
        %3670 = vmatpush1.msra.mxu0 %v3644
        %3671 = vmatprep.subr.mxu0 0.0
        %3672 = vmatpush1.msra.mxu0 %v3643
        %3673 = vmatprep.subr.mxu0 0.0
        %3674 = vmatpush1.msra.mxu0 %v3642
        %3675 = vmatprep.subr.mxu0 0.0
        %3676 = vmatpush1.msra.mxu0 %v3641
        %3677 = vmatprep.subr.mxu0 0.0
        %3678 = vmatpush1.msra.mxu0 %v3640
        %3679 = vmatprep.subr.mxu0 0.0
        %3680 = vmatpush1.msra.mxu0 %v3639
        %3681 = vmatprep.subr.mxu0 0.0
        %3682 = vmatpush1.msra.mxu0 %v3638
        %3683 = vmatprep.subr.mxu0 0.0
        %3684 = vmatpush1.msra.mxu0 %v3637
        %3685 = vmatprep.subr.mxu0 0.0
        %3686 = vmatpush1.msra.mxu0 %v3636
        %3687 = vmatprep.subr.mxu0 0.0
        %3688 = vmatpush1.msra.mxu0 %v3635
        %3689 = vmatprep.subr.mxu0 0.0
        %3690 = vmatpush1.msra.mxu0 %v3634
        %3691 = vmatprep.subr.mxu0 0.0
        %3692 = vmatpush1.msra.mxu0 %v3633
        %3693 = vmatprep.subr.mxu0 0.0
        %3694 = vmatpush1.msra.mxu0 %v3632
        %3695 = vmatprep.subr.mxu0 0.0
        %3696 = vmatpush1.msra.mxu0 %v3631
        %3697 = vmatprep.subr.mxu0 0.0
        %3698 = vmatpush1.msra.mxu0 %v3630
        %3699 = vmatprep.subr.mxu0 0.0
        %3700 = vmatpush1.msra.mxu0 %v3629
        %3701 = vmatprep.subr.mxu0 0.0
        %3702 = vmatpush2.msra.mxu0 %v3660
        %3703 = vmatprep.subr.mxu0 0.0
        %3704 = vmatpush2.msra.mxu0 %v3659
        %3705 = vmatprep.subr.mxu0 0.0
        %3706 = vmatpush2.msra.mxu0 %v3658
        %3707 = vmatprep.subr.mxu0 0.0
        %3708 = vmatpush2.msra.mxu0 %v3657
        %3709 = vmatprep.subr.mxu0 0.0
        %3710 = vmatpush2.msra.mxu0 %v3656
        %3711 = vmatprep.subr.mxu0 0.0
        %3712 = vmatpush2.msra.mxu0 %v3655
        %3713 = vmatprep.subr.mxu0 0.0
        %3714 = vmatpush2.msra.mxu0 %v3654
        %3715 = vmatprep.subr.mxu0 0.0
        %3716 = vmatpush2.msra.mxu0 %v3653
        %3717 = vmatprep.subr.mxu0 0.0
        %3718 = vmatpush2.msra.mxu0 %v3652
        %3719 = vmatprep.subr.mxu0 0.0
        %3720 = vmatpush2.msra.mxu0 %v3651
        %3721 = vmatprep.subr.mxu0 0.0
        %3722 = vmatpush2.msra.mxu0 %v3650
        %3723 = vmatprep.subr.mxu0 0.0
        %3724 = vmatpush2.msra.mxu0 %v3649
        %3725 = vmatprep.subr.mxu0 0.0
        %3726 = vmatpush2.msra.mxu0 %v3648
        %3727 = vmatprep.subr.mxu0 0.0
        %3728 = vmatpush2.msra.mxu0 %v3647
        %3729 = vmatprep.subr.mxu0 0.0
        %3730 = vmatpush2.msra.mxu0 %v3646
        %3731 = vmatprep.subr.mxu0 0.0
        %3732 = vmatpush2.msra.mxu0 %v3645
        %3733 = vmatprep.mubr.f32.mxu0 %v3666
        %3734 = vmatmul.mubr.f32.gmra.mxu0 %v3663
        %v3735 = vpop.f32.mrf.mxu0
        %v3736 = vadd.f32 0.0, %v3735
        %v3737 = vpop.f32.mrf.mxu0
        %3738 = vdwg.mxu0
        %v3739 = vadd.f32 %v3627, %v3736
        %s3740 = scalar_lea.vmem %s326, 5632 [#allocation10]
        %v3741 = vld [vmem:[%s3740] sm:$0xff]
        %v3742 = vld [vmem:[%s3740 + $0x8] sm:$0xff]
        %v3743 = vld [vmem:[%s3740 + $0x10] sm:$0xff]
        %v3744 = vld [vmem:[%s3740 + $0x18] sm:$0xff]
        %v3745 = vld [vmem:[%s3740 + $0x20] sm:$0xff]
        %v3746 = vld [vmem:[%s3740 + $0x28] sm:$0xff]
        %v3747 = vld [vmem:[%s3740 + $0x30] sm:$0xff]
        %v3748 = vld [vmem:[%s3740 + $0x38] sm:$0xff]
        %v3749 = vld [vmem:[%s3740 + $0x40] sm:$0xff]
        %v3750 = vld [vmem:[%s3740 + $0x48] sm:$0xff]
        %v3751 = vld [vmem:[%s3740 + $0x50] sm:$0xff]
        %v3752 = vld [vmem:[%s3740 + $0x58] sm:$0xff]
        %v3753 = vld [vmem:[%s3740 + $0x60] sm:$0xff]
        %v3754 = vld [vmem:[%s3740 + $0x68] sm:$0xff]
        %v3755 = vld [vmem:[%s3740 + $0x70] sm:$0xff]
        %v3756 = vld [vmem:[%s3740 + $0x78] sm:$0xff]
        %v3757 = vld [vmem:[%s3740 + $0x80] sm:$0xff]
        %v3758 = vld [vmem:[%s3740 + $0x88] sm:$0xff]
        %v3759 = vld [vmem:[%s3740 + $0x90] sm:$0xff]
        %v3760 = vld [vmem:[%s3740 + $0x98] sm:$0xff]
        %v3761 = vld [vmem:[%s3740 + $0xa0] sm:$0xff]
        %v3762 = vld [vmem:[%s3740 + $0xa8] sm:$0xff]
        %v3763 = vld [vmem:[%s3740 + $0xb0] sm:$0xff]
        %v3764 = vld [vmem:[%s3740 + $0xb8] sm:$0xff]
        %v3765 = vld [vmem:[%s3740 + $0xc0] sm:$0xff]
        %v3766 = vld [vmem:[%s3740 + $0xc8] sm:$0xff]
        %v3767 = vld [vmem:[%s3740 + $0xd0] sm:$0xff]
        %v3768 = vld [vmem:[%s3740 + $0xd8] sm:$0xff]
        %v3769 = vld [vmem:[%s3740 + $0xe0] sm:$0xff]
        %v3770 = vld [vmem:[%s3740 + $0xe8] sm:$0xff]
        %v3771 = vld [vmem:[%s3740 + $0xf0] sm:$0xff]
        %v3772 = vld [vmem:[%s3740 + $0xf8] sm:$0xff]
        %v3773 = vrot.slane %v1266, 6
        %v3774 = vrot.slane %v1274, 5
        %v3775 = vsel %vm1348, %v3774, %v3773
        %v3776 = vrot.slane %v1267, 6
        %v3777 = vrot.slane %v1275, 5
        %v3778 = vsel %vm1348, %v3777, %v3776
        %3781 = vmatprep.subr.mxu0 0.0
        %3782 = vmatpush1.msra.mxu0 %v3756
        %3783 = vmatprep.subr.mxu0 0.0
        %3784 = vmatpush1.msra.mxu0 %v3755
        %3785 = vmatprep.subr.mxu0 0.0
        %3786 = vmatpush1.msra.mxu0 %v3754
        %3787 = vmatprep.subr.mxu0 0.0
        %3788 = vmatpush1.msra.mxu0 %v3753
        %3789 = vmatprep.subr.mxu0 0.0
        %3790 = vmatpush1.msra.mxu0 %v3752
        %3791 = vmatprep.subr.mxu0 0.0
        %3792 = vmatpush1.msra.mxu0 %v3751
        %3793 = vmatprep.subr.mxu0 0.0
        %3794 = vmatpush1.msra.mxu0 %v3750
        %3795 = vmatprep.subr.mxu0 0.0
        %3796 = vmatpush1.msra.mxu0 %v3749
        %3797 = vmatprep.subr.mxu0 0.0
        %3798 = vmatpush1.msra.mxu0 %v3748
        %3799 = vmatprep.subr.mxu0 0.0
        %3800 = vmatpush1.msra.mxu0 %v3747
        %3801 = vmatprep.subr.mxu0 0.0
        %3802 = vmatpush1.msra.mxu0 %v3746
        %3803 = vmatprep.subr.mxu0 0.0
        %3804 = vmatpush1.msra.mxu0 %v3745
        %3805 = vmatprep.subr.mxu0 0.0
        %3806 = vmatpush1.msra.mxu0 %v3744
        %3807 = vmatprep.subr.mxu0 0.0
        %3808 = vmatpush1.msra.mxu0 %v3743
        %3809 = vmatprep.subr.mxu0 0.0
        %3810 = vmatpush1.msra.mxu0 %v3742
        %3811 = vmatprep.subr.mxu0 0.0
        %3812 = vmatpush1.msra.mxu0 %v3741
        %3813 = vmatprep.subr.mxu0 0.0
        %3814 = vmatpush2.msra.mxu0 %v3772
        %3815 = vmatprep.subr.mxu0 0.0
        %3816 = vmatpush2.msra.mxu0 %v3771
        %3817 = vmatprep.subr.mxu0 0.0
        %3818 = vmatpush2.msra.mxu0 %v3770
        %3819 = vmatprep.subr.mxu0 0.0
        %3820 = vmatpush2.msra.mxu0 %v3769
        %3821 = vmatprep.subr.mxu0 0.0
        %3822 = vmatpush2.msra.mxu0 %v3768
        %3823 = vmatprep.subr.mxu0 0.0
        %3824 = vmatpush2.msra.mxu0 %v3767
        %3825 = vmatprep.subr.mxu0 0.0
        %3826 = vmatpush2.msra.mxu0 %v3766
        %3827 = vmatprep.subr.mxu0 0.0
        %3828 = vmatpush2.msra.mxu0 %v3765
        %3829 = vmatprep.subr.mxu0 0.0
        %3830 = vmatpush2.msra.mxu0 %v3764
        %3831 = vmatprep.subr.mxu0 0.0
        %3832 = vmatpush2.msra.mxu0 %v3763
        %3833 = vmatprep.subr.mxu0 0.0
        %3834 = vmatpush2.msra.mxu0 %v3762
        %3835 = vmatprep.subr.mxu0 0.0
        %3836 = vmatpush2.msra.mxu0 %v3761
        %3837 = vmatprep.subr.mxu0 0.0
        %3838 = vmatpush2.msra.mxu0 %v3760
        %3839 = vmatprep.subr.mxu0 0.0
        %3840 = vmatpush2.msra.mxu0 %v3759
        %3841 = vmatprep.subr.mxu0 0.0
        %3842 = vmatpush2.msra.mxu0 %v3758
        %3843 = vmatprep.subr.mxu0 0.0
        %3844 = vmatpush2.msra.mxu0 %v3757
        %3845 = vmatprep.mubr.f32.mxu0 %v3778
        %3846 = vmatmul.mubr.f32.gmra.mxu0 %v3775
        %v3847 = vpop.f32.mrf.mxu0
        %v3848 = vadd.f32 0.0, %v3847
        %v3849 = vpop.f32.mrf.mxu0
        %3850 = vdwg.mxu0
        %v3851 = vadd.f32 %v3739, %v3848
        %s3852 = scalar_lea.vmem %s326, 5888 [#allocation10]
        %v3853 = vld [vmem:[%s3852] sm:$0xff]
        %v3854 = vld [vmem:[%s3852 + $0x8] sm:$0xff]
        %v3855 = vld [vmem:[%s3852 + $0x10] sm:$0xff]
        %v3856 = vld [vmem:[%s3852 + $0x18] sm:$0xff]
        %v3857 = vld [vmem:[%s3852 + $0x20] sm:$0xff]
        %v3858 = vld [vmem:[%s3852 + $0x28] sm:$0xff]
        %v3859 = vld [vmem:[%s3852 + $0x30] sm:$0xff]
        %v3860 = vld [vmem:[%s3852 + $0x38] sm:$0xff]
        %v3861 = vld [vmem:[%s3852 + $0x40] sm:$0xff]
        %v3862 = vld [vmem:[%s3852 + $0x48] sm:$0xff]
        %v3863 = vld [vmem:[%s3852 + $0x50] sm:$0xff]
        %v3864 = vld [vmem:[%s3852 + $0x58] sm:$0xff]
        %v3865 = vld [vmem:[%s3852 + $0x60] sm:$0xff]
        %v3866 = vld [vmem:[%s3852 + $0x68] sm:$0xff]
        %v3867 = vld [vmem:[%s3852 + $0x70] sm:$0xff]
        %v3868 = vld [vmem:[%s3852 + $0x78] sm:$0xff]
        %v3869 = vld [vmem:[%s3852 + $0x80] sm:$0xff]
        %v3870 = vld [vmem:[%s3852 + $0x88] sm:$0xff]
        %v3871 = vld [vmem:[%s3852 + $0x90] sm:$0xff]
        %v3872 = vld [vmem:[%s3852 + $0x98] sm:$0xff]
        %v3873 = vld [vmem:[%s3852 + $0xa0] sm:$0xff]
        %v3874 = vld [vmem:[%s3852 + $0xa8] sm:$0xff]
        %v3875 = vld [vmem:[%s3852 + $0xb0] sm:$0xff]
        %v3876 = vld [vmem:[%s3852 + $0xb8] sm:$0xff]
        %v3877 = vld [vmem:[%s3852 + $0xc0] sm:$0xff]
        %v3878 = vld [vmem:[%s3852 + $0xc8] sm:$0xff]
        %v3879 = vld [vmem:[%s3852 + $0xd0] sm:$0xff]
        %v3880 = vld [vmem:[%s3852 + $0xd8] sm:$0xff]
        %v3881 = vld [vmem:[%s3852 + $0xe0] sm:$0xff]
        %v3882 = vld [vmem:[%s3852 + $0xe8] sm:$0xff]
        %v3883 = vld [vmem:[%s3852 + $0xf0] sm:$0xff]
        %v3884 = vld [vmem:[%s3852 + $0xf8] sm:$0xff]
        %v3885 = vrot.slane %v1266, 7
        %v3886 = vrot.slane %v1274, 6
        %v3887 = vsel %vm1348, %v3886, %v3885
        %v3888 = vrot.slane %v1267, 7
        %v3889 = vrot.slane %v1275, 6
        %v3890 = vsel %vm1348, %v3889, %v3888
        %3893 = vmatprep.subr.mxu0 0.0
        %3894 = vmatpush1.msra.mxu0 %v3868
        %3895 = vmatprep.subr.mxu0 0.0
        %3896 = vmatpush1.msra.mxu0 %v3867
        %3897 = vmatprep.subr.mxu0 0.0
        %3898 = vmatpush1.msra.mxu0 %v3866
        %3899 = vmatprep.subr.mxu0 0.0
        %3900 = vmatpush1.msra.mxu0 %v3865
        %3901 = vmatprep.subr.mxu0 0.0
        %3902 = vmatpush1.msra.mxu0 %v3864
        %3903 = vmatprep.subr.mxu0 0.0
        %3904 = vmatpush1.msra.mxu0 %v3863
        %3905 = vmatprep.subr.mxu0 0.0
        %3906 = vmatpush1.msra.mxu0 %v3862
        %3907 = vmatprep.subr.mxu0 0.0
        %3908 = vmatpush1.msra.mxu0 %v3861
        %3909 = vmatprep.subr.mxu0 0.0
        %3910 = vmatpush1.msra.mxu0 %v3860
        %3911 = vmatprep.subr.mxu0 0.0
        %3912 = vmatpush1.msra.mxu0 %v3859
        %3913 = vmatprep.subr.mxu0 0.0
        %3914 = vmatpush1.msra.mxu0 %v3858
        %3915 = vmatprep.subr.mxu0 0.0
        %3916 = vmatpush1.msra.mxu0 %v3857
        %3917 = vmatprep.subr.mxu0 0.0
        %3918 = vmatpush1.msra.mxu0 %v3856
        %3919 = vmatprep.subr.mxu0 0.0
        %3920 = vmatpush1.msra.mxu0 %v3855
        %3921 = vmatprep.subr.mxu0 0.0
        %3922 = vmatpush1.msra.mxu0 %v3854
        %3923 = vmatprep.subr.mxu0 0.0
        %3924 = vmatpush1.msra.mxu0 %v3853
        %3925 = vmatprep.subr.mxu0 0.0
        %3926 = vmatpush2.msra.mxu0 %v3884
        %3927 = vmatprep.subr.mxu0 0.0
        %3928 = vmatpush2.msra.mxu0 %v3883
        %3929 = vmatprep.subr.mxu0 0.0
        %3930 = vmatpush2.msra.mxu0 %v3882
        %3931 = vmatprep.subr.mxu0 0.0
        %3932 = vmatpush2.msra.mxu0 %v3881
        %3933 = vmatprep.subr.mxu0 0.0
        %3934 = vmatpush2.msra.mxu0 %v3880
        %3935 = vmatprep.subr.mxu0 0.0
        %3936 = vmatpush2.msra.mxu0 %v3879
        %3937 = vmatprep.subr.mxu0 0.0
        %3938 = vmatpush2.msra.mxu0 %v3878
        %3939 = vmatprep.subr.mxu0 0.0
        %3940 = vmatpush2.msra.mxu0 %v3877
        %3941 = vmatprep.subr.mxu0 0.0
        %3942 = vmatpush2.msra.mxu0 %v3876
        %3943 = vmatprep.subr.mxu0 0.0
        %3944 = vmatpush2.msra.mxu0 %v3875
        %3945 = vmatprep.subr.mxu0 0.0
        %3946 = vmatpush2.msra.mxu0 %v3874
        %3947 = vmatprep.subr.mxu0 0.0
        %3948 = vmatpush2.msra.mxu0 %v3873
        %3949 = vmatprep.subr.mxu0 0.0
        %3950 = vmatpush2.msra.mxu0 %v3872
        %3951 = vmatprep.subr.mxu0 0.0
        %3952 = vmatpush2.msra.mxu0 %v3871
        %3953 = vmatprep.subr.mxu0 0.0
        %3954 = vmatpush2.msra.mxu0 %v3870
        %3955 = vmatprep.subr.mxu0 0.0
        %3956 = vmatpush2.msra.mxu0 %v3869
        %3957 = vmatprep.mubr.f32.mxu0 %v3890
        %3958 = vmatmul.mubr.f32.gmra.mxu0 %v3887
        %v3959 = vpop.f32.mrf.mxu0
        %v3960 = vadd.f32 0.0, %v3959
        %v3961 = vpop.f32.mrf.mxu0
        %3962 = vdwg.mxu0
        %v3963 = vadd.f32 %v3851, %v3960
        %s3964 = scalar_lea.vmem %s326, 6144 [#allocation10]
        %v3965 = vld [vmem:[%s3964] sm:$0xff]
        %v3966 = vld [vmem:[%s3964 + $0x8] sm:$0xff]
        %v3967 = vld [vmem:[%s3964 + $0x10] sm:$0xff]
        %v3968 = vld [vmem:[%s3964 + $0x18] sm:$0xff]
        %v3969 = vld [vmem:[%s3964 + $0x20] sm:$0xff]
        %v3970 = vld [vmem:[%s3964 + $0x28] sm:$0xff]
        %v3971 = vld [vmem:[%s3964 + $0x30] sm:$0xff]
        %v3972 = vld [vmem:[%s3964 + $0x38] sm:$0xff]
        %v3973 = vld [vmem:[%s3964 + $0x40] sm:$0xff]
        %v3974 = vld [vmem:[%s3964 + $0x48] sm:$0xff]
        %v3975 = vld [vmem:[%s3964 + $0x50] sm:$0xff]
        %v3976 = vld [vmem:[%s3964 + $0x58] sm:$0xff]
        %v3977 = vld [vmem:[%s3964 + $0x60] sm:$0xff]
        %v3978 = vld [vmem:[%s3964 + $0x68] sm:$0xff]
        %v3979 = vld [vmem:[%s3964 + $0x70] sm:$0xff]
        %v3980 = vld [vmem:[%s3964 + $0x78] sm:$0xff]
        %v3981 = vld [vmem:[%s3964 + $0x80] sm:$0xff]
        %v3982 = vld [vmem:[%s3964 + $0x88] sm:$0xff]
        %v3983 = vld [vmem:[%s3964 + $0x90] sm:$0xff]
        %v3984 = vld [vmem:[%s3964 + $0x98] sm:$0xff]
        %v3985 = vld [vmem:[%s3964 + $0xa0] sm:$0xff]
        %v3986 = vld [vmem:[%s3964 + $0xa8] sm:$0xff]
        %v3987 = vld [vmem:[%s3964 + $0xb0] sm:$0xff]
        %v3988 = vld [vmem:[%s3964 + $0xb8] sm:$0xff]
        %v3989 = vld [vmem:[%s3964 + $0xc0] sm:$0xff]
        %v3990 = vld [vmem:[%s3964 + $0xc8] sm:$0xff]
        %v3991 = vld [vmem:[%s3964 + $0xd0] sm:$0xff]
        %v3992 = vld [vmem:[%s3964 + $0xd8] sm:$0xff]
        %v3993 = vld [vmem:[%s3964 + $0xe0] sm:$0xff]
        %v3994 = vld [vmem:[%s3964 + $0xe8] sm:$0xff]
        %v3995 = vld [vmem:[%s3964 + $0xf0] sm:$0xff]
        %v3996 = vld [vmem:[%s3964 + $0xf8] sm:$0xff]
        %v4001 = vrot.slane %v1276, 7
        %v4002 = vsel %vm1348, %v4001, %v1268
        %v4003 = vrot.slane %v1277, 7
        %v4004 = vsel %vm1348, %v4003, %v1269
        %4007 = vmatprep.subr.mxu0 0.0
        %4008 = vmatpush1.msra.mxu0 %v3980
        %4009 = vmatprep.subr.mxu0 0.0
        %4010 = vmatpush1.msra.mxu0 %v3979
        %4011 = vmatprep.subr.mxu0 0.0
        %4012 = vmatpush1.msra.mxu0 %v3978
        %4013 = vmatprep.subr.mxu0 0.0
        %4014 = vmatpush1.msra.mxu0 %v3977
        %4015 = vmatprep.subr.mxu0 0.0
        %4016 = vmatpush1.msra.mxu0 %v3976
        %4017 = vmatprep.subr.mxu0 0.0
        %4018 = vmatpush1.msra.mxu0 %v3975
        %4019 = vmatprep.subr.mxu0 0.0
        %4020 = vmatpush1.msra.mxu0 %v3974
        %4021 = vmatprep.subr.mxu0 0.0
        %4022 = vmatpush1.msra.mxu0 %v3973
        %4023 = vmatprep.subr.mxu0 0.0
        %4024 = vmatpush1.msra.mxu0 %v3972
        %4025 = vmatprep.subr.mxu0 0.0
        %4026 = vmatpush1.msra.mxu0 %v3971
        %4027 = vmatprep.subr.mxu0 0.0
        %4028 = vmatpush1.msra.mxu0 %v3970
        %4029 = vmatprep.subr.mxu0 0.0
        %4030 = vmatpush1.msra.mxu0 %v3969
        %4031 = vmatprep.subr.mxu0 0.0
        %4032 = vmatpush1.msra.mxu0 %v3968
        %4033 = vmatprep.subr.mxu0 0.0
        %4034 = vmatpush1.msra.mxu0 %v3967
        %4035 = vmatprep.subr.mxu0 0.0
        %4036 = vmatpush1.msra.mxu0 %v3966
        %4037 = vmatprep.subr.mxu0 0.0
        %4038 = vmatpush1.msra.mxu0 %v3965
        %4039 = vmatprep.subr.mxu0 0.0
        %4040 = vmatpush2.msra.mxu0 %v3996
        %4041 = vmatprep.subr.mxu0 0.0
        %4042 = vmatpush2.msra.mxu0 %v3995
        %4043 = vmatprep.subr.mxu0 0.0
        %4044 = vmatpush2.msra.mxu0 %v3994
        %4045 = vmatprep.subr.mxu0 0.0
        %4046 = vmatpush2.msra.mxu0 %v3993
        %4047 = vmatprep.subr.mxu0 0.0
        %4048 = vmatpush2.msra.mxu0 %v3992
        %4049 = vmatprep.subr.mxu0 0.0
        %4050 = vmatpush2.msra.mxu0 %v3991
        %4051 = vmatprep.subr.mxu0 0.0
        %4052 = vmatpush2.msra.mxu0 %v3990
        %4053 = vmatprep.subr.mxu0 0.0
        %4054 = vmatpush2.msra.mxu0 %v3989
        %4055 = vmatprep.subr.mxu0 0.0
        %4056 = vmatpush2.msra.mxu0 %v3988
        %4057 = vmatprep.subr.mxu0 0.0
        %4058 = vmatpush2.msra.mxu0 %v3987
        %4059 = vmatprep.subr.mxu0 0.0
        %4060 = vmatpush2.msra.mxu0 %v3986
        %4061 = vmatprep.subr.mxu0 0.0
        %4062 = vmatpush2.msra.mxu0 %v3985
        %4063 = vmatprep.subr.mxu0 0.0
        %4064 = vmatpush2.msra.mxu0 %v3984
        %4065 = vmatprep.subr.mxu0 0.0
        %4066 = vmatpush2.msra.mxu0 %v3983
        %4067 = vmatprep.subr.mxu0 0.0
        %4068 = vmatpush2.msra.mxu0 %v3982
        %4069 = vmatprep.subr.mxu0 0.0
        %4070 = vmatpush2.msra.mxu0 %v3981
        %4071 = vmatprep.mubr.f32.mxu0 %v4004
        %4072 = vmatmul.mubr.f32.gmra.mxu0 %v4002
        %v4073 = vpop.f32.mrf.mxu0
        %v4074 = vadd.f32 0.0, %v4073
        %v4075 = vpop.f32.mrf.mxu0
        %4076 = vdwg.mxu0
        %v4077 = vadd.f32 %v3963, %v4074
        %s4078 = scalar_lea.vmem %s326, 6400 [#allocation10]
        %v4079 = vld [vmem:[%s4078] sm:$0xff]
        %v4080 = vld [vmem:[%s4078 + $0x8] sm:$0xff]
        %v4081 = vld [vmem:[%s4078 + $0x10] sm:$0xff]
        %v4082 = vld [vmem:[%s4078 + $0x18] sm:$0xff]
        %v4083 = vld [vmem:[%s4078 + $0x20] sm:$0xff]
        %v4084 = vld [vmem:[%s4078 + $0x28] sm:$0xff]
        %v4085 = vld [vmem:[%s4078 + $0x30] sm:$0xff]
        %v4086 = vld [vmem:[%s4078 + $0x38] sm:$0xff]
        %v4087 = vld [vmem:[%s4078 + $0x40] sm:$0xff]
        %v4088 = vld [vmem:[%s4078 + $0x48] sm:$0xff]
        %v4089 = vld [vmem:[%s4078 + $0x50] sm:$0xff]
        %v4090 = vld [vmem:[%s4078 + $0x58] sm:$0xff]
        %v4091 = vld [vmem:[%s4078 + $0x60] sm:$0xff]
        %v4092 = vld [vmem:[%s4078 + $0x68] sm:$0xff]
        %v4093 = vld [vmem:[%s4078 + $0x70] sm:$0xff]
        %v4094 = vld [vmem:[%s4078 + $0x78] sm:$0xff]
        %v4095 = vld [vmem:[%s4078 + $0x80] sm:$0xff]
        %v4096 = vld [vmem:[%s4078 + $0x88] sm:$0xff]
        %v4097 = vld [vmem:[%s4078 + $0x90] sm:$0xff]
        %v4098 = vld [vmem:[%s4078 + $0x98] sm:$0xff]
        %v4099 = vld [vmem:[%s4078 + $0xa0] sm:$0xff]
        %v4100 = vld [vmem:[%s4078 + $0xa8] sm:$0xff]
        %v4101 = vld [vmem:[%s4078 + $0xb0] sm:$0xff]
        %v4102 = vld [vmem:[%s4078 + $0xb8] sm:$0xff]
        %v4103 = vld [vmem:[%s4078 + $0xc0] sm:$0xff]
        %v4104 = vld [vmem:[%s4078 + $0xc8] sm:$0xff]
        %v4105 = vld [vmem:[%s4078 + $0xd0] sm:$0xff]
        %v4106 = vld [vmem:[%s4078 + $0xd8] sm:$0xff]
        %v4107 = vld [vmem:[%s4078 + $0xe0] sm:$0xff]
        %v4108 = vld [vmem:[%s4078 + $0xe8] sm:$0xff]
        %v4109 = vld [vmem:[%s4078 + $0xf0] sm:$0xff]
        %v4110 = vld [vmem:[%s4078 + $0xf8] sm:$0xff]
        %v4111 = vrot.slane %v1268, 1
        %v4112 = vsel %vm1348, %v1276, %v4111
        %v4113 = vrot.slane %v1269, 1
        %v4114 = vsel %vm1348, %v1277, %v4113
        %4117 = vmatprep.subr.mxu0 0.0
        %4118 = vmatpush1.msra.mxu0 %v4094
        %4119 = vmatprep.subr.mxu0 0.0
        %4120 = vmatpush1.msra.mxu0 %v4093
        %4121 = vmatprep.subr.mxu0 0.0
        %4122 = vmatpush1.msra.mxu0 %v4092
        %4123 = vmatprep.subr.mxu0 0.0
        %4124 = vmatpush1.msra.mxu0 %v4091
        %4125 = vmatprep.subr.mxu0 0.0
        %4126 = vmatpush1.msra.mxu0 %v4090
        %4127 = vmatprep.subr.mxu0 0.0
        %4128 = vmatpush1.msra.mxu0 %v4089
        %4129 = vmatprep.subr.mxu0 0.0
        %4130 = vmatpush1.msra.mxu0 %v4088
        %4131 = vmatprep.subr.mxu0 0.0
        %4132 = vmatpush1.msra.mxu0 %v4087
        %4133 = vmatprep.subr.mxu0 0.0
        %4134 = vmatpush1.msra.mxu0 %v4086
        %4135 = vmatprep.subr.mxu0 0.0
        %4136 = vmatpush1.msra.mxu0 %v4085
        %4137 = vmatprep.subr.mxu0 0.0
        %4138 = vmatpush1.msra.mxu0 %v4084
        %4139 = vmatprep.subr.mxu0 0.0
        %4140 = vmatpush1.msra.mxu0 %v4083
        %4141 = vmatprep.subr.mxu0 0.0
        %4142 = vmatpush1.msra.mxu0 %v4082
        %4143 = vmatprep.subr.mxu0 0.0
        %4144 = vmatpush1.msra.mxu0 %v4081
        %4145 = vmatprep.subr.mxu0 0.0
        %4146 = vmatpush1.msra.mxu0 %v4080
        %4147 = vmatprep.subr.mxu0 0.0
        %4148 = vmatpush1.msra.mxu0 %v4079
        %4149 = vmatprep.subr.mxu0 0.0
        %4150 = vmatpush2.msra.mxu0 %v4110
        %4151 = vmatprep.subr.mxu0 0.0
        %4152 = vmatpush2.msra.mxu0 %v4109
        %4153 = vmatprep.subr.mxu0 0.0
        %4154 = vmatpush2.msra.mxu0 %v4108
        %4155 = vmatprep.subr.mxu0 0.0
        %4156 = vmatpush2.msra.mxu0 %v4107
        %4157 = vmatprep.subr.mxu0 0.0
        %4158 = vmatpush2.msra.mxu0 %v4106
        %4159 = vmatprep.subr.mxu0 0.0
        %4160 = vmatpush2.msra.mxu0 %v4105
        %4161 = vmatprep.subr.mxu0 0.0
        %4162 = vmatpush2.msra.mxu0 %v4104
        %4163 = vmatprep.subr.mxu0 0.0
        %4164 = vmatpush2.msra.mxu0 %v4103
        %4165 = vmatprep.subr.mxu0 0.0
        %4166 = vmatpush2.msra.mxu0 %v4102
        %4167 = vmatprep.subr.mxu0 0.0
        %4168 = vmatpush2.msra.mxu0 %v4101
        %4169 = vmatprep.subr.mxu0 0.0
        %4170 = vmatpush2.msra.mxu0 %v4100
        %4171 = vmatprep.subr.mxu0 0.0
        %4172 = vmatpush2.msra.mxu0 %v4099
        %4173 = vmatprep.subr.mxu0 0.0
        %4174 = vmatpush2.msra.mxu0 %v4098
        %4175 = vmatprep.subr.mxu0 0.0
        %4176 = vmatpush2.msra.mxu0 %v4097
        %4177 = vmatprep.subr.mxu0 0.0
        %4178 = vmatpush2.msra.mxu0 %v4096
        %4179 = vmatprep.subr.mxu0 0.0
        %4180 = vmatpush2.msra.mxu0 %v4095
        %4181 = vmatprep.mubr.f32.mxu0 %v4114
        %4182 = vmatmul.mubr.f32.gmra.mxu0 %v4112
        %v4183 = vpop.f32.mrf.mxu0
        %v4184 = vadd.f32 0.0, %v4183
        %v4185 = vpop.f32.mrf.mxu0
        %4186 = vdwg.mxu0
        %v4187 = vadd.f32 %v4077, %v4184
        %s4188 = scalar_lea.vmem %s326, 6656 [#allocation10]
        %v4189 = vld [vmem:[%s4188] sm:$0xff]
        %v4190 = vld [vmem:[%s4188 + $0x8] sm:$0xff]
        %v4191 = vld [vmem:[%s4188 + $0x10] sm:$0xff]
        %v4192 = vld [vmem:[%s4188 + $0x18] sm:$0xff]
        %v4193 = vld [vmem:[%s4188 + $0x20] sm:$0xff]
        %v4194 = vld [vmem:[%s4188 + $0x28] sm:$0xff]
        %v4195 = vld [vmem:[%s4188 + $0x30] sm:$0xff]
        %v4196 = vld [vmem:[%s4188 + $0x38] sm:$0xff]
        %v4197 = vld [vmem:[%s4188 + $0x40] sm:$0xff]
        %v4198 = vld [vmem:[%s4188 + $0x48] sm:$0xff]
        %v4199 = vld [vmem:[%s4188 + $0x50] sm:$0xff]
        %v4200 = vld [vmem:[%s4188 + $0x58] sm:$0xff]
        %v4201 = vld [vmem:[%s4188 + $0x60] sm:$0xff]
        %v4202 = vld [vmem:[%s4188 + $0x68] sm:$0xff]
        %v4203 = vld [vmem:[%s4188 + $0x70] sm:$0xff]
        %v4204 = vld [vmem:[%s4188 + $0x78] sm:$0xff]
        %v4205 = vld [vmem:[%s4188 + $0x80] sm:$0xff]
        %v4206 = vld [vmem:[%s4188 + $0x88] sm:$0xff]
        %v4207 = vld [vmem:[%s4188 + $0x90] sm:$0xff]
        %v4208 = vld [vmem:[%s4188 + $0x98] sm:$0xff]
        %v4209 = vld [vmem:[%s4188 + $0xa0] sm:$0xff]
        %v4210 = vld [vmem:[%s4188 + $0xa8] sm:$0xff]
        %v4211 = vld [vmem:[%s4188 + $0xb0] sm:$0xff]
        %v4212 = vld [vmem:[%s4188 + $0xb8] sm:$0xff]
        %v4213 = vld [vmem:[%s4188 + $0xc0] sm:$0xff]
        %v4214 = vld [vmem:[%s4188 + $0xc8] sm:$0xff]
        %v4215 = vld [vmem:[%s4188 + $0xd0] sm:$0xff]
        %v4216 = vld [vmem:[%s4188 + $0xd8] sm:$0xff]
        %v4217 = vld [vmem:[%s4188 + $0xe0] sm:$0xff]
        %v4218 = vld [vmem:[%s4188 + $0xe8] sm:$0xff]
        %v4219 = vld [vmem:[%s4188 + $0xf0] sm:$0xff]
        %v4220 = vld [vmem:[%s4188 + $0xf8] sm:$0xff]
        %v4221 = vrot.slane %v1268, 2
        %v4222 = vrot.slane %v1276, 1
        %v4223 = vsel %vm1348, %v4222, %v4221
        %v4224 = vrot.slane %v1269, 2
        %v4225 = vrot.slane %v1277, 1
        %v4226 = vsel %vm1348, %v4225, %v4224
        %4229 = vmatprep.subr.mxu0 0.0
        %4230 = vmatpush1.msra.mxu0 %v4204
        %4231 = vmatprep.subr.mxu0 0.0
        %4232 = vmatpush1.msra.mxu0 %v4203
        %4233 = vmatprep.subr.mxu0 0.0
        %4234 = vmatpush1.msra.mxu0 %v4202
        %4235 = vmatprep.subr.mxu0 0.0
        %4236 = vmatpush1.msra.mxu0 %v4201
        %4237 = vmatprep.subr.mxu0 0.0
        %4238 = vmatpush1.msra.mxu0 %v4200
        %4239 = vmatprep.subr.mxu0 0.0
        %4240 = vmatpush1.msra.mxu0 %v4199
        %4241 = vmatprep.subr.mxu0 0.0
        %4242 = vmatpush1.msra.mxu0 %v4198
        %4243 = vmatprep.subr.mxu0 0.0
        %4244 = vmatpush1.msra.mxu0 %v4197
        %4245 = vmatprep.subr.mxu0 0.0
        %4246 = vmatpush1.msra.mxu0 %v4196
        %4247 = vmatprep.subr.mxu0 0.0
        %4248 = vmatpush1.msra.mxu0 %v4195
        %4249 = vmatprep.subr.mxu0 0.0
        %4250 = vmatpush1.msra.mxu0 %v4194
        %4251 = vmatprep.subr.mxu0 0.0
        %4252 = vmatpush1.msra.mxu0 %v4193
        %4253 = vmatprep.subr.mxu0 0.0
        %4254 = vmatpush1.msra.mxu0 %v4192
        %4255 = vmatprep.subr.mxu0 0.0
        %4256 = vmatpush1.msra.mxu0 %v4191
        %4257 = vmatprep.subr.mxu0 0.0
        %4258 = vmatpush1.msra.mxu0 %v4190
        %4259 = vmatprep.subr.mxu0 0.0
        %4260 = vmatpush1.msra.mxu0 %v4189
        %4261 = vmatprep.subr.mxu0 0.0
        %4262 = vmatpush2.msra.mxu0 %v4220
        %4263 = vmatprep.subr.mxu0 0.0
        %4264 = vmatpush2.msra.mxu0 %v4219
        %4265 = vmatprep.subr.mxu0 0.0
        %4266 = vmatpush2.msra.mxu0 %v4218
        %4267 = vmatprep.subr.mxu0 0.0
        %4268 = vmatpush2.msra.mxu0 %v4217
        %4269 = vmatprep.subr.mxu0 0.0
        %4270 = vmatpush2.msra.mxu0 %v4216
        %4271 = vmatprep.subr.mxu0 0.0
        %4272 = vmatpush2.msra.mxu0 %v4215
        %4273 = vmatprep.subr.mxu0 0.0
        %4274 = vmatpush2.msra.mxu0 %v4214
        %4275 = vmatprep.subr.mxu0 0.0
        %4276 = vmatpush2.msra.mxu0 %v4213
        %4277 = vmatprep.subr.mxu0 0.0
        %4278 = vmatpush2.msra.mxu0 %v4212
        %4279 = vmatprep.subr.mxu0 0.0
        %4280 = vmatpush2.msra.mxu0 %v4211
        %4281 = vmatprep.subr.mxu0 0.0
        %4282 = vmatpush2.msra.mxu0 %v4210
        %4283 = vmatprep.subr.mxu0 0.0
        %4284 = vmatpush2.msra.mxu0 %v4209
        %4285 = vmatprep.subr.mxu0 0.0
        %4286 = vmatpush2.msra.mxu0 %v4208
        %4287 = vmatprep.subr.mxu0 0.0
        %4288 = vmatpush2.msra.mxu0 %v4207
        %4289 = vmatprep.subr.mxu0 0.0
        %4290 = vmatpush2.msra.mxu0 %v4206
        %4291 = vmatprep.subr.mxu0 0.0
        %4292 = vmatpush2.msra.mxu0 %v4205
        %4293 = vmatprep.mubr.f32.mxu0 %v4226
        %4294 = vmatmul.mubr.f32.gmra.mxu0 %v4223
        %v4295 = vpop.f32.mrf.mxu0
        %v4296 = vadd.f32 0.0, %v4295
        %v4297 = vpop.f32.mrf.mxu0
        %4298 = vdwg.mxu0
        %v4299 = vadd.f32 %v4187, %v4296
        %s4300 = scalar_lea.vmem %s326, 6912 [#allocation10]
        %v4301 = vld [vmem:[%s4300] sm:$0xff]
        %v4302 = vld [vmem:[%s4300 + $0x8] sm:$0xff]
        %v4303 = vld [vmem:[%s4300 + $0x10] sm:$0xff]
        %v4304 = vld [vmem:[%s4300 + $0x18] sm:$0xff]
        %v4305 = vld [vmem:[%s4300 + $0x20] sm:$0xff]
        %v4306 = vld [vmem:[%s4300 + $0x28] sm:$0xff]
        %v4307 = vld [vmem:[%s4300 + $0x30] sm:$0xff]
        %v4308 = vld [vmem:[%s4300 + $0x38] sm:$0xff]
        %v4309 = vld [vmem:[%s4300 + $0x40] sm:$0xff]
        %v4310 = vld [vmem:[%s4300 + $0x48] sm:$0xff]
        %v4311 = vld [vmem:[%s4300 + $0x50] sm:$0xff]
        %v4312 = vld [vmem:[%s4300 + $0x58] sm:$0xff]
        %v4313 = vld [vmem:[%s4300 + $0x60] sm:$0xff]
        %v4314 = vld [vmem:[%s4300 + $0x68] sm:$0xff]
        %v4315 = vld [vmem:[%s4300 + $0x70] sm:$0xff]
        %v4316 = vld [vmem:[%s4300 + $0x78] sm:$0xff]
        %v4317 = vld [vmem:[%s4300 + $0x80] sm:$0xff]
        %v4318 = vld [vmem:[%s4300 + $0x88] sm:$0xff]
        %v4319 = vld [vmem:[%s4300 + $0x90] sm:$0xff]
        %v4320 = vld [vmem:[%s4300 + $0x98] sm:$0xff]
        %v4321 = vld [vmem:[%s4300 + $0xa0] sm:$0xff]
        %v4322 = vld [vmem:[%s4300 + $0xa8] sm:$0xff]
        %v4323 = vld [vmem:[%s4300 + $0xb0] sm:$0xff]
        %v4324 = vld [vmem:[%s4300 + $0xb8] sm:$0xff]
        %v4325 = vld [vmem:[%s4300 + $0xc0] sm:$0xff]
        %v4326 = vld [vmem:[%s4300 + $0xc8] sm:$0xff]
        %v4327 = vld [vmem:[%s4300 + $0xd0] sm:$0xff]
        %v4328 = vld [vmem:[%s4300 + $0xd8] sm:$0xff]
        %v4329 = vld [vmem:[%s4300 + $0xe0] sm:$0xff]
        %v4330 = vld [vmem:[%s4300 + $0xe8] sm:$0xff]
        %v4331 = vld [vmem:[%s4300 + $0xf0] sm:$0xff]
        %v4332 = vld [vmem:[%s4300 + $0xf8] sm:$0xff]
        %v4333 = vrot.slane %v1268, 3
        %v4334 = vrot.slane %v1276, 2
        %v4335 = vsel %vm1348, %v4334, %v4333
        %v4336 = vrot.slane %v1269, 3
        %v4337 = vrot.slane %v1277, 2
        %v4338 = vsel %vm1348, %v4337, %v4336
        %4341 = vmatprep.subr.mxu0 0.0
        %4342 = vmatpush1.msra.mxu0 %v4316
        %4343 = vmatprep.subr.mxu0 0.0
        %4344 = vmatpush1.msra.mxu0 %v4315
        %4345 = vmatprep.subr.mxu0 0.0
        %4346 = vmatpush1.msra.mxu0 %v4314
        %4347 = vmatprep.subr.mxu0 0.0
        %4348 = vmatpush1.msra.mxu0 %v4313
        %4349 = vmatprep.subr.mxu0 0.0
        %4350 = vmatpush1.msra.mxu0 %v4312
        %4351 = vmatprep.subr.mxu0 0.0
        %4352 = vmatpush1.msra.mxu0 %v4311
        %4353 = vmatprep.subr.mxu0 0.0
        %4354 = vmatpush1.msra.mxu0 %v4310
        %4355 = vmatprep.subr.mxu0 0.0
        %4356 = vmatpush1.msra.mxu0 %v4309
        %4357 = vmatprep.subr.mxu0 0.0
        %4358 = vmatpush1.msra.mxu0 %v4308
        %4359 = vmatprep.subr.mxu0 0.0
        %4360 = vmatpush1.msra.mxu0 %v4307
        %4361 = vmatprep.subr.mxu0 0.0
        %4362 = vmatpush1.msra.mxu0 %v4306
        %4363 = vmatprep.subr.mxu0 0.0
        %4364 = vmatpush1.msra.mxu0 %v4305
        %4365 = vmatprep.subr.mxu0 0.0
        %4366 = vmatpush1.msra.mxu0 %v4304
        %4367 = vmatprep.subr.mxu0 0.0
        %4368 = vmatpush1.msra.mxu0 %v4303
        %4369 = vmatprep.subr.mxu0 0.0
        %4370 = vmatpush1.msra.mxu0 %v4302
        %4371 = vmatprep.subr.mxu0 0.0
        %4372 = vmatpush1.msra.mxu0 %v4301
        %4373 = vmatprep.subr.mxu0 0.0
        %4374 = vmatpush2.msra.mxu0 %v4332
        %4375 = vmatprep.subr.mxu0 0.0
        %4376 = vmatpush2.msra.mxu0 %v4331
        %4377 = vmatprep.subr.mxu0 0.0
        %4378 = vmatpush2.msra.mxu0 %v4330
        %4379 = vmatprep.subr.mxu0 0.0
        %4380 = vmatpush2.msra.mxu0 %v4329
        %4381 = vmatprep.subr.mxu0 0.0
        %4382 = vmatpush2.msra.mxu0 %v4328
        %4383 = vmatprep.subr.mxu0 0.0
        %4384 = vmatpush2.msra.mxu0 %v4327
        %4385 = vmatprep.subr.mxu0 0.0
        %4386 = vmatpush2.msra.mxu0 %v4326
        %4387 = vmatprep.subr.mxu0 0.0
        %4388 = vmatpush2.msra.mxu0 %v4325
        %4389 = vmatprep.subr.mxu0 0.0
        %4390 = vmatpush2.msra.mxu0 %v4324
        %4391 = vmatprep.subr.mxu0 0.0
        %4392 = vmatpush2.msra.mxu0 %v4323
        %4393 = vmatprep.subr.mxu0 0.0
        %4394 = vmatpush2.msra.mxu0 %v4322
        %4395 = vmatprep.subr.mxu0 0.0
        %4396 = vmatpush2.msra.mxu0 %v4321
        %4397 = vmatprep.subr.mxu0 0.0
        %4398 = vmatpush2.msra.mxu0 %v4320
        %4399 = vmatprep.subr.mxu0 0.0
        %4400 = vmatpush2.msra.mxu0 %v4319
        %4401 = vmatprep.subr.mxu0 0.0
        %4402 = vmatpush2.msra.mxu0 %v4318
        %4403 = vmatprep.subr.mxu0 0.0
        %4404 = vmatpush2.msra.mxu0 %v4317
        %4405 = vmatprep.mubr.f32.mxu0 %v4338
        %4406 = vmatmul.mubr.f32.gmra.mxu0 %v4335
        %v4407 = vpop.f32.mrf.mxu0
        %v4408 = vadd.f32 0.0, %v4407
        %v4409 = vpop.f32.mrf.mxu0
        %4410 = vdwg.mxu0
        %v4411 = vadd.f32 %v4299, %v4408
        %s4412 = scalar_lea.vmem %s326, 7168 [#allocation10]
        %v4413 = vld [vmem:[%s4412] sm:$0xff]
        %v4414 = vld [vmem:[%s4412 + $0x8] sm:$0xff]
        %v4415 = vld [vmem:[%s4412 + $0x10] sm:$0xff]
        %v4416 = vld [vmem:[%s4412 + $0x18] sm:$0xff]
        %v4417 = vld [vmem:[%s4412 + $0x20] sm:$0xff]
        %v4418 = vld [vmem:[%s4412 + $0x28] sm:$0xff]
        %v4419 = vld [vmem:[%s4412 + $0x30] sm:$0xff]
        %v4420 = vld [vmem:[%s4412 + $0x38] sm:$0xff]
        %v4421 = vld [vmem:[%s4412 + $0x40] sm:$0xff]
        %v4422 = vld [vmem:[%s4412 + $0x48] sm:$0xff]
        %v4423 = vld [vmem:[%s4412 + $0x50] sm:$0xff]
        %v4424 = vld [vmem:[%s4412 + $0x58] sm:$0xff]
        %v4425 = vld [vmem:[%s4412 + $0x60] sm:$0xff]
        %v4426 = vld [vmem:[%s4412 + $0x68] sm:$0xff]
        %v4427 = vld [vmem:[%s4412 + $0x70] sm:$0xff]
        %v4428 = vld [vmem:[%s4412 + $0x78] sm:$0xff]
        %v4429 = vld [vmem:[%s4412 + $0x80] sm:$0xff]
        %v4430 = vld [vmem:[%s4412 + $0x88] sm:$0xff]
        %v4431 = vld [vmem:[%s4412 + $0x90] sm:$0xff]
        %v4432 = vld [vmem:[%s4412 + $0x98] sm:$0xff]
        %v4433 = vld [vmem:[%s4412 + $0xa0] sm:$0xff]
        %v4434 = vld [vmem:[%s4412 + $0xa8] sm:$0xff]
        %v4435 = vld [vmem:[%s4412 + $0xb0] sm:$0xff]
        %v4436 = vld [vmem:[%s4412 + $0xb8] sm:$0xff]
        %v4437 = vld [vmem:[%s4412 + $0xc0] sm:$0xff]
        %v4438 = vld [vmem:[%s4412 + $0xc8] sm:$0xff]
        %v4439 = vld [vmem:[%s4412 + $0xd0] sm:$0xff]
        %v4440 = vld [vmem:[%s4412 + $0xd8] sm:$0xff]
        %v4441 = vld [vmem:[%s4412 + $0xe0] sm:$0xff]
        %v4442 = vld [vmem:[%s4412 + $0xe8] sm:$0xff]
        %v4443 = vld [vmem:[%s4412 + $0xf0] sm:$0xff]
        %v4444 = vld [vmem:[%s4412 + $0xf8] sm:$0xff]
        %v4445 = vrot.slane %v1268, 4
        %v4446 = vrot.slane %v1276, 3
        %v4447 = vsel %vm1348, %v4446, %v4445
        %v4448 = vrot.slane %v1269, 4
        %v4449 = vrot.slane %v1277, 3
        %v4450 = vsel %vm1348, %v4449, %v4448
        %4453 = vmatprep.subr.mxu0 0.0
        %4454 = vmatpush1.msra.mxu0 %v4428
        %4455 = vmatprep.subr.mxu0 0.0
        %4456 = vmatpush1.msra.mxu0 %v4427
        %4457 = vmatprep.subr.mxu0 0.0
        %4458 = vmatpush1.msra.mxu0 %v4426
        %4459 = vmatprep.subr.mxu0 0.0
        %4460 = vmatpush1.msra.mxu0 %v4425
        %4461 = vmatprep.subr.mxu0 0.0
        %4462 = vmatpush1.msra.mxu0 %v4424
        %4463 = vmatprep.subr.mxu0 0.0
        %4464 = vmatpush1.msra.mxu0 %v4423
        %4465 = vmatprep.subr.mxu0 0.0
        %4466 = vmatpush1.msra.mxu0 %v4422
        %4467 = vmatprep.subr.mxu0 0.0
        %4468 = vmatpush1.msra.mxu0 %v4421
        %4469 = vmatprep.subr.mxu0 0.0
        %4470 = vmatpush1.msra.mxu0 %v4420
        %4471 = vmatprep.subr.mxu0 0.0
        %4472 = vmatpush1.msra.mxu0 %v4419
        %4473 = vmatprep.subr.mxu0 0.0
        %4474 = vmatpush1.msra.mxu0 %v4418
        %4475 = vmatprep.subr.mxu0 0.0
        %4476 = vmatpush1.msra.mxu0 %v4417
        %4477 = vmatprep.subr.mxu0 0.0
        %4478 = vmatpush1.msra.mxu0 %v4416
        %4479 = vmatprep.subr.mxu0 0.0
        %4480 = vmatpush1.msra.mxu0 %v4415
        %4481 = vmatprep.subr.mxu0 0.0
        %4482 = vmatpush1.msra.mxu0 %v4414
        %4483 = vmatprep.subr.mxu0 0.0
        %4484 = vmatpush1.msra.mxu0 %v4413
        %4485 = vmatprep.subr.mxu0 0.0
        %4486 = vmatpush2.msra.mxu0 %v4444
        %4487 = vmatprep.subr.mxu0 0.0
        %4488 = vmatpush2.msra.mxu0 %v4443
        %4489 = vmatprep.subr.mxu0 0.0
        %4490 = vmatpush2.msra.mxu0 %v4442
        %4491 = vmatprep.subr.mxu0 0.0
        %4492 = vmatpush2.msra.mxu0 %v4441
        %4493 = vmatprep.subr.mxu0 0.0
        %4494 = vmatpush2.msra.mxu0 %v4440
        %4495 = vmatprep.subr.mxu0 0.0
        %4496 = vmatpush2.msra.mxu0 %v4439
        %4497 = vmatprep.subr.mxu0 0.0
        %4498 = vmatpush2.msra.mxu0 %v4438
        %4499 = vmatprep.subr.mxu0 0.0
        %4500 = vmatpush2.msra.mxu0 %v4437
        %4501 = vmatprep.subr.mxu0 0.0
        %4502 = vmatpush2.msra.mxu0 %v4436
        %4503 = vmatprep.subr.mxu0 0.0
        %4504 = vmatpush2.msra.mxu0 %v4435
        %4505 = vmatprep.subr.mxu0 0.0
        %4506 = vmatpush2.msra.mxu0 %v4434
        %4507 = vmatprep.subr.mxu0 0.0
        %4508 = vmatpush2.msra.mxu0 %v4433
        %4509 = vmatprep.subr.mxu0 0.0
        %4510 = vmatpush2.msra.mxu0 %v4432
        %4511 = vmatprep.subr.mxu0 0.0
        %4512 = vmatpush2.msra.mxu0 %v4431
        %4513 = vmatprep.subr.mxu0 0.0
        %4514 = vmatpush2.msra.mxu0 %v4430
        %4515 = vmatprep.subr.mxu0 0.0
        %4516 = vmatpush2.msra.mxu0 %v4429
        %4517 = vmatprep.mubr.f32.mxu0 %v4450
        %4518 = vmatmul.mubr.f32.gmra.mxu0 %v4447
        %v4519 = vpop.f32.mrf.mxu0
        %v4520 = vadd.f32 0.0, %v4519
        %v4521 = vpop.f32.mrf.mxu0
        %4522 = vdwg.mxu0
        %v4523 = vadd.f32 %v4411, %v4520
        %s4524 = scalar_lea.vmem %s326, 7424 [#allocation10]
        %v4525 = vld [vmem:[%s4524] sm:$0xff]
        %v4526 = vld [vmem:[%s4524 + $0x8] sm:$0xff]
        %v4527 = vld [vmem:[%s4524 + $0x10] sm:$0xff]
        %v4528 = vld [vmem:[%s4524 + $0x18] sm:$0xff]
        %v4529 = vld [vmem:[%s4524 + $0x20] sm:$0xff]
        %v4530 = vld [vmem:[%s4524 + $0x28] sm:$0xff]
        %v4531 = vld [vmem:[%s4524 + $0x30] sm:$0xff]
        %v4532 = vld [vmem:[%s4524 + $0x38] sm:$0xff]
        %v4533 = vld [vmem:[%s4524 + $0x40] sm:$0xff]
        %v4534 = vld [vmem:[%s4524 + $0x48] sm:$0xff]
        %v4535 = vld [vmem:[%s4524 + $0x50] sm:$0xff]
        %v4536 = vld [vmem:[%s4524 + $0x58] sm:$0xff]
        %v4537 = vld [vmem:[%s4524 + $0x60] sm:$0xff]
        %v4538 = vld [vmem:[%s4524 + $0x68] sm:$0xff]
        %v4539 = vld [vmem:[%s4524 + $0x70] sm:$0xff]
        %v4540 = vld [vmem:[%s4524 + $0x78] sm:$0xff]
        %v4541 = vld [vmem:[%s4524 + $0x80] sm:$0xff]
        %v4542 = vld [vmem:[%s4524 + $0x88] sm:$0xff]
        %v4543 = vld [vmem:[%s4524 + $0x90] sm:$0xff]
        %v4544 = vld [vmem:[%s4524 + $0x98] sm:$0xff]
        %v4545 = vld [vmem:[%s4524 + $0xa0] sm:$0xff]
        %v4546 = vld [vmem:[%s4524 + $0xa8] sm:$0xff]
        %v4547 = vld [vmem:[%s4524 + $0xb0] sm:$0xff]
        %v4548 = vld [vmem:[%s4524 + $0xb8] sm:$0xff]
        %v4549 = vld [vmem:[%s4524 + $0xc0] sm:$0xff]
        %v4550 = vld [vmem:[%s4524 + $0xc8] sm:$0xff]
        %v4551 = vld [vmem:[%s4524 + $0xd0] sm:$0xff]
        %v4552 = vld [vmem:[%s4524 + $0xd8] sm:$0xff]
        %v4553 = vld [vmem:[%s4524 + $0xe0] sm:$0xff]
        %v4554 = vld [vmem:[%s4524 + $0xe8] sm:$0xff]
        %v4555 = vld [vmem:[%s4524 + $0xf0] sm:$0xff]
        %v4556 = vld [vmem:[%s4524 + $0xf8] sm:$0xff]
        %v4557 = vrot.slane %v1268, 5
        %v4558 = vrot.slane %v1276, 4
        %v4559 = vsel %vm1348, %v4558, %v4557
        %v4560 = vrot.slane %v1269, 5
        %v4561 = vrot.slane %v1277, 4
        %v4562 = vsel %vm1348, %v4561, %v4560
        %4565 = vmatprep.subr.mxu0 0.0
        %4566 = vmatpush1.msra.mxu0 %v4540
        %4567 = vmatprep.subr.mxu0 0.0
        %4568 = vmatpush1.msra.mxu0 %v4539
        %4569 = vmatprep.subr.mxu0 0.0
        %4570 = vmatpush1.msra.mxu0 %v4538
        %4571 = vmatprep.subr.mxu0 0.0
        %4572 = vmatpush1.msra.mxu0 %v4537
        %4573 = vmatprep.subr.mxu0 0.0
        %4574 = vmatpush1.msra.mxu0 %v4536
        %4575 = vmatprep.subr.mxu0 0.0
        %4576 = vmatpush1.msra.mxu0 %v4535
        %4577 = vmatprep.subr.mxu0 0.0
        %4578 = vmatpush1.msra.mxu0 %v4534
        %4579 = vmatprep.subr.mxu0 0.0
        %4580 = vmatpush1.msra.mxu0 %v4533
        %4581 = vmatprep.subr.mxu0 0.0
        %4582 = vmatpush1.msra.mxu0 %v4532
        %4583 = vmatprep.subr.mxu0 0.0
        %4584 = vmatpush1.msra.mxu0 %v4531
        %4585 = vmatprep.subr.mxu0 0.0
        %4586 = vmatpush1.msra.mxu0 %v4530
        %4587 = vmatprep.subr.mxu0 0.0
        %4588 = vmatpush1.msra.mxu0 %v4529
        %4589 = vmatprep.subr.mxu0 0.0
        %4590 = vmatpush1.msra.mxu0 %v4528
        %4591 = vmatprep.subr.mxu0 0.0
        %4592 = vmatpush1.msra.mxu0 %v4527
        %4593 = vmatprep.subr.mxu0 0.0
        %4594 = vmatpush1.msra.mxu0 %v4526
        %4595 = vmatprep.subr.mxu0 0.0
        %4596 = vmatpush1.msra.mxu0 %v4525
        %4597 = vmatprep.subr.mxu0 0.0
        %4598 = vmatpush2.msra.mxu0 %v4556
        %4599 = vmatprep.subr.mxu0 0.0
        %4600 = vmatpush2.msra.mxu0 %v4555
        %4601 = vmatprep.subr.mxu0 0.0
        %4602 = vmatpush2.msra.mxu0 %v4554
        %4603 = vmatprep.subr.mxu0 0.0
        %4604 = vmatpush2.msra.mxu0 %v4553
        %4605 = vmatprep.subr.mxu0 0.0
        %4606 = vmatpush2.msra.mxu0 %v4552
        %4607 = vmatprep.subr.mxu0 0.0
        %4608 = vmatpush2.msra.mxu0 %v4551
        %4609 = vmatprep.subr.mxu0 0.0
        %4610 = vmatpush2.msra.mxu0 %v4550
        %4611 = vmatprep.subr.mxu0 0.0
        %4612 = vmatpush2.msra.mxu0 %v4549
        %4613 = vmatprep.subr.mxu0 0.0
        %4614 = vmatpush2.msra.mxu0 %v4548
        %4615 = vmatprep.subr.mxu0 0.0
        %4616 = vmatpush2.msra.mxu0 %v4547
        %4617 = vmatprep.subr.mxu0 0.0
        %4618 = vmatpush2.msra.mxu0 %v4546
        %4619 = vmatprep.subr.mxu0 0.0
        %4620 = vmatpush2.msra.mxu0 %v4545
        %4621 = vmatprep.subr.mxu0 0.0
        %4622 = vmatpush2.msra.mxu0 %v4544
        %4623 = vmatprep.subr.mxu0 0.0
        %4624 = vmatpush2.msra.mxu0 %v4543
        %4625 = vmatprep.subr.mxu0 0.0
        %4626 = vmatpush2.msra.mxu0 %v4542
        %4627 = vmatprep.subr.mxu0 0.0
        %4628 = vmatpush2.msra.mxu0 %v4541
        %4629 = vmatprep.mubr.f32.mxu0 %v4562
        %4630 = vmatmul.mubr.f32.gmra.mxu0 %v4559
        %v4631 = vpop.f32.mrf.mxu0
        %v4632 = vadd.f32 0.0, %v4631
        %v4633 = vpop.f32.mrf.mxu0
        %4634 = vdwg.mxu0
        %v4635 = vadd.f32 %v4523, %v4632
        %s4636 = scalar_lea.vmem %s326, 7680 [#allocation10]
        %v4637 = vld [vmem:[%s4636] sm:$0xff]
        %v4638 = vld [vmem:[%s4636 + $0x8] sm:$0xff]
        %v4639 = vld [vmem:[%s4636 + $0x10] sm:$0xff]
        %v4640 = vld [vmem:[%s4636 + $0x18] sm:$0xff]
        %v4641 = vld [vmem:[%s4636 + $0x20] sm:$0xff]
        %v4642 = vld [vmem:[%s4636 + $0x28] sm:$0xff]
        %v4643 = vld [vmem:[%s4636 + $0x30] sm:$0xff]
        %v4644 = vld [vmem:[%s4636 + $0x38] sm:$0xff]
        %v4645 = vld [vmem:[%s4636 + $0x40] sm:$0xff]
        %v4646 = vld [vmem:[%s4636 + $0x48] sm:$0xff]
        %v4647 = vld [vmem:[%s4636 + $0x50] sm:$0xff]
        %v4648 = vld [vmem:[%s4636 + $0x58] sm:$0xff]
        %v4649 = vld [vmem:[%s4636 + $0x60] sm:$0xff]
        %v4650 = vld [vmem:[%s4636 + $0x68] sm:$0xff]
        %v4651 = vld [vmem:[%s4636 + $0x70] sm:$0xff]
        %v4652 = vld [vmem:[%s4636 + $0x78] sm:$0xff]
        %v4653 = vld [vmem:[%s4636 + $0x80] sm:$0xff]
        %v4654 = vld [vmem:[%s4636 + $0x88] sm:$0xff]
        %v4655 = vld [vmem:[%s4636 + $0x90] sm:$0xff]
        %v4656 = vld [vmem:[%s4636 + $0x98] sm:$0xff]
        %v4657 = vld [vmem:[%s4636 + $0xa0] sm:$0xff]
        %v4658 = vld [vmem:[%s4636 + $0xa8] sm:$0xff]
        %v4659 = vld [vmem:[%s4636 + $0xb0] sm:$0xff]
        %v4660 = vld [vmem:[%s4636 + $0xb8] sm:$0xff]
        %v4661 = vld [vmem:[%s4636 + $0xc0] sm:$0xff]
        %v4662 = vld [vmem:[%s4636 + $0xc8] sm:$0xff]
        %v4663 = vld [vmem:[%s4636 + $0xd0] sm:$0xff]
        %v4664 = vld [vmem:[%s4636 + $0xd8] sm:$0xff]
        %v4665 = vld [vmem:[%s4636 + $0xe0] sm:$0xff]
        %v4666 = vld [vmem:[%s4636 + $0xe8] sm:$0xff]
        %v4667 = vld [vmem:[%s4636 + $0xf0] sm:$0xff]
        %v4668 = vld [vmem:[%s4636 + $0xf8] sm:$0xff]
        %v4669 = vrot.slane %v1268, 6
        %v4670 = vrot.slane %v1276, 5
        %v4671 = vsel %vm1348, %v4670, %v4669
        %v4672 = vrot.slane %v1269, 6
        %v4673 = vrot.slane %v1277, 5
        %v4674 = vsel %vm1348, %v4673, %v4672
        %4677 = vmatprep.subr.mxu0 0.0
        %4678 = vmatpush1.msra.mxu0 %v4652
        %4679 = vmatprep.subr.mxu0 0.0
        %4680 = vmatpush1.msra.mxu0 %v4651
        %4681 = vmatprep.subr.mxu0 0.0
        %4682 = vmatpush1.msra.mxu0 %v4650
        %4683 = vmatprep.subr.mxu0 0.0
        %4684 = vmatpush1.msra.mxu0 %v4649
        %4685 = vmatprep.subr.mxu0 0.0
        %4686 = vmatpush1.msra.mxu0 %v4648
        %4687 = vmatprep.subr.mxu0 0.0
        %4688 = vmatpush1.msra.mxu0 %v4647
        %4689 = vmatprep.subr.mxu0 0.0
        %4690 = vmatpush1.msra.mxu0 %v4646
        %4691 = vmatprep.subr.mxu0 0.0
        %4692 = vmatpush1.msra.mxu0 %v4645
        %4693 = vmatprep.subr.mxu0 0.0
        %4694 = vmatpush1.msra.mxu0 %v4644
        %4695 = vmatprep.subr.mxu0 0.0
        %4696 = vmatpush1.msra.mxu0 %v4643
        %4697 = vmatprep.subr.mxu0 0.0
        %4698 = vmatpush1.msra.mxu0 %v4642
        %4699 = vmatprep.subr.mxu0 0.0
        %4700 = vmatpush1.msra.mxu0 %v4641
        %4701 = vmatprep.subr.mxu0 0.0
        %4702 = vmatpush1.msra.mxu0 %v4640
        %4703 = vmatprep.subr.mxu0 0.0
        %4704 = vmatpush1.msra.mxu0 %v4639
        %4705 = vmatprep.subr.mxu0 0.0
        %4706 = vmatpush1.msra.mxu0 %v4638
        %4707 = vmatprep.subr.mxu0 0.0
        %4708 = vmatpush1.msra.mxu0 %v4637
        %4709 = vmatprep.subr.mxu0 0.0
        %4710 = vmatpush2.msra.mxu0 %v4668
        %4711 = vmatprep.subr.mxu0 0.0
        %4712 = vmatpush2.msra.mxu0 %v4667
        %4713 = vmatprep.subr.mxu0 0.0
        %4714 = vmatpush2.msra.mxu0 %v4666
        %4715 = vmatprep.subr.mxu0 0.0
        %4716 = vmatpush2.msra.mxu0 %v4665
        %4717 = vmatprep.subr.mxu0 0.0
        %4718 = vmatpush2.msra.mxu0 %v4664
        %4719 = vmatprep.subr.mxu0 0.0
        %4720 = vmatpush2.msra.mxu0 %v4663
        %4721 = vmatprep.subr.mxu0 0.0
        %4722 = vmatpush2.msra.mxu0 %v4662
        %4723 = vmatprep.subr.mxu0 0.0
        %4724 = vmatpush2.msra.mxu0 %v4661
        %4725 = vmatprep.subr.mxu0 0.0
        %4726 = vmatpush2.msra.mxu0 %v4660
        %4727 = vmatprep.subr.mxu0 0.0
        %4728 = vmatpush2.msra.mxu0 %v4659
        %4729 = vmatprep.subr.mxu0 0.0
        %4730 = vmatpush2.msra.mxu0 %v4658
        %4731 = vmatprep.subr.mxu0 0.0
        %4732 = vmatpush2.msra.mxu0 %v4657
        %4733 = vmatprep.subr.mxu0 0.0
        %4734 = vmatpush2.msra.mxu0 %v4656
        %4735 = vmatprep.subr.mxu0 0.0
        %4736 = vmatpush2.msra.mxu0 %v4655
        %4737 = vmatprep.subr.mxu0 0.0
        %4738 = vmatpush2.msra.mxu0 %v4654
        %4739 = vmatprep.subr.mxu0 0.0
        %4740 = vmatpush2.msra.mxu0 %v4653
        %4741 = vmatprep.mubr.f32.mxu0 %v4674
        %4742 = vmatmul.mubr.f32.gmra.mxu0 %v4671
        %v4743 = vpop.f32.mrf.mxu0
        %v4744 = vadd.f32 0.0, %v4743
        %v4745 = vpop.f32.mrf.mxu0
        %4746 = vdwg.mxu0
        %v4747 = vadd.f32 %v4635, %v4744
        %s4748 = scalar_lea.vmem %s326, 7936 [#allocation10]
        %v4749 = vld [vmem:[%s4748] sm:$0xff]
        %v4750 = vld [vmem:[%s4748 + $0x8] sm:$0xff]
        %v4751 = vld [vmem:[%s4748 + $0x10] sm:$0xff]
        %v4752 = vld [vmem:[%s4748 + $0x18] sm:$0xff]
        %v4753 = vld [vmem:[%s4748 + $0x20] sm:$0xff]
        %v4754 = vld [vmem:[%s4748 + $0x28] sm:$0xff]
        %v4755 = vld [vmem:[%s4748 + $0x30] sm:$0xff]
        %v4756 = vld [vmem:[%s4748 + $0x38] sm:$0xff]
        %v4757 = vld [vmem:[%s4748 + $0x40] sm:$0xff]
        %v4758 = vld [vmem:[%s4748 + $0x48] sm:$0xff]
        %v4759 = vld [vmem:[%s4748 + $0x50] sm:$0xff]
        %v4760 = vld [vmem:[%s4748 + $0x58] sm:$0xff]
        %v4761 = vld [vmem:[%s4748 + $0x60] sm:$0xff]
        %v4762 = vld [vmem:[%s4748 + $0x68] sm:$0xff]
        %v4763 = vld [vmem:[%s4748 + $0x70] sm:$0xff]
        %v4764 = vld [vmem:[%s4748 + $0x78] sm:$0xff]
        %v4765 = vld [vmem:[%s4748 + $0x80] sm:$0xff]
        %v4766 = vld [vmem:[%s4748 + $0x88] sm:$0xff]
        %v4767 = vld [vmem:[%s4748 + $0x90] sm:$0xff]
        %v4768 = vld [vmem:[%s4748 + $0x98] sm:$0xff]
        %v4769 = vld [vmem:[%s4748 + $0xa0] sm:$0xff]
        %v4770 = vld [vmem:[%s4748 + $0xa8] sm:$0xff]
        %v4771 = vld [vmem:[%s4748 + $0xb0] sm:$0xff]
        %v4772 = vld [vmem:[%s4748 + $0xb8] sm:$0xff]
        %v4773 = vld [vmem:[%s4748 + $0xc0] sm:$0xff]
        %v4774 = vld [vmem:[%s4748 + $0xc8] sm:$0xff]
        %v4775 = vld [vmem:[%s4748 + $0xd0] sm:$0xff]
        %v4776 = vld [vmem:[%s4748 + $0xd8] sm:$0xff]
        %v4777 = vld [vmem:[%s4748 + $0xe0] sm:$0xff]
        %v4778 = vld [vmem:[%s4748 + $0xe8] sm:$0xff]
        %v4779 = vld [vmem:[%s4748 + $0xf0] sm:$0xff]
        %v4780 = vld [vmem:[%s4748 + $0xf8] sm:$0xff]
        %v4781 = vrot.slane %v1268, 7
        %v4782 = vrot.slane %v1276, 6
        %v4783 = vsel %vm1348, %v4782, %v4781
        %v4784 = vrot.slane %v1269, 7
        %v4785 = vrot.slane %v1277, 6
        %v4786 = vsel %vm1348, %v4785, %v4784
        %4789 = vmatprep.subr.mxu0 0.0
        %4790 = vmatpush1.msra.mxu0 %v4764
        %4791 = vmatprep.subr.mxu0 0.0
        %4792 = vmatpush1.msra.mxu0 %v4763
        %4793 = vmatprep.subr.mxu0 0.0
        %4794 = vmatpush1.msra.mxu0 %v4762
        %4795 = vmatprep.subr.mxu0 0.0
        %4796 = vmatpush1.msra.mxu0 %v4761
        %4797 = vmatprep.subr.mxu0 0.0
        %4798 = vmatpush1.msra.mxu0 %v4760
        %4799 = vmatprep.subr.mxu0 0.0
        %4800 = vmatpush1.msra.mxu0 %v4759
        %4801 = vmatprep.subr.mxu0 0.0
        %4802 = vmatpush1.msra.mxu0 %v4758
        %4803 = vmatprep.subr.mxu0 0.0
        %4804 = vmatpush1.msra.mxu0 %v4757
        %4805 = vmatprep.subr.mxu0 0.0
        %4806 = vmatpush1.msra.mxu0 %v4756
        %4807 = vmatprep.subr.mxu0 0.0
        %4808 = vmatpush1.msra.mxu0 %v4755
        %4809 = vmatprep.subr.mxu0 0.0
        %4810 = vmatpush1.msra.mxu0 %v4754
        %4811 = vmatprep.subr.mxu0 0.0
        %4812 = vmatpush1.msra.mxu0 %v4753
        %4813 = vmatprep.subr.mxu0 0.0
        %4814 = vmatpush1.msra.mxu0 %v4752
        %4815 = vmatprep.subr.mxu0 0.0
        %4816 = vmatpush1.msra.mxu0 %v4751
        %4817 = vmatprep.subr.mxu0 0.0
        %4818 = vmatpush1.msra.mxu0 %v4750
        %4819 = vmatprep.subr.mxu0 0.0
        %4820 = vmatpush1.msra.mxu0 %v4749
        %4821 = vmatprep.subr.mxu0 0.0
        %4822 = vmatpush2.msra.mxu0 %v4780
        %4823 = vmatprep.subr.mxu0 0.0
        %4824 = vmatpush2.msra.mxu0 %v4779
        %4825 = vmatprep.subr.mxu0 0.0
        %4826 = vmatpush2.msra.mxu0 %v4778
        %4827 = vmatprep.subr.mxu0 0.0
        %4828 = vmatpush2.msra.mxu0 %v4777
        %4829 = vmatprep.subr.mxu0 0.0
        %4830 = vmatpush2.msra.mxu0 %v4776
        %4831 = vmatprep.subr.mxu0 0.0
        %4832 = vmatpush2.msra.mxu0 %v4775
        %4833 = vmatprep.subr.mxu0 0.0
        %4834 = vmatpush2.msra.mxu0 %v4774
        %4835 = vmatprep.subr.mxu0 0.0
        %4836 = vmatpush2.msra.mxu0 %v4773
        %4837 = vmatprep.subr.mxu0 0.0
        %4838 = vmatpush2.msra.mxu0 %v4772
        %4839 = vmatprep.subr.mxu0 0.0
        %4840 = vmatpush2.msra.mxu0 %v4771
        %4841 = vmatprep.subr.mxu0 0.0
        %4842 = vmatpush2.msra.mxu0 %v4770
        %4843 = vmatprep.subr.mxu0 0.0
        %4844 = vmatpush2.msra.mxu0 %v4769
        %4845 = vmatprep.subr.mxu0 0.0
        %4846 = vmatpush2.msra.mxu0 %v4768
        %4847 = vmatprep.subr.mxu0 0.0
        %4848 = vmatpush2.msra.mxu0 %v4767
        %4849 = vmatprep.subr.mxu0 0.0
        %4850 = vmatpush2.msra.mxu0 %v4766
        %4851 = vmatprep.subr.mxu0 0.0
        %4852 = vmatpush2.msra.mxu0 %v4765
        %4853 = vmatprep.mubr.f32.mxu0 %v4786
        %4854 = vmatmul.mubr.f32.gmra.mxu0 %v4783
        %v4855 = vpop.f32.mrf.mxu0
        %v4856 = vadd.f32 0.0, %v4855
        %v4857 = vpop.f32.mrf.mxu0
        %4858 = vdwg.mxu0
        %v4859 = vadd.f32 %v4747, %v4856
        %v4860 = vld [vmem:[#allocation3] sm:$0x3]
        %v4861 = vadd.f32 %v4860, %v4859
        %4862 = vst [vmem:[#allocation3] sm:$0x3] %v4861
        %p4863 = scmp.eq.s32.totalorder %s34, 1
        // Predicated region
        $region65: #{tpu_custom_call.1} parent=39 // pred_check
          %p4864 = pneg %p4863
        $region66: #{tpu_custom_call.1} parent=39 // pred_check_branch
          %4866 = sbr.rel (%p4864) target = $region68
        $region67: #{tpu_custom_call.1} parent=39 // pred_region
          %v4867 = vld [vmem:[#allocation3] sm:$0x3]
          %v4868 = vld [vmem:[%s334] sm:$0x1]
          %v4870 = vlaneseq
          %v4871 = vshrl.u32 %v4870, 7
          %v4872 = vsub.s32 0, %v4871
          %v4873 = vrot.slane %v4868, %v4872
          %v4875 = vadd.f32 %v4867, %v4873
          %v4876 = vmax.f32 %v4875, 0.0
          %4877 = vst [vmem:[%s364] sm:$0x3] %v4876
        $region68: #{tpu_custom_call.1} parent=39 // pred_fallthru
          _
        %s4878 = sand.u32 %s166, 1
        %s4879 = scalar_lea.sflag [#allocation6], %s4878
        %s4880 = sand.u32 %s166, 1
        %s4881 = smul.addr %s4880, 2
        %s4882 = scalar_lea.vmem [#allocation13], %s4881
        %s4883 = sand.u32 %s192, 1
        %s4884 = scalar_lea.sflag [#allocation15], %s4883
        %s4885 = sand.u32 %s192, 1
        %s4886 = smul.addr %s4885, 128
        %s4887 = scalar_lea.vmem [#allocation14], %s4886
        // Predicated region
        $region69: #{tpu_custom_call.1} parent=39 // pred_check
          %p4888 = pneg %p176
        $region70: #{tpu_custom_call.1} parent=39 // pred_check_branch
          %4890 = sbr.rel (%p4888) target = $region72
        $region71: #{tpu_custom_call.1} parent=39 // pred_region
          %s4892 = ssub.s32 32, 32
          %4893 = vsyncadd %s4879, %s4892
          %s4894 = smul.addr %s33, 32
          %s4895 = scalar_lea.hbm %s5, %s4894
          %s4897 = sshll.u32 %s4882, 4
          %s4898 = int_to_ptr.vmem [resolvable:$true] %s4897
          %4900 = dma.vmem_to_hbm [thread:$0]  %s4898, 32, %s4895, %s4879
        $region72: #{tpu_custom_call.1} parent=39 // pred_fallthru
          _
        // Predicated region
        $region73: #{tpu_custom_call.1} parent=39 // pred_check
          %p4901 = pneg %p202
        $region74: #{tpu_custom_call.1} parent=39 // pred_check_branch
          %4903 = sbr.rel (%p4901) target = $region76
        $region75: #{tpu_custom_call.1} parent=39 // pred_region
          #allocation17 [shape = 'u32[6]{0}', space=smem, size = 0x18, scoped, tag = 'DMA stride descriptor']
          %s4904 = smul.u32 4, %s33
          %s4906 = ssub.s32 2048, 2048
          %4907 = vsyncadd %s4884, %s4906
          %s4908 = smul.addr %s4904, 2
          %s4909 = smul.addr %s4908, 128
          %s4910 = scalar_lea.hbm %s6, %s4909
          %s4912 = sshll.u32 1, 14
          %s4913 = sxor.u32 4294967295, %s4912
          %s4916 = sshll.u32 7, 18
          %s4917 = sxor.u32 4294967295, %s4916
          %s4918 = sand.u32 0, %s4917
          %s4920 = sor.u32 %s4918, 0
          %s4921 = sshll.u32 %s4887, 4
          %s4922 = int_to_ptr.vmem [resolvable:$true] %s4921
          %4928 = sst [smem:[#allocation17]] 1024
          %s4929 = scalar_lea.smem [#allocation17], 1
          %4930 = sst [smem:[%s4929]] 2048
          %s4931 = scalar_lea.smem [#allocation17], 2
          %4932 = sst [smem:[%s4931]] 4
          %s4933 = scalar_lea.smem [#allocation17], 3
          %4934 = sst [smem:[%s4933]] 256
          %s4935 = scalar_lea.smem [#allocation17], 4
          %4936 = sst [smem:[%s4935]] 256
          %s4937 = scalar_lea.smem [#allocation17], 5
          %4938 = sst [smem:[%s4937]] 16
          %4940 = dma.general %s4922, 2048, %s4910, %s4884, 131072, [#allocation17], %s4920, 0
        $region76: #{tpu_custom_call.1} parent=39 // pred_fallthru
          _
      $region40: #{tpu_custom_call.1} parent=5 // pred_fallthru
        _
      %p4941 = scmp.le.s32.totalorder 2, %s24
      // Predicated region
      $region77: #{tpu_custom_call.1} parent=5 // pred_check
        %p4942 = pneg %p4941
      $region78: #{tpu_custom_call.1} parent=5 // pred_check_branch
        %4944 = sbr.rel (%p4942) target = $region80
      $region79: #{tpu_custom_call.1} parent=5 // pred_region
        %s4945 = ssub.s32 %s24, 2
        // Predicated region
        $region81: #{tpu_custom_call.1} parent=79 // pred_check
          %p4946 = pneg %p182
        $region82: #{tpu_custom_call.1} parent=79 // pred_check_branch
          %4948 = sbr.rel (%p4946) target = $region84
        $region83: #{tpu_custom_call.1} parent=79 // pred_region
          %s4949 = sand.u32 %s167, 1
          %s4950 = scalar_lea.sflag [#allocation6], %s4949
          %s4951 = sand.u32 %s167, 1
          %s4952 = smul.addr %s4951, 2
          %s4953 = scalar_lea.vmem [#allocation13], %s4952
          %4954 = dma.done %s4950, 32
        $region84: #{tpu_custom_call.1} parent=79 // pred_fallthru
          _
        // Predicated region
        $region85: #{tpu_custom_call.1} parent=79 // pred_check
          %p4955 = pneg %p208
        $region86: #{tpu_custom_call.1} parent=79 // pred_check_branch
          %4957 = sbr.rel (%p4955) target = $region88
        $region87: #{tpu_custom_call.1} parent=79 // pred_region
          %s4958 = sand.u32 %s193, 1
          %s4959 = scalar_lea.sflag [#allocation15], %s4958
          %s4960 = sand.u32 %s193, 1
          %s4961 = smul.addr %s4960, 128
          %s4962 = scalar_lea.vmem [#allocation14], %s4961
          %4963 = dma.done %s4959, 2048
        $region88: #{tpu_custom_call.1} parent=79 // pred_fallthru
          _
      $region80: #{tpu_custom_call.1} parent=5 // pred_fallthru
        _
    $region6: #{tpu_custom_call.1} parent=1 // loop_footer
      %s28 = sadd.s32 1, %s24
    $region7: #{tpu_custom_call.1} parent=1 // loop_footer_branch
      %23 = sbr.rel target = $region3
    $region8: #{tpu_custom_call.1} parent=1 // loop_exit
      _
    %4964 = vsyncpa [#allocation5], 1
    %s4965 = scalar_lea.sflag [#allocation5], 1
    %4966 = vsyncpa %s4965, 1
    %4967 = vsyncpa [#allocation8], 1
    %4968 = vsyncpa [#allocation11], 1
    %s4969 = scalar_lea.sflag [#allocation11], 1
    %4970 = vsyncpa %s4969, 1
    %4971 = vsyncpa [#allocation6], 1
    %s4972 = scalar_lea.sflag [#allocation6], 1
    %4973 = vsyncpa %s4972, 1
    %4974 = vsyncpa [#allocation15], 1
    %s4975 = scalar_lea.sflag [#allocation15], 1
    %4976 = vsyncpa %s4975, 1

</llo_original>
